<compile_context>
chip_gen: v6e
topology: v6e:2x2x1
jax: 0.10.0
libtpu: 0.0.40
codegen_flags: <defaults>
</compile_context>

<pallas_src>
import functools

import jax
import jax.numpy as jnp
import numpy as np
from jax.experimental import pallas as pl
from jax.experimental.pallas import tpu as pltpu

# ----------------------- model hyper-parameters (small) ----------------------
INPUT_DIM = 33
NORMALIZE_STOP = 30
RECON_VOLUME = (3.0 - 1.5) * 2.0 * 47.0 * 2.0   # 282.0, as in the module
HIDDEN_DIM = 128                                 # module default 256 (kept small, lane-dense)
NITERS = 2                                       # module default 4 (kept small)
LEAKY_SLOPE = 0.01                               # nn.LeakyReLU default
PRED_PAD = 128                                   # pad the 1-wide output Linear to 128 lanes
TILE_E = 8                                       # edges per grid step (use 256-512 in production)

# TODO(synk): nn.Dropout is identity here (inference semantics); SummaryWriter /
#             tensorboard logging has no kernel equivalent; edge_feature_dim=0,
#             weighted_aggr=False, both_way_edge_emb=False (module defaults) so
#             those branches are never taken.
# TODO(synk): on v7x the edge-tile grid axis could be "parallel" across the two
#             TensorCores if node_emb were shared (VMEM_SHARED) or recomputed
#             per core; kept "arbitrary" (sequential) here for correctness.


def _leaky(x):
    return jnp.where(x > 0, x, LEAKY_SLOPE * x)


def _dot(a, b):
    return jnp.dot(a, b, preferred_element_type=jnp.float32)


# ------------------------------- fused kernel --------------------------------
def fused_forward_kernel(
        x_ref, g_ref, tT_ref, src_ref, dst_ref,
        in0w_ref, in0b_ref, in1w_ref, in1b_ref,
        gw0_ref, gb0_ref, gw1_ref, gb1_ref,
        ed0wa_ref, ed0wb_ref, ed0b_ref, ed1w_ref, ed1b_ref,
        node_ref, edge_ref, pred_ref,
        node_scr,
        *, stop, vol, input_dim, niters, n_rows):
    H = node_scr.shape[1]

    # ---------------- node stage: runs ONCE, result persists in VMEM ---------
    @pl.when(pl.program_id(0) == 0)
    def _node_stage():
        # feature normalization (population std, matches unbiased=False)
        x = x_ref[...]                                           # (N, input_dim) f32
        col = jax.lax.broadcasted_iota(jnp.int32, x.shape, 1)
        mean = jnp.mean(x, axis=0, keepdims=True)
        var = jnp.mean((x - mean) ** 2, axis=0, keepdims=True)
        std = jnp.sqrt(var) + 1e-4
        xn = jnp.where(col < stop, (x - mean) / std, 0.0)
        if input_dim > stop:
            xn = jnp.where(col == stop, x / (1000.0 * vol), xn)
            xn = jnp.where(col == stop + 1, x / (100.0 * vol), xn)
        if input_dim == 33:
            tcol = x[:, input_dim - 1:input_dim]                 # narrow (N, 1) slice
            valid = tcol > -99.0
            cnt = jnp.maximum(jnp.sum(valid.astype(jnp.float32)), 1.0)
            tmean = jnp.sum(jnp.where(valid, tcol, 0.0)) / cnt
            tvar = jnp.sum(jnp.where(valid, (tcol - tmean) ** 2, 0.0)) / cnt
            tstd = jnp.sqrt(tvar) + 1e-4
            tnorm = jnp.where(valid, (tcol - tmean) / tstd, -10.0)
            xn = jnp.where(col == input_dim - 1, tnorm, xn)

        # input network: Linear -> LeakyReLU -> (dropout=id) -> Linear -> LeakyReLU
        h = _leaky(_dot(xn, in0w_ref[...]) + in0b_ref[...])
        node = _leaky(_dot(h, in1w_ref[...]) + in1b_ref[...])     # (N, H)

        # NITERS EdgeConv blocks; node_emb never leaves VMEM
        g_op = g_ref[...]                                         # (2M, N) = [T ; A-T]
        tT = tT_ref[...]                                          # (N, M)  = T^T
        for i in range(niters):                                   # unrolled (niters small)
            r = _dot(g_op, node)                                  # (2M, H) single matmul
            gx = jnp.concatenate([r[:n_rows], r[n_rows:]], axis=-1)   # (M, 2H)
            y = jnp.maximum(_dot(gx, gw0_ref[i]) + gb0_ref[i], 0.0)   # conv0 (K=2H) + ReLU
            y = jnp.maximum(_dot(y, gw1_ref[i]) + gb1_ref[i], 0.0)    # conv1 + ReLU (M, H)
            node = jnp.maximum(node + _dot(tT, y), 0.0)               # ReLU(sc + T^T y)

        node_scr[...] = node
        node_ref[...] = node

    # ---------------- edge stage: per edge tile (pipelined over grid) --------
    node = node_scr[...]                                          # (N, H)
    n_nodes = node.shape[0]
    te = src_ref.shape[0]

    idx = jnp.concatenate([src_ref[...], dst_ref[...]], axis=0)   # (2*TE, 1) int32
    ids = jax.lax.broadcasted_iota(jnp.int32, (2 * te, n_nodes), 1)
    sel = (idx == ids).astype(jnp.float32)                        # one-hot (2*TE, N)
    r = _dot(sel, node)                                           # (2*TE, H) single gather matmul
    e_src = r[:te]
    e_dst = r[te:]

    edge_ref[:, :H] = e_src                                       # lane-aligned slice stores
    edge_ref[:, H:] = e_dst

    # edge network: Linear(2H,H) -> LeakyReLU -> Linear(H,1 padded to 128)
    h = _leaky(_dot(e_src, ed0wa_ref[...]) + _dot(e_dst, ed0wb_ref[...]) + ed0b_ref[...])
    pred_ref[...] = _dot(h, ed1w_ref[...]) + ed1b_ref[...]        # logits, lane-dense store


# ------------------------------ parameter packing -----------------------------
def _pack_params(params):
    H = HIDDEN_DIM
    gc = params["graphconvs"]
    return dict(
        in0w=params["in0_w"], in0b=params["in0_b"],
        in1w=params["in1_w"], in1b=params["in1_b"],
        gw0=jnp.stack([p["w0"] for p in gc]),            # (NITERS, 2H, 2H)
        gb0=jnp.stack([p["b0"] for p in gc]),            # (NITERS, 1, 2H)
        gw1=jnp.stack([p["w1"] for p in gc]),            # (NITERS, 2H, H)
        gb1=jnp.stack([p["b1"] for p in gc]),            # (NITERS, 1, H)
        ed0wa=params["ed0_w"][:H, :],                    # (H, H)
        ed0wb=params["ed0_w"][H:, :],                    # (H, H)
        ed0b=params["ed0_b"],
        ed1w=jnp.pad(params["ed1_w"], ((0, 0), (0, PRED_PAD - 1))),
        ed1b=jnp.pad(params["ed1_b"], ((0, 0), (0, PRED_PAD - 1))),
    )


def _full_spec(shape):
    """Whole-array block with a constant index map (resident across grid steps)."""
    return pl.BlockSpec(shape, lambda i, _s=shape: (0,) * len(_s))


# ------------------------------ model forward ---------------------------------
@jax.jit
def forward(params, X, edge_index, Adj, trackster_index):
    X = jnp.squeeze(X, axis=0)[:, :INPUT_DIM].astype(jnp.float32)
    Adj = jnp.squeeze(Adj, axis=0).astype(jnp.float32)
    T = jnp.squeeze(trackster_index, axis=0).astype(jnp.float32)
    eidx = jnp.squeeze(edge_index, axis=0).astype(jnp.int32)     # (2, E)

    # Loop-invariant graph operands computed once, stacked for a single matmul.
    G = jnp.concatenate([T, Adj - T], axis=0)                    # (2M, N)
    tT = T.T                                                     # (N, M)

    N, M, E, H = X.shape[0], T.shape[0], eidx.shape[1], HIDDEN_DIM
    n_tiles = pl.cdiv(E, TILE_E)
    E_pad = n_tiles * TILE_E
    src = jnp.pad(eidx[0], (0, E_pad - E)).reshape(E_pad, 1)     # (E_pad, 1)
    dst = jnp.pad(eidx[1], (0, E_pad - E)).reshape(E_pad, 1)

    p = _pack_params(params)

    node_emb, edge_pad, logits_pad = pl.pallas_call(
        functools.partial(fused_forward_kernel, stop=NORMALIZE_STOP,
                          vol=RECON_VOLUME, input_dim=INPUT_DIM,
                          niters=NITERS, n_rows=M),
        out_shape=(jax.ShapeDtypeStruct((N, H), jnp.float32),
                   jax.ShapeDtypeStruct((E_pad, 2 * H), jnp.float32),
                   jax.ShapeDtypeStruct((E_pad, PRED_PAD), jnp.float32)),
        grid_spec=pltpu.PrefetchScalarGridSpec(
            num_scalar_prefetch=0,
            grid=(n_tiles,),
            in_specs=[
                _full_spec((N, INPUT_DIM)),                      # X
                _full_spec((2 * M, N)),                          # [T ; A-T]
                _full_spec((N, M)),                              # T^T
                pl.BlockSpec((TILE_E, 1), lambda i: (i, 0)),     # src indices
                pl.BlockSpec((TILE_E, 1), lambda i: (i, 0)),     # dst indices
                _full_spec((INPUT_DIM, H)), _full_spec((1, H)),  # input MLP 0
                _full_spec((H, H)), _full_spec((1, H)),          # input MLP 1
                _full_spec((NITERS, H, 2 * H) if False else (NITERS, 2 * H, 2 * H)),
                _full_spec((NITERS, 1, 2 * H)),
                _full_spec((NITERS, 2 * H, H)),
                _full_spec((NITERS, 1, H)),
                _full_spec((H, H)), _full_spec((H, H)),          # edge MLP 0 (split)
                _full_spec((1, H)),
                _full_spec((H, PRED_PAD)), _full_spec((1, PRED_PAD)),
            ],
            out_specs=(
                _full_spec((N, H)),                              # node_emb (written once)
                pl.BlockSpec((TILE_E, 2 * H), lambda i: (i, 0)), # edge_emb tile
                pl.BlockSpec((TILE_E, PRED_PAD), lambda i: (i, 0)),
            ),
            scratch_shapes=[pltpu.VMEM((N, H), jnp.float32)]),   # persistent node_emb
        compiler_params=pltpu.CompilerParams(
            dimension_semantics=("arbitrary",)),
    )(X, G, tT, src, dst,
      p["in0w"], p["in0b"], p["in1w"], p["in1b"],
      p["gw0"], p["gb0"], p["gw1"], p["gb1"],
      p["ed0wa"], p["ed0wb"], p["ed0b"], p["ed1w"], p["ed1b"])

    # Sigmoid applied on the sliced (E,) column (not on 128 padded lanes in-kernel).
    pred = jax.nn.sigmoid(logits_pad[:E, 0])
    edge_emb = edge_pad[:E]
    return pred, node_emb, edge_emb


# --------------------------------- parameters ---------------------------------
def _linear_init(key, fan_in, fan_out):
    kw, kb = jax.random.split(key)
    bound = 1.0 / np.sqrt(fan_in)
    w = jax.random.uniform(kw, (fan_in, fan_out), jnp.float32, -bound, bound)
    b = jax.random.uniform(kb, (1, fan_out), jnp.float32, -bound, bound)
    return w, b


def init_params(key):
    H = HIDDEN_DIM
    keys = jax.random.split(key, 4 + 2 * NITERS)
    p = {}
    p["in0_w"], p["in0_b"] = _linear_init(keys[0], INPUT_DIM, H)
    p["in1_w"], p["in1_b"] = _linear_init(keys[1], H, H)
    p["graphconvs"] = []
    for i in range(NITERS):
        w0, b0 = _linear_init(keys[2 + 2 * i], 2 * H, 2 * H)
        w1, b1 = _linear_init(keys[3 + 2 * i], 2 * H, H)
        p["graphconvs"].append({"w0": w0, "b0": b0, "w1": w1, "b1": b1})
    p["ed0_w"], p["ed0_b"] = _linear_init(keys[2 + 2 * NITERS], 2 * H, H)
    p["ed1_w"], p["ed1_b"] = _linear_init(keys[3 + 2 * NITERS], H, 1)
    return p


# -------------------------- pure-JAX reference (check) ------------------------
def reference_forward(params, X, edge_index, Adj, trackster_index):
    X = jnp.squeeze(X, axis=0)[:, :INPUT_DIM].astype(jnp.float32)
    Adj = jnp.squeeze(Adj, axis=0).astype(jnp.float32)
    T = jnp.squeeze(trackster_index, axis=0).astype(jnp.float32)
    edge_index = jnp.squeeze(edge_index, axis=0).astype(jnp.int32)

    stop = NORMALIZE_STOP
    Xn = jnp.zeros_like(X)
    mean = X[:, :stop].mean(axis=0)
    std = X[:, :stop].std(axis=0) + 1e-4        # population std (unbiased=False)
    Xn = Xn.at[:, :stop].set((X[:, :stop] - mean) / std)
    Xn = Xn.at[:, stop].set(X[:, stop] / (1000.0 * RECON_VOLUME))
    Xn = Xn.at[:, stop + 1].set(X[:, stop + 1] / (100.0 * RECON_VOLUME))
    t = X[:, -1]
    valid = t > -99.0
    cnt = jnp.maximum(jnp.sum(valid.astype(jnp.float32)), 1.0)
    tm = jnp.sum(jnp.where(valid, t, 0.0)) / cnt
    tv = jnp.sum(jnp.where(valid, (t - tm) ** 2, 0.0)) / cnt
    ts = jnp.sqrt(tv) + 1e-4
    Xn = Xn.at[:, -1].set(jnp.where(valid, (t - tm) / ts, -10.0))

    def leaky(x):
        return jnp.where(x > 0, x, LEAKY_SLOPE * x)

    h = leaky(Xn @ params["in0_w"] + params["in0_b"])
    node_emb = leaky(h @ params["in1_w"] + params["in1_b"])

    for p in params["graphconvs"]:
        gx = jnp.concatenate([T @ node_emb, (Adj - T) @ node_emb], axis=1)
        x = jnp.maximum(gx @ p["w0"] + p["b0"], 0.0)
        x = jnp.maximum(x @ p["w1"] + p["b1"], 0.0)
        node_emb = jnp.maximum(node_emb + T.T @ x, 0.0)

    src, dst = edge_index[0], edge_index[1]
    edge_emb = jnp.concatenate([node_emb[src], node_emb[dst]], axis=-1)
    h = leaky(edge_emb @ params["ed0_w"] + params["ed0_b"])
    pred = jax.nn.sigmoid(h @ params["ed1_w"] + params["ed1_b"])[:, 0]
    return pred, node_emb, edge_emb


# ----------------------------------- main -------------------------------------
if __name__ == "__main__":
    N_NODES, N_EDGES, N_ROWS = 16, 24, 32   # nodes, directed edges, aggregation rows

    key = jax.random.PRNGKey(0)
    kx, kt, ke, ka = jax.random.split(key, 4)

    X = jax.random.normal(kx, (1, N_NODES, INPUT_DIM), jnp.float32)
    # last column is "time": some entries valid, some invalid (-100)
    invalid = jax.random.uniform(kt, (N_NODES,)) < 0.3
    X = X.at[0, :, -1].set(jnp.where(invalid, -100.0, X[0, :, -1]))

    edge_index = jax.random.randint(ke, (1, 2, N_EDGES), 0, N_NODES).astype(jnp.int32)

    # trackster_index: one-hot row->node map; Adj: superset neighborhood matrix
    tidx = jax.nn.one_hot(jnp.arange(N_ROWS) % N_NODES, N_NODES, dtype=jnp.float32)
    rand_adj = (jax.random.uniform(ka, (N_ROWS, N_NODES)) < 0.25).astype(jnp.float32)
    adj = jnp.maximum(tidx, rand_adj)
    tidx, adj = tidx[None], adj[None]

    params = init_params(jax.random.PRNGKey(1234))

    pred, node_emb, edge_emb = forward(params, X, edge_index, adj, tidx)
    jax.block_until_ready((pred, node_emb, edge_emb))

    ref_pred, ref_node, ref_edge = reference_forward(params, X, edge_index, adj, tidx)
    np.testing.assert_allclose(np.asarray(pred), np.asarray(ref_pred),
                               rtol=2e-2, atol=2e-2)
    np.testing.assert_allclose(np.asarray(node_emb), np.asarray(ref_node),
                               rtol=2e-2, atol=2e-2)
    np.testing.assert_allclose(np.asarray(edge_emb), np.asarray(ref_edge),
                               rtol=2e-2, atol=2e-2)

    print("KERNEL_OK")
</pallas_src>

<mosaic_0001>
module attributes {stable_mosaic.version = 11 : i64} {
  func.func @fused_forward_kernel(%arg0: i32, %arg1: memref<16x33xf32, #tpu.memory_space<vmem>>, %arg2: memref<64x16xf32, #tpu.memory_space<vmem>>, %arg3: memref<16x32xf32, #tpu.memory_space<vmem>>, %arg4: memref<8x1xi32, #tpu.memory_space<vmem>>, %arg5: memref<8x1xi32, #tpu.memory_space<vmem>>, %arg6: memref<33x128xf32, #tpu.memory_space<vmem>>, %arg7: memref<1x128xf32, #tpu.memory_space<vmem>>, %arg8: memref<128x128xf32, #tpu.memory_space<vmem>>, %arg9: memref<1x128xf32, #tpu.memory_space<vmem>>, %arg10: memref<2x256x256xf32, #tpu.memory_space<vmem>>, %arg11: memref<2x1x256xf32, #tpu.memory_space<vmem>>, %arg12: memref<2x256x128xf32, #tpu.memory_space<vmem>>, %arg13: memref<2x1x128xf32, #tpu.memory_space<vmem>>, %arg14: memref<128x128xf32, #tpu.memory_space<vmem>>, %arg15: memref<128x128xf32, #tpu.memory_space<vmem>>, %arg16: memref<1x128xf32, #tpu.memory_space<vmem>>, %arg17: memref<128x128xf32, #tpu.memory_space<vmem>>, %arg18: memref<1x128xf32, #tpu.memory_space<vmem>>, %arg19: memref<16x128xf32, #tpu.memory_space<vmem>>, %arg20: memref<8x256xf32, #tpu.memory_space<vmem>>, %arg21: memref<8x128xf32, #tpu.memory_space<vmem>>, %arg22: memref<16x128xf32, #tpu.memory_space<vmem>>) attributes {dimension_semantics = [#tpu.dimension_semantics<arbitrary>], iteration_bounds = array<i64: 3>, scalar_prefetch = 0 : i64, scratch_operands = 1 : i64, tpu.core_type = #tpu.core_type<tc>, window_params = [{pipeline_mode = #tpu.pipeline_mode<synchronous>, transform_indices = @transform_0, window_bounds = array<i64: 16, 33>}, {pipeline_mode = #tpu.pipeline_mode<synchronous>, transform_indices = @transform_1, window_bounds = array<i64: 64, 16>}, {pipeline_mode = #tpu.pipeline_mode<synchronous>, transform_indices = @transform_2, window_bounds = array<i64: 16, 32>}, {transform_indices = @transform_3, window_bounds = array<i64: 8, 1>}, {transform_indices = @transform_4, window_bounds = array<i64: 8, 1>}, {pipeline_mode = #tpu.pipeline_mode<synchronous>, transform_indices = @transform_5, window_bounds = array<i64: 33, 128>}, {pipeline_mode = #tpu.pipeline_mode<synchronous>, transform_indices = @transform_6, window_bounds = array<i64: 1, 128>}, {pipeline_mode = #tpu.pipeline_mode<synchronous>, transform_indices = @transform_7, window_bounds = array<i64: 128, 128>}, {pipeline_mode = #tpu.pipeline_mode<synchronous>, transform_indices = @transform_8, window_bounds = array<i64: 1, 128>}, {pipeline_mode = #tpu.pipeline_mode<synchronous>, transform_indices = @transform_9, window_bounds = array<i64: 2, 256, 256>}, {pipeline_mode = #tpu.pipeline_mode<synchronous>, transform_indices = @transform_10, window_bounds = array<i64: 2, 1, 256>}, {pipeline_mode = #tpu.pipeline_mode<synchronous>, transform_indices = @transform_11, window_bounds = array<i64: 2, 256, 128>}, {pipeline_mode = #tpu.pipeline_mode<synchronous>, transform_indices = @transform_12, window_bounds = array<i64: 2, 1, 128>}, {pipeline_mode = #tpu.pipeline_mode<synchronous>, transform_indices = @transform_13, window_bounds = array<i64: 128, 128>}, {pipeline_mode = #tpu.pipeline_mode<synchronous>, transform_indices = @transform_14, window_bounds = array<i64: 128, 128>}, {pipeline_mode = #tpu.pipeline_mode<synchronous>, transform_indices = @transform_15, window_bounds = array<i64: 1, 128>}, {pipeline_mode = #tpu.pipeline_mode<synchronous>, transform_indices = @transform_16, window_bounds = array<i64: 128, 128>}, {pipeline_mode = #tpu.pipeline_mode<synchronous>, transform_indices = @transform_17, window_bounds = array<i64: 1, 128>}, {pipeline_mode = #tpu.pipeline_mode<synchronous>, transform_indices = @transform_18, window_bounds = array<i64: 16, 128>}, {transform_indices = @transform_19, window_bounds = array<i64: 8, 256>}, {transform_indices = @transform_20, window_bounds = array<i64: 8, 128>}]} {
    %c0_i32 = arith.constant 0 : i32
    %0 = arith.cmpi eq, %arg0, %c0_i32 : i32
    %1 = arith.extui %0 : i1 to i32
    %c0_i32_0 = arith.constant 0 : i32
    %2 = arith.cmpi ne, %1, %c0_i32_0 : i32
    scf.if %2 {
      %c0_26 = arith.constant 0 : index
      %c0_27 = arith.constant 0 : index
      %36 = vector.load %arg1[%c0_26, %c0_27] : memref<16x33xf32, #tpu.memory_space<vmem>>, vector<16x33xf32>
      %37 = tpu.iota {dimensions = array<i32: 1>} : vector<16x33xi32>
      %cst_28 = arith.constant dense<0.000000e+00> : vector<33xf32>
      %38 = vector.multi_reduction <add>, %36, %cst_28 [0] : vector<16x33xf32> to vector<33xf32>
      %39 = vector.shape_cast %38 : vector<33xf32> to vector<1x33xf32>
      %cst_29 = arith.constant 1.600000e+01 : f32
      %40 = vector.broadcast %cst_29 : f32 to vector<1x33xf32>
      %41 = arith.divf %39, %40 : vector<1x33xf32>
      %42 = vector.broadcast %41 : vector<1x33xf32> to vector<16x33xf32>
      %43 = arith.subf %36, %42 : vector<16x33xf32>
      %44 = arith.mulf %43, %43 : vector<16x33xf32>
      %cst_30 = arith.constant dense<0.000000e+00> : vector<33xf32>
      %45 = vector.multi_reduction <add>, %44, %cst_30 [0] : vector<16x33xf32> to vector<33xf32>
      %46 = vector.shape_cast %45 : vector<33xf32> to vector<1x33xf32>
      %cst_31 = arith.constant 1.600000e+01 : f32
      %47 = vector.broadcast %cst_31 : f32 to vector<1x33xf32>
      %48 = arith.divf %46, %47 : vector<1x33xf32>
      %49 = math.sqrt %48 : vector<1x33xf32>
      %cst_32 = arith.constant 9.99999974E-5 : f32
      %50 = vector.broadcast %cst_32 : f32 to vector<1x33xf32>
      %51 = arith.addf %49, %50 : vector<1x33xf32>
      %c30_i32 = arith.constant 30 : i32
      %52 = vector.broadcast %c30_i32 : i32 to vector<16x33xi32>
      %53 = arith.cmpi slt, %37, %52 : vector<16x33xi32>
      %54 = vector.broadcast %41 : vector<1x33xf32> to vector<16x33xf32>
      %55 = arith.subf %36, %54 : vector<16x33xf32>
      %56 = vector.broadcast %51 : vector<1x33xf32> to vector<16x33xf32>
      %57 = arith.divf %55, %56 : vector<16x33xf32>
      %cst_33 = arith.constant 0.000000e+00 : f32
      %58 = vector.broadcast %cst_33 : f32 to vector<16x33xf32>
      %59 = arith.select %53, %57, %58 : vector<16x33xi1>, vector<16x33xf32>
      %c30_i32_34 = arith.constant 30 : i32
      %60 = vector.broadcast %c30_i32_34 : i32 to vector<16x33xi32>
      %61 = arith.cmpi eq, %37, %60 : vector<16x33xi32>
      %cst_35 = arith.constant 2.820000e+05 : f32
      %62 = vector.broadcast %cst_35 : f32 to vector<16x33xf32>
      %63 = arith.divf %36, %62 : vector<16x33xf32>
      %64 = arith.select %61, %63, %59 : vector<16x33xi1>, vector<16x33xf32>
      %c31_i32 = arith.constant 31 : i32
      %65 = vector.broadcast %c31_i32 : i32 to vector<16x33xi32>
      %66 = arith.cmpi eq, %37, %65 : vector<16x33xi32>
      %cst_36 = arith.constant 2.820000e+04 : f32
      %67 = vector.broadcast %cst_36 : f32 to vector<16x33xf32>
      %68 = arith.divf %36, %67 : vector<16x33xf32>
      %69 = arith.select %66, %68, %64 : vector<16x33xi1>, vector<16x33xf32>
      %70 = vector.extract_strided_slice %36 {offsets = [0, 32], sizes = [16, 1], strides = [1, 1]} : vector<16x33xf32> to vector<16x1xf32>
      %cst_37 = arith.constant -9.900000e+01 : f32
      %71 = vector.broadcast %cst_37 : f32 to vector<16x1xf32>
      %72 = arith.cmpf ogt, %70, %71 : vector<16x1xf32>
      %73 = arith.extui %72 : vector<16x1xi1> to vector<16x1xi32>
      %74 = arith.sitofp %73 : vector<16x1xi32> to vector<16x1xf32>
      %75 = vector.shape_cast %74 : vector<16x1xf32> to vector<1x16x1xf32>
      %cst_38 = arith.constant dense<0.000000e+00> : vector<1xf32>
      %76 = vector.multi_reduction <add>, %75, %cst_38 [1, 2] : vector<1x16x1xf32> to vector<1xf32>
      %77 = vector.shape_cast %76 : vector<1xf32> to vector<1x1x1xf32>
      %78 = vector.extract %77[0, 0, 0] : f32 from vector<1x1x1xf32>
      %cst_39 = arith.constant 1.000000e+00 : f32
      %79 = arith.maximumf %78, %cst_39 : f32
      %cst_40 = arith.constant 0.000000e+00 : f32
      %80 = vector.broadcast %cst_40 : f32 to vector<16x1xf32>
      %81 = arith.select %72, %70, %80 : vector<16x1xi1>, vector<16x1xf32>
      %82 = vector.shape_cast %81 : vector<16x1xf32> to vector<1x16x1xf32>
      %cst_41 = arith.constant dense<0.000000e+00> : vector<1xf32>
      %83 = vector.multi_reduction <add>, %82, %cst_41 [1, 2] : vector<1x16x1xf32> to vector<1xf32>
      %84 = vector.shape_cast %83 : vector<1xf32> to vector<1x1x1xf32>
      %85 = vector.extract %84[0, 0, 0] : f32 from vector<1x1x1xf32>
      %86 = arith.divf %85, %79 : f32
      %87 = vector.broadcast %86 : f32 to vector<16x1xf32>
      %88 = arith.subf %70, %87 : vector<16x1xf32>
      %89 = arith.mulf %88, %88 : vector<16x1xf32>
      %cst_42 = arith.constant 0.000000e+00 : f32
      %90 = vector.broadcast %cst_42 : f32 to vector<16x1xf32>
      %91 = arith.select %72, %89, %90 : vector<16x1xi1>, vector<16x1xf32>
      %92 = vector.shape_cast %91 : vector<16x1xf32> to vector<1x16x1xf32>
      %cst_43 = arith.constant dense<0.000000e+00> : vector<1xf32>
      %93 = vector.multi_reduction <add>, %92, %cst_43 [1, 2] : vector<1x16x1xf32> to vector<1xf32>
      %94 = vector.shape_cast %93 : vector<1xf32> to vector<1x1x1xf32>
      %95 = vector.extract %94[0, 0, 0] : f32 from vector<1x1x1xf32>
      %96 = arith.divf %95, %79 : f32
      %97 = math.sqrt %96 : f32
      %cst_44 = arith.constant 9.99999974E-5 : f32
      %98 = arith.addf %97, %cst_44 : f32
      %99 = vector.broadcast %86 : f32 to vector<16x1xf32>
      %100 = arith.subf %70, %99 : vector<16x1xf32>
      %101 = vector.broadcast %98 : f32 to vector<16x1xf32>
      %102 = arith.divf %100, %101 : vector<16x1xf32>
      %cst_45 = arith.constant -1.000000e+01 : f32
      %103 = vector.broadcast %cst_45 : f32 to vector<16x1xf32>
      %104 = arith.select %72, %102, %103 : vector<16x1xi1>, vector<16x1xf32>
      %c32_i32 = arith.constant 32 : i32
      %105 = vector.broadcast %c32_i32 : i32 to vector<16x33xi32>
      %106 = arith.cmpi eq, %37, %105 : vector<16x33xi32>
      %107 = vector.shape_cast %104 : vector<16x1xf32> to vector<16x1xf32>
      %108 = vector.broadcast %107 : vector<16x1xf32> to vector<16x33xf32>
      %109 = arith.select %106, %108, %69 : vector<16x33xi1>, vector<16x33xf32>
      %c0_46 = arith.constant 0 : index
      %c0_47 = arith.constant 0 : index
      %110 = vector.load %arg6[%c0_46, %c0_47] : memref<33x128xf32, #tpu.memory_space<vmem>>, vector<33x128xf32>
      %cst_48 = arith.constant dense<0.000000e+00> : vector<16x128xf32>
      %111 = tpu.matmul %109, %110, %cst_48 {dimension_numbers = #tpu.dot_dimension_numbers<[1], [0], [0], [1], [0, 0, 1, 1], [], []>} : vector<16x33xf32>, vector<33x128xf32>, vector<16x128xf32> -> vector<16x128xf32>
      %c0_49 = arith.constant 0 : index
      %c0_50 = arith.constant 0 : index
      %112 = vector.load %arg7[%c0_49, %c0_50] : memref<1x128xf32, #tpu.memory_space<vmem>>, vector<1x128xf32>
      %113 = vector.broadcast %112 : vector<1x128xf32> to vector<16x128xf32>
      %114 = arith.addf %111, %113 : vector<16x128xf32>
      %cst_51 = arith.constant 0.000000e+00 : f32
      %115 = vector.broadcast %cst_51 : f32 to vector<16x128xf32>
      %116 = arith.cmpf ogt, %114, %115 : vector<16x128xf32>
      %cst_52 = arith.constant 0.00999999977 : f32
      %117 = vector.broadcast %cst_52 : f32 to vector<16x128xf32>
      %118 = arith.mulf %117, %114 : vector<16x128xf32>
      %119 = arith.select %116, %114, %118 : vector<16x128xi1>, vector<16x128xf32>
      %c0_53 = arith.constant 0 : index
      %c0_54 = arith.constant 0 : index
      %120 = vector.load %arg8[%c0_53, %c0_54] : memref<128x128xf32, #tpu.memory_space<vmem>>, vector<128x128xf32>
      %cst_55 = arith.constant dense<0.000000e+00> : vector<16x128xf32>
      %121 = tpu.matmul %119, %120, %cst_55 {dimension_numbers = #tpu.dot_dimension_numbers<[1], [0], [0], [1], [0, 0, 1, 1], [], []>} : vector<16x128xf32>, vector<128x128xf32>, vector<16x128xf32> -> vector<16x128xf32>
      %c0_56 = arith.constant 0 : index
      %c0_57 = arith.constant 0 : index
      %122 = vector.load %arg9[%c0_56, %c0_57] : memref<1x128xf32, #tpu.memory_space<vmem>>, vector<1x128xf32>
      %123 = vector.broadcast %122 : vector<1x128xf32> to vector<16x128xf32>
      %124 = arith.addf %121, %123 : vector<16x128xf32>
      %cst_58 = arith.constant 0.000000e+00 : f32
      %125 = vector.broadcast %cst_58 : f32 to vector<16x128xf32>
      %126 = arith.cmpf ogt, %124, %125 : vector<16x128xf32>
      %cst_59 = arith.constant 0.00999999977 : f32
      %127 = vector.broadcast %cst_59 : f32 to vector<16x128xf32>
      %128 = arith.mulf %127, %124 : vector<16x128xf32>
      %129 = arith.select %126, %124, %128 : vector<16x128xi1>, vector<16x128xf32>
      %c0_60 = arith.constant 0 : index
      %c0_61 = arith.constant 0 : index
      %130 = vector.load %arg2[%c0_60, %c0_61] : memref<64x16xf32, #tpu.memory_space<vmem>>, vector<64x16xf32>
      %c0_62 = arith.constant 0 : index
      %c0_63 = arith.constant 0 : index
      %131 = vector.load %arg3[%c0_62, %c0_63] : memref<16x32xf32, #tpu.memory_space<vmem>>, vector<16x32xf32>
      %cst_64 = arith.constant dense<0.000000e+00> : vector<64x128xf32>
      %132 = tpu.matmul %130, %129, %cst_64 {dimension_numbers = #tpu.dot_dimension_numbers<[1], [0], [0], [1], [0, 0, 1, 1], [], []>} : vector<64x16xf32>, vector<16x128xf32>, vector<64x128xf32> -> vector<64x128xf32>
      %133 = vector.extract_strided_slice %132 {offsets = [0, 0], sizes = [32, 128], strides = [1, 1]} : vector<64x128xf32> to vector<32x128xf32>
      %134 = vector.extract_strided_slice %132 {offsets = [32, 0], sizes = [32, 128], strides = [1, 1]} : vector<64x128xf32> to vector<32x128xf32>
      %135 = tpu.concatenate %133, %134 in 1 : vector<32x128xf32>, vector<32x128xf32> -> vector<32x256xf32>
      %c0_65 = arith.constant 0 : index
      %c0_66 = arith.constant 0 : index
      %c0_67 = arith.constant 0 : index
      %136 = vector.load %arg10[%c0_65, %c0_66, %c0_67] : memref<2x256x256xf32, #tpu.memory_space<vmem>>, vector<1x256x256xf32>
      %137 = vector.shape_cast %136 : vector<1x256x256xf32> to vector<256x256xf32>
      %cst_68 = arith.constant dense<0.000000e+00> : vector<32x256xf32>
      %138 = tpu.matmul %135, %137, %cst_68 {dimension_numbers = #tpu.dot_dimension_numbers<[1], [0], [0], [1], [0, 0, 1, 1], [], []>} : vector<32x256xf32>, vector<256x256xf32>, vector<32x256xf32> -> vector<32x256xf32>
      %c0_69 = arith.constant 0 : index
      %c0_70 = arith.constant 0 : index
      %c0_71 = arith.constant 0 : index
      %139 = vector.load %arg11[%c0_69, %c0_70, %c0_71] : memref<2x1x256xf32, #tpu.memory_space<vmem>>, vector<1x1x256xf32>
      %140 = vector.shape_cast %139 : vector<1x1x256xf32> to vector<1x256xf32>
      %141 = vector.broadcast %140 : vector<1x256xf32> to vector<32x256xf32>
      %142 = arith.addf %138, %141 : vector<32x256xf32>
      %cst_72 = arith.constant 0.000000e+00 : f32
      %143 = vector.broadcast %cst_72 : f32 to vector<32x256xf32>
      %144 = arith.maximumf %142, %143 : vector<32x256xf32>
      %c0_73 = arith.constant 0 : index
      %c0_74 = arith.constant 0 : index
      %c0_75 = arith.constant 0 : index
      %145 = vector.load %arg12[%c0_73, %c0_74, %c0_75] : memref<2x256x128xf32, #tpu.memory_space<vmem>>, vector<1x256x128xf32>
      %146 = vector.shape_cast %145 : vector<1x256x128xf32> to vector<256x128xf32>
      %cst_76 = arith.constant dense<0.000000e+00> : vector<32x128xf32>
      %147 = tpu.matmul %144, %146, %cst_76 {dimension_numbers = #tpu.dot_dimension_numbers<[1], [0], [0], [1], [0, 0, 1, 1], [], []>} : vector<32x256xf32>, vector<256x128xf32>, vector<32x128xf32> -> vector<32x128xf32>
      %c0_77 = arith.constant 0 : index
      %c0_78 = arith.constant 0 : index
      %c0_79 = arith.constant 0 : index
      %148 = vector.load %arg13[%c0_77, %c0_78, %c0_79] : memref<2x1x128xf32, #tpu.memory_space<vmem>>, vector<1x1x128xf32>
      %149 = vector.shape_cast %148 : vector<1x1x128xf32> to vector<1x128xf32>
      %150 = vector.broadcast %149 : vector<1x128xf32> to vector<32x128xf32>
      %151 = arith.addf %147, %150 : vector<32x128xf32>
      %cst_80 = arith.constant 0.000000e+00 : f32
      %152 = vector.broadcast %cst_80 : f32 to vector<32x128xf32>
      %153 = arith.maximumf %151, %152 : vector<32x128xf32>
      %cst_81 = arith.constant dense<0.000000e+00> : vector<16x128xf32>
      %154 = tpu.matmul %131, %153, %cst_81 {dimension_numbers = #tpu.dot_dimension_numbers<[1], [0], [0], [1], [0, 0, 1, 1], [], []>} : vector<16x32xf32>, vector<32x128xf32>, vector<16x128xf32> -> vector<16x128xf32>
      %155 = arith.addf %129, %154 : vector<16x128xf32>
      %cst_82 = arith.constant 0.000000e+00 : f32
      %156 = vector.broadcast %cst_82 : f32 to vector<16x128xf32>
      %157 = arith.maximumf %155, %156 : vector<16x128xf32>
      %cst_83 = arith.constant dense<0.000000e+00> : vector<64x128xf32>
      %158 = tpu.matmul %130, %157, %cst_83 {dimension_numbers = #tpu.dot_dimension_numbers<[1], [0], [0], [1], [0, 0, 1, 1], [], []>} : vector<64x16xf32>, vector<16x128xf32>, vector<64x128xf32> -> vector<64x128xf32>
      %159 = vector.extract_strided_slice %158 {offsets = [0, 0], sizes = [32, 128], strides = [1, 1]} : vector<64x128xf32> to vector<32x128xf32>
      %160 = vector.extract_strided_slice %158 {offsets = [32, 0], sizes = [32, 128], strides = [1, 1]} : vector<64x128xf32> to vector<32x128xf32>
      %161 = tpu.concatenate %159, %160 in 1 : vector<32x128xf32>, vector<32x128xf32> -> vector<32x256xf32>
      %c1 = arith.constant 1 : index
      %c0_84 = arith.constant 0 : index
      %c0_85 = arith.constant 0 : index
      %162 = vector.load %arg10[%c1, %c0_84, %c0_85] : memref<2x256x256xf32, #tpu.memory_space<vmem>>, vector<1x256x256xf32>
      %163 = vector.shape_cast %162 : vector<1x256x256xf32> to vector<256x256xf32>
      %cst_86 = arith.constant dense<0.000000e+00> : vector<32x256xf32>
      %164 = tpu.matmul %161, %163, %cst_86 {dimension_numbers = #tpu.dot_dimension_numbers<[1], [0], [0], [1], [0, 0, 1, 1], [], []>} : vector<32x256xf32>, vector<256x256xf32>, vector<32x256xf32> -> vector<32x256xf32>
      %c1_87 = arith.constant 1 : index
      %c0_88 = arith.constant 0 : index
      %c0_89 = arith.constant 0 : index
      %165 = vector.load %arg11[%c1_87, %c0_88, %c0_89] : memref<2x1x256xf32, #tpu.memory_space<vmem>>, vector<1x1x256xf32>
      %166 = vector.shape_cast %165 : vector<1x1x256xf32> to vector<1x256xf32>
      %167 = vector.broadcast %166 : vector<1x256xf32> to vector<32x256xf32>
      %168 = arith.addf %164, %167 : vector<32x256xf32>
      %cst_90 = arith.constant 0.000000e+00 : f32
      %169 = vector.broadcast %cst_90 : f32 to vector<32x256xf32>
      %170 = arith.maximumf %168, %169 : vector<32x256xf32>
      %c1_91 = arith.constant 1 : index
      %c0_92 = arith.constant 0 : index
      %c0_93 = arith.constant 0 : index
      %171 = vector.load %arg12[%c1_91, %c0_92, %c0_93] : memref<2x256x128xf32, #tpu.memory_space<vmem>>, vector<1x256x128xf32>
      %172 = vector.shape_cast %171 : vector<1x256x128xf32> to vector<256x128xf32>
      %cst_94 = arith.constant dense<0.000000e+00> : vector<32x128xf32>
      %173 = tpu.matmul %170, %172, %cst_94 {dimension_numbers = #tpu.dot_dimension_numbers<[1], [0], [0], [1], [0, 0, 1, 1], [], []>} : vector<32x256xf32>, vector<256x128xf32>, vector<32x128xf32> -> vector<32x128xf32>
      %c1_95 = arith.constant 1 : index
      %c0_96 = arith.constant 0 : index
      %c0_97 = arith.constant 0 : index
      %174 = vector.load %arg13[%c1_95, %c0_96, %c0_97] : memref<2x1x128xf32, #tpu.memory_space<vmem>>, vector<1x1x128xf32>
      %175 = vector.shape_cast %174 : vector<1x1x128xf32> to vector<1x128xf32>
      %176 = vector.broadcast %175 : vector<1x128xf32> to vector<32x128xf32>
      %177 = arith.addf %173, %176 : vector<32x128xf32>
      %cst_98 = arith.constant 0.000000e+00 : f32
      %178 = vector.broadcast %cst_98 : f32 to vector<32x128xf32>
      %179 = arith.maximumf %177, %178 : vector<32x128xf32>
      %cst_99 = arith.constant dense<0.000000e+00> : vector<16x128xf32>
      %180 = tpu.matmul %131, %179, %cst_99 {dimension_numbers = #tpu.dot_dimension_numbers<[1], [0], [0], [1], [0, 0, 1, 1], [], []>} : vector<16x32xf32>, vector<32x128xf32>, vector<16x128xf32> -> vector<16x128xf32>
      %181 = arith.addf %157, %180 : vector<16x128xf32>
      %cst_100 = arith.constant 0.000000e+00 : f32
      %182 = vector.broadcast %cst_100 : f32 to vector<16x128xf32>
      %183 = arith.maximumf %181, %182 : vector<16x128xf32>
      %c0_101 = arith.constant 0 : index
      %c0_102 = arith.constant 0 : index
      %184 = vector.load %arg22[%c0_101, %c0_102] : memref<16x128xf32, #tpu.memory_space<vmem>>, vector<16x128xf32>
      tpu.vector_store %arg22[%c0_101, %c0_102], %183 {strides = array<i32>} : memref<16x128xf32, #tpu.memory_space<vmem>>, vector<16x128xf32>,
      %c0_103 = arith.constant 0 : index
      %c0_104 = arith.constant 0 : index
      %185 = vector.load %arg19[%c0_103, %c0_104] : memref<16x128xf32, #tpu.memory_space<vmem>>, vector<16x128xf32>
      tpu.vector_store %arg19[%c0_103, %c0_104], %183 {strides = array<i32>} : memref<16x128xf32, #tpu.memory_space<vmem>>, vector<16x128xf32>,
    } else {
    }
    %c0 = arith.constant 0 : index
    %c0_1 = arith.constant 0 : index
    %3 = vector.load %arg22[%c0, %c0_1] : memref<16x128xf32, #tpu.memory_space<vmem>>, vector<16x128xf32>
    %c0_2 = arith.constant 0 : index
    %c0_3 = arith.constant 0 : index
    %4 = vector.load %arg4[%c0_2, %c0_3] : memref<8x1xi32, #tpu.memory_space<vmem>>, vector<8x1xi32>
    %c0_4 = arith.constant 0 : index
    %c0_5 = arith.constant 0 : index
    %5 = vector.load %arg5[%c0_4, %c0_5] : memref<8x1xi32, #tpu.memory_space<vmem>>, vector<8x1xi32>
    %6 = tpu.concatenate %4, %5 in 0 : vector<8x1xi32>, vector<8x1xi32> -> vector<16x1xi32>
    %7 = tpu.iota {dimensions = array<i32: 1>} : vector<16x16xi32>
    %8 = vector.broadcast %6 : vector<16x1xi32> to vector<16x16xi32>
    %9 = arith.cmpi eq, %8, %7 : vector<16x16xi32>
    %10 = arith.extui %9 : vector<16x16xi1> to vector<16x16xi32>
    %11 = arith.sitofp %10 : vector<16x16xi32> to vector<16x16xf32>
    %cst = arith.constant dense<0.000000e+00> : vector<16x128xf32>
    %12 = tpu.matmul %11, %3, %cst {dimension_numbers = #tpu.dot_dimension_numbers<[1], [0], [0], [1], [0, 0, 1, 1], [], []>} : vector<16x16xf32>, vector<16x128xf32>, vector<16x128xf32> -> vector<16x128xf32>
    %13 = vector.extract_strided_slice %12 {offsets = [0, 0], sizes = [8, 128], strides = [1, 1]} : vector<16x128xf32> to vector<8x128xf32>
    %14 = vector.extract_strided_slice %12 {offsets = [8, 0], sizes = [8, 128], strides = [1, 1]} : vector<16x128xf32> to vector<8x128xf32>
    %c0_6 = arith.constant 0 : index
    %c0_7 = arith.constant 0 : index
    %15 = vector.load %arg20[%c0_6, %c0_7] : memref<8x256xf32, #tpu.memory_space<vmem>>, vector<8x128xf32>
    tpu.vector_store %arg20[%c0_6, %c0_7], %13 {strides = array<i32>} : memref<8x256xf32, #tpu.memory_space<vmem>>, vector<8x128xf32>,
    %c0_8 = arith.constant 0 : index
    %c128 = arith.constant 128 : index
    %16 = vector.load %arg20[%c0_8, %c128] : memref<8x256xf32, #tpu.memory_space<vmem>>, vector<8x128xf32>
    tpu.vector_store %arg20[%c0_8, %c128], %14 {strides = array<i32>} : memref<8x256xf32, #tpu.memory_space<vmem>>, vector<8x128xf32>,
    %c0_9 = arith.constant 0 : index
    %c0_10 = arith.constant 0 : index
    %17 = vector.load %arg14[%c0_9, %c0_10] : memref<128x128xf32, #tpu.memory_space<vmem>>, vector<128x128xf32>
    %cst_11 = arith.constant dense<0.000000e+00> : vector<8x128xf32>
    %18 = tpu.matmul %13, %17, %cst_11 {dimension_numbers = #tpu.dot_dimension_numbers<[1], [0], [0], [1], [0, 0, 1, 1], [], []>} : vector<8x128xf32>, vector<128x128xf32>, vector<8x128xf32> -> vector<8x128xf32>
    %c0_12 = arith.constant 0 : index
    %c0_13 = arith.constant 0 : index
    %19 = vector.load %arg15[%c0_12, %c0_13] : memref<128x128xf32, #tpu.memory_space<vmem>>, vector<128x128xf32>
    %cst_14 = arith.constant dense<0.000000e+00> : vector<8x128xf32>
    %20 = tpu.matmul %14, %19, %cst_14 {dimension_numbers = #tpu.dot_dimension_numbers<[1], [0], [0], [1], [0, 0, 1, 1], [], []>} : vector<8x128xf32>, vector<128x128xf32>, vector<8x128xf32> -> vector<8x128xf32>
    %21 = arith.addf %18, %20 : vector<8x128xf32>
    %c0_15 = arith.constant 0 : index
    %c0_16 = arith.constant 0 : index
    %22 = vector.load %arg16[%c0_15, %c0_16] : memref<1x128xf32, #tpu.memory_space<vmem>>, vector<1x128xf32>
    %23 = vector.broadcast %22 : vector<1x128xf32> to vector<8x128xf32>
    %24 = arith.addf %21, %23 : vector<8x128xf32>
    %cst_17 = arith.constant 0.000000e+00 : f32
    %25 = vector.broadcast %cst_17 : f32 to vector<8x128xf32>
    %26 = arith.cmpf ogt, %24, %25 : vector<8x128xf32>
    %cst_18 = arith.constant 0.00999999977 : f32
    %27 = vector.broadcast %cst_18 : f32 to vector<8x128xf32>
    %28 = arith.mulf %27, %24 : vector<8x128xf32>
    %29 = arith.select %26, %24, %28 : vector<8x128xi1>, vector<8x128xf32>
    %c0_19 = arith.constant 0 : index
    %c0_20 = arith.constant 0 : index
    %30 = vector.load %arg17[%c0_19, %c0_20] : memref<128x128xf32, #tpu.memory_space<vmem>>, vector<128x128xf32>
    %cst_21 = arith.constant dense<0.000000e+00> : vector<8x128xf32>
    %31 = tpu.matmul %29, %30, %cst_21 {dimension_numbers = #tpu.dot_dimension_numbers<[1], [0], [0], [1], [0, 0, 1, 1], [], []>} : vector<8x128xf32>, vector<128x128xf32>, vector<8x128xf32> -> vector<8x128xf32>
    %c0_22 = arith.constant 0 : index
    %c0_23 = arith.constant 0 : index
    %32 = vector.load %arg18[%c0_22, %c0_23] : memref<1x128xf32, #tpu.memory_space<vmem>>, vector<1x128xf32>
    %33 = vector.broadcast %32 : vector<1x128xf32> to vector<8x128xf32>
    %34 = arith.addf %31, %33 : vector<8x128xf32>
    %c0_24 = arith.constant 0 : index
    %c0_25 = arith.constant 0 : index
    %35 = vector.load %arg21[%c0_24, %c0_25] : memref<8x128xf32, #tpu.memory_space<vmem>>, vector<8x128xf32>
    tpu.vector_store %arg21[%c0_24, %c0_25], %34 {strides = array<i32>} : memref<8x128xf32, #tpu.memory_space<vmem>>, vector<8x128xf32>,
    return
  }
  func.func @transform_0(%arg0: i32) -> (i32, i32) {
    %c0_i32 = arith.constant 0 : i32
    %c0_i32_0 = arith.constant 0 : i32
    %c0_i32_1 = arith.constant 0 : i32
    return %c0_i32, %c0_i32_0 : i32, i32
  }
  func.func @transform_1(%arg0: i32) -> (i32, i32) {
    %c0_i32 = arith.constant 0 : i32
    %c0_i32_0 = arith.constant 0 : i32
    %c0_i32_1 = arith.constant 0 : i32
    return %c0_i32, %c0_i32_0 : i32, i32
  }
  func.func @transform_2(%arg0: i32) -> (i32, i32) {
    %c0_i32 = arith.constant 0 : i32
    %c0_i32_0 = arith.constant 0 : i32
    %c0_i32_1 = arith.constant 0 : i32
    return %c0_i32, %c0_i32_0 : i32, i32
  }
  func.func @transform_3(%arg0: i32) -> (i32, i32) {
    %c0_i32 = arith.constant 0 : i32
    %c0_i32_0 = arith.constant 0 : i32
    return %arg0, %c0_i32 : i32, i32
  }
  func.func @transform_4(%arg0: i32) -> (i32, i32) {
    %c0_i32 = arith.constant 0 : i32
    %c0_i32_0 = arith.constant 0 : i32
    return %arg0, %c0_i32 : i32, i32
  }
  func.func @transform_5(%arg0: i32) -> (i32, i32) {
    %c0_i32 = arith.constant 0 : i32
    %c0_i32_0 = arith.constant 0 : i32
    %c0_i32_1 = arith.constant 0 : i32
    return %c0_i32, %c0_i32_0 : i32, i32
  }
  func.func @transform_6(%arg0: i32) -> (i32, i32) {
    %c0_i32 = arith.constant 0 : i32
    %c0_i32_0 = arith.constant 0 : i32
    %c0_i32_1 = arith.constant 0 : i32
    return %c0_i32, %c0_i32_0 : i32, i32
  }
  func.func @transform_7(%arg0: i32) -> (i32, i32) {
    %c0_i32 = arith.constant 0 : i32
    %c0_i32_0 = arith.constant 0 : i32
    %c0_i32_1 = arith.constant 0 : i32
    return %c0_i32, %c0_i32_0 : i32, i32
  }
  func.func @transform_8(%arg0: i32) -> (i32, i32) {
    %c0_i32 = arith.constant 0 : i32
    %c0_i32_0 = arith.constant 0 : i32
    %c0_i32_1 = arith.constant 0 : i32
    return %c0_i32, %c0_i32_0 : i32, i32
  }
  func.func @transform_9(%arg0: i32) -> (i32, i32, i32) {
    %c0_i32 = arith.constant 0 : i32
    %c0_i32_0 = arith.constant 0 : i32
    %c0_i32_1 = arith.constant 0 : i32
    %c0_i32_2 = arith.constant 0 : i32
    return %c0_i32, %c0_i32_0, %c0_i32_1 : i32, i32, i32
  }
  func.func @transform_10(%arg0: i32) -> (i32, i32, i32) {
    %c0_i32 = arith.constant 0 : i32
    %c0_i32_0 = arith.constant 0 : i32
    %c0_i32_1 = arith.constant 0 : i32
    %c0_i32_2 = arith.constant 0 : i32
    return %c0_i32, %c0_i32_0, %c0_i32_1 : i32, i32, i32
  }
  func.func @transform_11(%arg0: i32) -> (i32, i32, i32) {
    %c0_i32 = arith.constant 0 : i32
    %c0_i32_0 = arith.constant 0 : i32
    %c0_i32_1 = arith.constant 0 : i32
    %c0_i32_2 = arith.constant 0 : i32
    return %c0_i32, %c0_i32_0, %c0_i32_1 : i32, i32, i32
  }
  func.func @transform_12(%arg0: i32) -> (i32, i32, i32) {
    %c0_i32 = arith.constant 0 : i32
    %c0_i32_0 = arith.constant 0 : i32
    %c0_i32_1 = arith.constant 0 : i32
    %c0_i32_2 = arith.constant 0 : i32
    return %c0_i32, %c0_i32_0, %c0_i32_1 : i32, i32, i32
  }
  func.func @transform_13(%arg0: i32) -> (i32, i32) {
    %c0_i32 = arith.constant 0 : i32
    %c0_i32_0 = arith.constant 0 : i32
    %c0_i32_1 = arith.constant 0 : i32
    return %c0_i32, %c0_i32_0 : i32, i32
  }
  func.func @transform_14(%arg0: i32) -> (i32, i32) {
    %c0_i32 = arith.constant 0 : i32
    %c0_i32_0 = arith.constant 0 : i32
    %c0_i32_1 = arith.constant 0 : i32
    return %c0_i32, %c0_i32_0 : i32, i32
  }
  func.func @transform_15(%arg0: i32) -> (i32, i32) {
    %c0_i32 = arith.constant 0 : i32
    %c0_i32_0 = arith.constant 0 : i32
    %c0_i32_1 = arith.constant 0 : i32
    return %c0_i32, %c0_i32_0 : i32, i32
  }
  func.func @transform_16(%arg0: i32) -> (i32, i32) {
    %c0_i32 = arith.constant 0 : i32
    %c0_i32_0 = arith.constant 0 : i32
    %c0_i32_1 = arith.constant 0 : i32
    return %c0_i32, %c0_i32_0 : i32, i32
  }
  func.func @transform_17(%arg0: i32) -> (i32, i32) {
    %c0_i32 = arith.constant 0 : i32
    %c0_i32_0 = arith.constant 0 : i32
    %c0_i32_1 = arith.constant 0 : i32
    return %c0_i32, %c0_i32_0 : i32, i32
  }
  func.func @transform_18(%arg0: i32) -> (i32, i32) {
    %c0_i32 = arith.constant 0 : i32
    %c0_i32_0 = arith.constant 0 : i32
    %c0_i32_1 = arith.constant 0 : i32
    return %c0_i32, %c0_i32_0 : i32, i32
  }
  func.func @transform_19(%arg0: i32) -> (i32, i32) {
    %c0_i32 = arith.constant 0 : i32
    %c0_i32_0 = arith.constant 0 : i32
    return %arg0, %c0_i32 : i32, i32
  }
  func.func @transform_20(%arg0: i32) -> (i32, i32) {
    %c0_i32 = arith.constant 0 : i32
    %c0_i32_0 = arith.constant 0 : i32
    return %arg0, %c0_i32 : i32, i32
  }
}

</mosaic_0001>

<llo_original>
// kernel: forward.1
$region0: #{forward.1}
  #allocation0 [shape = 'u32[]', space=smem, size = 0x4, offset = 0x4, fixed_abs, tag = 'smem constant byte address 0x4 - core index']
  #allocation1 [shape = 'u32[144,128]{1,0:T(1,128)}', space=vmem, size = 0x12000, scoped, tag = 'internal scratch']
  #allocation2 [shape = 'f32[16,128]{1,0:T(8,128)}', space=vmem, size = 0x2000, scoped, tag = 'scratch operand']
  %s0 = inlined_call_operand.vmem [shape: f32[16,33], index: 0, kind: input, shape index: {}]
  %s1 = inlined_call_operand.vmem [shape: f32[64,16], index: 1, kind: input, shape index: {}]
  %s2 = inlined_call_operand.vmem [shape: f32[16,32], index: 2, kind: input, shape index: {}]
  %s3 = inlined_call_operand.vmem [shape: s32[24,1], index: 3, kind: input, shape index: {}]
  %s4 = inlined_call_operand.vmem [shape: s32[24,1], index: 4, kind: input, shape index: {}]
  %s5 = inlined_call_operand.vmem [shape: f32[33,128], index: 5, kind: input, shape index: {}]
  %s6 = inlined_call_operand.vmem [shape: f32[1,128], index: 6, kind: input, shape index: {}]
  %s7 = inlined_call_operand.vmem [shape: f32[128,128], index: 7, kind: input, shape index: {}]
  %s8 = inlined_call_operand.vmem [shape: f32[1,128], index: 8, kind: input, shape index: {}]
  %s9 = inlined_call_operand.vmem [shape: f32[2,256,256], index: 9, kind: input, shape index: {}]
  %s10 = inlined_call_operand.vmem [shape: f32[2,1,256], index: 10, kind: input, shape index: {}]
  %s11 = inlined_call_operand.vmem [shape: f32[2,256,128], index: 11, kind: input, shape index: {}]
  %s12 = inlined_call_operand.vmem [shape: f32[2,1,128], index: 12, kind: input, shape index: {}]
  %s13 = inlined_call_operand.vmem [shape: f32[128,128], index: 13, kind: input, shape index: {}]
  %s14 = inlined_call_operand.vmem [shape: f32[128,128], index: 14, kind: input, shape index: {}]
  %s15 = inlined_call_operand.vmem [shape: f32[1,128], index: 15, kind: input, shape index: {}]
  %s16 = inlined_call_operand.vmem [shape: f32[128,128], index: 16, kind: input, shape index: {}]
  %s17 = inlined_call_operand.vmem [shape: f32[1,128], index: 17, kind: input, shape index: {}]
  %s18 = inlined_call_operand.hbm [shape: f32[16,128], index: 18, kind: output, shape index: {0}]
  %s19 = inlined_call_operand.hbm [shape: f32[24,256], index: 19, kind: output, shape index: {1}]
  %s20 = inlined_call_operand.vmem [shape: f32[24,128], index: 20, kind: output, shape index: {2}]
  %21 = xla_tuple %s18, %s19, %s20
  %s22 = sld [smem:[#allocation0]]
  $region125: #{forward.1} parent=0
    _
  %s24 = ssub.s32 1, %s22
  %s25 = scalar_select 0, %s24, %s22
  $region1: #{forward.1} parent=0
    #allocation3 [shape = 'u8[8192]{0}', space=vmem, size = 0x2000, scoped, tag = 'output window, operand 0, single buffered']
    #allocation4 [shape = 's32[2]{0}', space=sflag, size = 0x8, scoped, tag = 'scoped memory for forward.1']
    #allocation5 [shape = 'u8[16384]{0}', space=vmem, size = 0x4000, scoped, tag = 'output window, operand 1']
    #allocation6 [shape = 's32[2]{0}', space=sflag, size = 0x8, scoped, tag = 'scoped memory for forward.1']
    %26 = vsyncpa [#allocation4], 0
    %27 = vsyncpa [#allocation6], 0
    %s28 = scalar_lea.sflag [#allocation6], 1
    %29 = vsyncpa %s28, 0
    loop: start=0, step=1, limit=5
    $region2: #{forward.1} parent=1 // loop_pre_header
      _
    $region3: #{forward.1} parent=1 // loop_header
      %s31 = sphi 0, %s35
      %p32 = scmp.ge.s32.totalorder %s31, 5
      %s39 = sphi 0, %s39
      %s41 = sphi 0, %s39
      %s42 = sphi 0, %s41
      %s56 = sphi 0, %s42
      %s60 = sphi 0, %s60
      %s62 = sphi 0, %s60
      %s63 = sphi 0, %s62
      %s77 = sphi 0, %s63
      %s81 = sphi 0, %s81
      %s83 = sphi 0, %s81
      %s84 = sphi 0, %s83
      %s98 = sphi 0, %s84
      %s104 = sphi 0, %s106
      %s107 = sphi 0, %s104
      %s108 = sphi 0, %s107
      %s124 = sphi 0, %s108
      %s130 = sphi 0, %s132
      %s133 = sphi 0, %s130
      %s134 = sphi 0, %s133
      %s150 = sphi 0, %s134
      %s154 = sphi 0, %s154
      %s156 = sphi 0, %s154
      %s157 = sphi 0, %s156
      %s171 = sphi 0, %s157
      %s175 = sphi 0, %s175
      %s177 = sphi 0, %s175
      %s178 = sphi 0, %s177
      %s192 = sphi 0, %s178
      %s196 = sphi 0, %s196
      %s198 = sphi 0, %s196
      %s199 = sphi 0, %s198
      %s213 = sphi 0, %s199
      %s217 = sphi 0, %s217
      %s219 = sphi 0, %s217
      %s220 = sphi 0, %s219
      %s234 = sphi 0, %s220
      %s238 = sphi 0, %s238
      %s240 = sphi 0, %s238
      %s241 = sphi 0, %s240
      %s255 = sphi 0, %s241
      %s259 = sphi 0, %s259
      %s261 = sphi 0, %s259
      %s262 = sphi 0, %s261
      %s276 = sphi 0, %s262
      %s280 = sphi 0, %s280
      %s282 = sphi 0, %s280
      %s283 = sphi 0, %s282
      %s297 = sphi 0, %s283
      %s301 = sphi 0, %s301
      %s303 = sphi 0, %s301
      %s304 = sphi 0, %s303
      %s318 = sphi 0, %s304
      %s322 = sphi 0, %s322
      %s324 = sphi 0, %s322
      %s325 = sphi 0, %s324
      %s339 = sphi 0, %s325
      %s343 = sphi 0, %s343
      %s345 = sphi 0, %s343
      %s346 = sphi 0, %s345
      %s360 = sphi 0, %s346
      %s364 = sphi 0, %s364
      %s366 = sphi 0, %s364
      %s367 = sphi 0, %s366
      %s381 = sphi 0, %s367
      %s385 = sphi 0, %s385
      %s387 = sphi 0, %s385
      %s388 = sphi 0, %s387
      %s402 = sphi 0, %s388
      %s406 = sphi 0, %s406
      %s408 = sphi 0, %s406
      %s409 = sphi 0, %s408
      %s423 = sphi 0, %s409
      %s427 = sphi 0, %s427
      %s429 = sphi 0, %s427
      %s430 = sphi 0, %s429
      %s444 = sphi 0, %s430
      %s450 = sphi 0, %s452
      %s453 = sphi 0, %s450
      %s454 = sphi 0, %s453
      %s470 = sphi 0, %s454
      %s476 = sphi 0, %s478
      %s479 = sphi 0, %s476
      %s480 = sphi 0, %s479
      %s496 = sphi 0, %s480
    $region4: #{forward.1} parent=1 // loop_header_branch
      %34 = sbr.rel (%p32) target = $region8
    $region5: #{forward.1} parent=1 // loop_body
      %s36 = ssub.s32 %s31, 1
      %s37 = ssub.s32 %s31, 2
      %s38 = sadd.s32 %s31, 1
      %s40 = sadd.s32 %s39, 1
      %p43 = scmp.eq.s32.totalorder %s31, 2
      %p44 = scmp.ne.s32.totalorder %s39, %s41
      %p45 = scmp.eq.s32.totalorder %s31, 0
      %p46 = por %p44, %p45
      %p47 = scmp.ne.s32.totalorder %s39, %s41
      %p48 = scmp.eq.s32.totalorder %s36, 2
      %p49 = por %p47, %p48
      %p50 = scmp.ne.s32.totalorder %s41, %s42
      %p51 = scmp.eq.s32.totalorder %s36, 0
      %p52 = por %p50, %p51
      %p53 = scmp.ne.s32.totalorder %s41, %s42
      %p54 = scmp.eq.s32.totalorder %s37, 2
      %p55 = por %p53, %p54
      %p57 = scmp.ne.s32.totalorder %s42, %s56
      %p58 = scmp.eq.s32.totalorder %s37, 0
      %p59 = por %p57, %p58
      %s61 = sadd.s32 %s60, 1
      %p64 = scmp.eq.s32.totalorder %s31, 2
      %p65 = scmp.ne.s32.totalorder %s60, %s62
      %p66 = scmp.eq.s32.totalorder %s31, 0
      %p67 = por %p65, %p66
      %p68 = scmp.ne.s32.totalorder %s60, %s62
      %p69 = scmp.eq.s32.totalorder %s36, 2
      %p70 = por %p68, %p69
      %p71 = scmp.ne.s32.totalorder %s62, %s63
      %p72 = scmp.eq.s32.totalorder %s36, 0
      %p73 = por %p71, %p72
      %p74 = scmp.ne.s32.totalorder %s62, %s63
      %p75 = scmp.eq.s32.totalorder %s37, 2
      %p76 = por %p74, %p75
      %p78 = scmp.ne.s32.totalorder %s63, %s77
      %p79 = scmp.eq.s32.totalorder %s37, 0
      %p80 = por %p78, %p79
      %s82 = sadd.s32 %s81, 1
      %p85 = scmp.eq.s32.totalorder %s31, 2
      %p86 = scmp.ne.s32.totalorder %s81, %s83
      %p87 = scmp.eq.s32.totalorder %s31, 0
      %p88 = por %p86, %p87
      %p89 = scmp.ne.s32.totalorder %s81, %s83
      %p90 = scmp.eq.s32.totalorder %s36, 2
      %p91 = por %p89, %p90
      %p92 = scmp.ne.s32.totalorder %s83, %s84
      %p93 = scmp.eq.s32.totalorder %s36, 0
      %p94 = por %p92, %p93
      %p95 = scmp.ne.s32.totalorder %s83, %s84
      %p96 = scmp.eq.s32.totalorder %s37, 2
      %p97 = por %p95, %p96
      %p99 = scmp.ne.s32.totalorder %s84, %s98
      %p100 = scmp.eq.s32.totalorder %s37, 0
      %p101 = por %p99, %p100
      %s102 = ssub.s32 %s31, %s38
      %p103 = scmp.eq.s32.totalorder %s102, 0
      %s105 = sadd.s32 %s104, 1
      %s106 = scalar_select %p103, %s104, %s105
      %p109 = pneg %p103
      %p110 = scmp.eq.s32.totalorder %s31, 2
      %p111 = por %p109, %p110
      %p112 = scmp.ne.s32.totalorder %s104, %s107
      %p113 = scmp.eq.s32.totalorder %s31, 0
      %p114 = por %p112, %p113
      %p115 = scmp.ne.s32.totalorder %s104, %s107
      %p116 = scmp.eq.s32.totalorder %s36, 2
      %p117 = por %p115, %p116
      %p118 = scmp.ne.s32.totalorder %s107, %s108
      %p119 = scmp.eq.s32.totalorder %s36, 0
      %p120 = por %p118, %p119
      %p121 = scmp.ne.s32.totalorder %s107, %s108
      %p122 = scmp.eq.s32.totalorder %s37, 2
      %p123 = por %p121, %p122
      %p125 = scmp.ne.s32.totalorder %s108, %s124
      %p126 = scmp.eq.s32.totalorder %s37, 0
      %p127 = por %p125, %p126
      %s128 = ssub.s32 %s31, %s38
      %p129 = scmp.eq.s32.totalorder %s128, 0
      %s131 = sadd.s32 %s130, 1
      %s132 = scalar_select %p129, %s130, %s131
      %p135 = pneg %p129
      %p136 = scmp.eq.s32.totalorder %s31, 2
      %p137 = por %p135, %p136
      %p138 = scmp.ne.s32.totalorder %s130, %s133
      %p139 = scmp.eq.s32.totalorder %s31, 0
      %p140 = por %p138, %p139
      %p141 = scmp.ne.s32.totalorder %s130, %s133
      %p142 = scmp.eq.s32.totalorder %s36, 2
      %p143 = por %p141, %p142
      %p144 = scmp.ne.s32.totalorder %s133, %s134
      %p145 = scmp.eq.s32.totalorder %s36, 0
      %p146 = por %p144, %p145
      %p147 = scmp.ne.s32.totalorder %s133, %s134
      %p148 = scmp.eq.s32.totalorder %s37, 2
      %p149 = por %p147, %p148
      %p151 = scmp.ne.s32.totalorder %s134, %s150
      %p152 = scmp.eq.s32.totalorder %s37, 0
      %p153 = por %p151, %p152
      %s155 = sadd.s32 %s154, 1
      %p158 = scmp.eq.s32.totalorder %s31, 2
      %p159 = scmp.ne.s32.totalorder %s154, %s156
      %p160 = scmp.eq.s32.totalorder %s31, 0
      %p161 = por %p159, %p160
      %p162 = scmp.ne.s32.totalorder %s154, %s156
      %p163 = scmp.eq.s32.totalorder %s36, 2
      %p164 = por %p162, %p163
      %p165 = scmp.ne.s32.totalorder %s156, %s157
      %p166 = scmp.eq.s32.totalorder %s36, 0
      %p167 = por %p165, %p166
      %p168 = scmp.ne.s32.totalorder %s156, %s157
      %p169 = scmp.eq.s32.totalorder %s37, 2
      %p170 = por %p168, %p169
      %p172 = scmp.ne.s32.totalorder %s157, %s171
      %p173 = scmp.eq.s32.totalorder %s37, 0
      %p174 = por %p172, %p173
      %s176 = sadd.s32 %s175, 1
      %p179 = scmp.eq.s32.totalorder %s31, 2
      %p180 = scmp.ne.s32.totalorder %s175, %s177
      %p181 = scmp.eq.s32.totalorder %s31, 0
      %p182 = por %p180, %p181
      %p183 = scmp.ne.s32.totalorder %s175, %s177
      %p184 = scmp.eq.s32.totalorder %s36, 2
      %p185 = por %p183, %p184
      %p186 = scmp.ne.s32.totalorder %s177, %s178
      %p187 = scmp.eq.s32.totalorder %s36, 0
      %p188 = por %p186, %p187
      %p189 = scmp.ne.s32.totalorder %s177, %s178
      %p190 = scmp.eq.s32.totalorder %s37, 2
      %p191 = por %p189, %p190
      %p193 = scmp.ne.s32.totalorder %s178, %s192
      %p194 = scmp.eq.s32.totalorder %s37, 0
      %p195 = por %p193, %p194
      %s197 = sadd.s32 %s196, 1
      %p200 = scmp.eq.s32.totalorder %s31, 2
      %p201 = scmp.ne.s32.totalorder %s196, %s198
      %p202 = scmp.eq.s32.totalorder %s31, 0
      %p203 = por %p201, %p202
      %p204 = scmp.ne.s32.totalorder %s196, %s198
      %p205 = scmp.eq.s32.totalorder %s36, 2
      %p206 = por %p204, %p205
      %p207 = scmp.ne.s32.totalorder %s198, %s199
      %p208 = scmp.eq.s32.totalorder %s36, 0
      %p209 = por %p207, %p208
      %p210 = scmp.ne.s32.totalorder %s198, %s199
      %p211 = scmp.eq.s32.totalorder %s37, 2
      %p212 = por %p210, %p211
      %p214 = scmp.ne.s32.totalorder %s199, %s213
      %p215 = scmp.eq.s32.totalorder %s37, 0
      %p216 = por %p214, %p215
      %s218 = sadd.s32 %s217, 1
      %p221 = scmp.eq.s32.totalorder %s31, 2
      %p222 = scmp.ne.s32.totalorder %s217, %s219
      %p223 = scmp.eq.s32.totalorder %s31, 0
      %p224 = por %p222, %p223
      %p225 = scmp.ne.s32.totalorder %s217, %s219
      %p226 = scmp.eq.s32.totalorder %s36, 2
      %p227 = por %p225, %p226
      %p228 = scmp.ne.s32.totalorder %s219, %s220
      %p229 = scmp.eq.s32.totalorder %s36, 0
      %p230 = por %p228, %p229
      %p231 = scmp.ne.s32.totalorder %s219, %s220
      %p232 = scmp.eq.s32.totalorder %s37, 2
      %p233 = por %p231, %p232
      %p235 = scmp.ne.s32.totalorder %s220, %s234
      %p236 = scmp.eq.s32.totalorder %s37, 0
      %p237 = por %p235, %p236
      %s239 = sadd.s32 %s238, 1
      %p242 = scmp.eq.s32.totalorder %s31, 2
      %p243 = scmp.ne.s32.totalorder %s238, %s240
      %p244 = scmp.eq.s32.totalorder %s31, 0
      %p245 = por %p243, %p244
      %p246 = scmp.ne.s32.totalorder %s238, %s240
      %p247 = scmp.eq.s32.totalorder %s36, 2
      %p248 = por %p246, %p247
      %p249 = scmp.ne.s32.totalorder %s240, %s241
      %p250 = scmp.eq.s32.totalorder %s36, 0
      %p251 = por %p249, %p250
      %p252 = scmp.ne.s32.totalorder %s240, %s241
      %p253 = scmp.eq.s32.totalorder %s37, 2
      %p254 = por %p252, %p253
      %p256 = scmp.ne.s32.totalorder %s241, %s255
      %p257 = scmp.eq.s32.totalorder %s37, 0
      %p258 = por %p256, %p257
      %s260 = sadd.s32 %s259, 1
      %p263 = scmp.eq.s32.totalorder %s31, 2
      %p264 = scmp.ne.s32.totalorder %s259, %s261
      %p265 = scmp.eq.s32.totalorder %s31, 0
      %p266 = por %p264, %p265
      %p267 = scmp.ne.s32.totalorder %s259, %s261
      %p268 = scmp.eq.s32.totalorder %s36, 2
      %p269 = por %p267, %p268
      %p270 = scmp.ne.s32.totalorder %s261, %s262
      %p271 = scmp.eq.s32.totalorder %s36, 0
      %p272 = por %p270, %p271
      %p273 = scmp.ne.s32.totalorder %s261, %s262
      %p274 = scmp.eq.s32.totalorder %s37, 2
      %p275 = por %p273, %p274
      %p277 = scmp.ne.s32.totalorder %s262, %s276
      %p278 = scmp.eq.s32.totalorder %s37, 0
      %p279 = por %p277, %p278
      %s281 = sadd.s32 %s280, 1
      %p284 = scmp.eq.s32.totalorder %s31, 2
      %p285 = scmp.ne.s32.totalorder %s280, %s282
      %p286 = scmp.eq.s32.totalorder %s31, 0
      %p287 = por %p285, %p286
      %p288 = scmp.ne.s32.totalorder %s280, %s282
      %p289 = scmp.eq.s32.totalorder %s36, 2
      %p290 = por %p288, %p289
      %p291 = scmp.ne.s32.totalorder %s282, %s283
      %p292 = scmp.eq.s32.totalorder %s36, 0
      %p293 = por %p291, %p292
      %p294 = scmp.ne.s32.totalorder %s282, %s283
      %p295 = scmp.eq.s32.totalorder %s37, 2
      %p296 = por %p294, %p295
      %p298 = scmp.ne.s32.totalorder %s283, %s297
      %p299 = scmp.eq.s32.totalorder %s37, 0
      %p300 = por %p298, %p299
      %s302 = sadd.s32 %s301, 1
      %p305 = scmp.eq.s32.totalorder %s31, 2
      %p306 = scmp.ne.s32.totalorder %s301, %s303
      %p307 = scmp.eq.s32.totalorder %s31, 0
      %p308 = por %p306, %p307
      %p309 = scmp.ne.s32.totalorder %s301, %s303
      %p310 = scmp.eq.s32.totalorder %s36, 2
      %p311 = por %p309, %p310
      %p312 = scmp.ne.s32.totalorder %s303, %s304
      %p313 = scmp.eq.s32.totalorder %s36, 0
      %p314 = por %p312, %p313
      %p315 = scmp.ne.s32.totalorder %s303, %s304
      %p316 = scmp.eq.s32.totalorder %s37, 2
      %p317 = por %p315, %p316
      %p319 = scmp.ne.s32.totalorder %s304, %s318
      %p320 = scmp.eq.s32.totalorder %s37, 0
      %p321 = por %p319, %p320
      %s323 = sadd.s32 %s322, 1
      %p326 = scmp.eq.s32.totalorder %s31, 2
      %p327 = scmp.ne.s32.totalorder %s322, %s324
      %p328 = scmp.eq.s32.totalorder %s31, 0
      %p329 = por %p327, %p328
      %p330 = scmp.ne.s32.totalorder %s322, %s324
      %p331 = scmp.eq.s32.totalorder %s36, 2
      %p332 = por %p330, %p331
      %p333 = scmp.ne.s32.totalorder %s324, %s325
      %p334 = scmp.eq.s32.totalorder %s36, 0
      %p335 = por %p333, %p334
      %p336 = scmp.ne.s32.totalorder %s324, %s325
      %p337 = scmp.eq.s32.totalorder %s37, 2
      %p338 = por %p336, %p337
      %p340 = scmp.ne.s32.totalorder %s325, %s339
      %p341 = scmp.eq.s32.totalorder %s37, 0
      %p342 = por %p340, %p341
      %s344 = sadd.s32 %s343, 1
      %p347 = scmp.eq.s32.totalorder %s31, 2
      %p348 = scmp.ne.s32.totalorder %s343, %s345
      %p349 = scmp.eq.s32.totalorder %s31, 0
      %p350 = por %p348, %p349
      %p351 = scmp.ne.s32.totalorder %s343, %s345
      %p352 = scmp.eq.s32.totalorder %s36, 2
      %p353 = por %p351, %p352
      %p354 = scmp.ne.s32.totalorder %s345, %s346
      %p355 = scmp.eq.s32.totalorder %s36, 0
      %p356 = por %p354, %p355
      %p357 = scmp.ne.s32.totalorder %s345, %s346
      %p358 = scmp.eq.s32.totalorder %s37, 2
      %p359 = por %p357, %p358
      %p361 = scmp.ne.s32.totalorder %s346, %s360
      %p362 = scmp.eq.s32.totalorder %s37, 0
      %p363 = por %p361, %p362
      %s365 = sadd.s32 %s364, 1
      %p368 = scmp.eq.s32.totalorder %s31, 2
      %p369 = scmp.ne.s32.totalorder %s364, %s366
      %p370 = scmp.eq.s32.totalorder %s31, 0
      %p371 = por %p369, %p370
      %p372 = scmp.ne.s32.totalorder %s364, %s366
      %p373 = scmp.eq.s32.totalorder %s36, 2
      %p374 = por %p372, %p373
      %p375 = scmp.ne.s32.totalorder %s366, %s367
      %p376 = scmp.eq.s32.totalorder %s36, 0
      %p377 = por %p375, %p376
      %p378 = scmp.ne.s32.totalorder %s366, %s367
      %p379 = scmp.eq.s32.totalorder %s37, 2
      %p380 = por %p378, %p379
      %p382 = scmp.ne.s32.totalorder %s367, %s381
      %p383 = scmp.eq.s32.totalorder %s37, 0
      %p384 = por %p382, %p383
      %s386 = sadd.s32 %s385, 1
      %p389 = scmp.eq.s32.totalorder %s31, 2
      %p390 = scmp.ne.s32.totalorder %s385, %s387
      %p391 = scmp.eq.s32.totalorder %s31, 0
      %p392 = por %p390, %p391
      %p393 = scmp.ne.s32.totalorder %s385, %s387
      %p394 = scmp.eq.s32.totalorder %s36, 2
      %p395 = por %p393, %p394
      %p396 = scmp.ne.s32.totalorder %s387, %s388
      %p397 = scmp.eq.s32.totalorder %s36, 0
      %p398 = por %p396, %p397
      %p399 = scmp.ne.s32.totalorder %s387, %s388
      %p400 = scmp.eq.s32.totalorder %s37, 2
      %p401 = por %p399, %p400
      %p403 = scmp.ne.s32.totalorder %s388, %s402
      %p404 = scmp.eq.s32.totalorder %s37, 0
      %p405 = por %p403, %p404
      %s407 = sadd.s32 %s406, 1
      %p410 = scmp.eq.s32.totalorder %s31, 2
      %p411 = scmp.ne.s32.totalorder %s406, %s408
      %p412 = scmp.eq.s32.totalorder %s31, 0
      %p413 = por %p411, %p412
      %p414 = scmp.ne.s32.totalorder %s406, %s408
      %p415 = scmp.eq.s32.totalorder %s36, 2
      %p416 = por %p414, %p415
      %p417 = scmp.ne.s32.totalorder %s408, %s409
      %p418 = scmp.eq.s32.totalorder %s36, 0
      %p419 = por %p417, %p418
      %p420 = scmp.ne.s32.totalorder %s408, %s409
      %p421 = scmp.eq.s32.totalorder %s37, 2
      %p422 = por %p420, %p421
      %p424 = scmp.ne.s32.totalorder %s409, %s423
      %p425 = scmp.eq.s32.totalorder %s37, 0
      %p426 = por %p424, %p425
      %s428 = sadd.s32 %s427, 1
      %p431 = scmp.eq.s32.totalorder %s31, 2
      %p432 = scmp.ne.s32.totalorder %s427, %s429
      %p433 = scmp.eq.s32.totalorder %s31, 0
      %p434 = por %p432, %p433
      %p435 = scmp.ne.s32.totalorder %s427, %s429
      %p436 = scmp.eq.s32.totalorder %s36, 2
      %p437 = por %p435, %p436
      %p438 = scmp.ne.s32.totalorder %s429, %s430
      %p439 = scmp.eq.s32.totalorder %s36, 0
      %p440 = por %p438, %p439
      %p441 = scmp.ne.s32.totalorder %s429, %s430
      %p442 = scmp.eq.s32.totalorder %s37, 2
      %p443 = por %p441, %p442
      %p445 = scmp.ne.s32.totalorder %s430, %s444
      %p446 = scmp.eq.s32.totalorder %s37, 0
      %p447 = por %p445, %p446
      %s448 = ssub.s32 %s31, %s38
      %p449 = scmp.eq.s32.totalorder %s448, 0
      %s451 = sadd.s32 %s450, 1
      %s452 = scalar_select %p449, %s450, %s451
      %p455 = pneg %p449
      %p456 = scmp.eq.s32.totalorder %s31, 2
      %p457 = por %p455, %p456
      %p458 = scmp.ne.s32.totalorder %s450, %s453
      %p459 = scmp.eq.s32.totalorder %s31, 0
      %p460 = por %p458, %p459
      %p461 = scmp.ne.s32.totalorder %s450, %s453
      %p462 = scmp.eq.s32.totalorder %s36, 2
      %p463 = por %p461, %p462
      %p464 = scmp.ne.s32.totalorder %s453, %s454
      %p465 = scmp.eq.s32.totalorder %s36, 0
      %p466 = por %p464, %p465
      %p467 = scmp.ne.s32.totalorder %s453, %s454
      %p468 = scmp.eq.s32.totalorder %s37, 2
      %p469 = por %p467, %p468
      %p471 = scmp.ne.s32.totalorder %s454, %s470
      %p472 = scmp.eq.s32.totalorder %s37, 0
      %p473 = por %p471, %p472
      %s474 = ssub.s32 %s31, %s38
      %p475 = scmp.eq.s32.totalorder %s474, 0
      %s477 = sadd.s32 %s476, 1
      %s478 = scalar_select %p475, %s476, %s477
      %p481 = pneg %p475
      %p482 = scmp.eq.s32.totalorder %s31, 2
      %p483 = por %p481, %p482
      %p484 = scmp.ne.s32.totalorder %s476, %s479
      %p485 = scmp.eq.s32.totalorder %s31, 0
      %p486 = por %p484, %p485
      %p487 = scmp.ne.s32.totalorder %s476, %s479
      %p488 = scmp.eq.s32.totalorder %s36, 2
      %p489 = por %p487, %p488
      %p490 = scmp.ne.s32.totalorder %s479, %s480
      %p491 = scmp.eq.s32.totalorder %s36, 0
      %p492 = por %p490, %p491
      %p493 = scmp.ne.s32.totalorder %s479, %s480
      %p494 = scmp.eq.s32.totalorder %s37, 2
      %p495 = por %p493, %p494
      %p497 = scmp.ne.s32.totalorder %s480, %s496
      %p498 = scmp.eq.s32.totalorder %s37, 0
      %p499 = por %p497, %p498
      %p500 = scmp.le.s32.totalorder 1, %s31
      %p501 = scmp.lt.s32.totalorder %s31, 4
      %p502 = pnand %p500, %p501
      %p503 = pneg %p502
      // Predicated region
      $region9: #{forward.1} parent=5 // pred_check
        _
      $region10: #{forward.1} parent=5 // pred_check_branch
        %505 = sbr.rel (%p502) target = $region12
      $region11: #{forward.1} parent=5 // pred_region
        %s506 = ssub.s32 %s31, 1
        // Predicated region
        $region13: #{forward.1} parent=11 // pred_check
          %p507 = pneg %p52
        $region14: #{forward.1} parent=11 // pred_check_branch
          %509 = sbr.rel (%p507) target = $region16
        $region15: #{forward.1} parent=11 // pred_region
          _
        $region16: #{forward.1} parent=11 // pred_fallthru
          _
        // Predicated region
        $region17: #{forward.1} parent=11 // pred_check
          %p510 = pneg %p73
        $region18: #{forward.1} parent=11 // pred_check_branch
          %512 = sbr.rel (%p510) target = $region20
        $region19: #{forward.1} parent=11 // pred_region
          _
        $region20: #{forward.1} parent=11 // pred_fallthru
          _
        // Predicated region
        $region21: #{forward.1} parent=11 // pred_check
          %p513 = pneg %p94
        $region22: #{forward.1} parent=11 // pred_check_branch
          %515 = sbr.rel (%p513) target = $region24
        $region23: #{forward.1} parent=11 // pred_region
          _
        $region24: #{forward.1} parent=11 // pred_fallthru
          _
        // Predicated region
        $region25: #{forward.1} parent=11 // pred_check
          %p516 = pneg %p167
        $region26: #{forward.1} parent=11 // pred_check_branch
          %518 = sbr.rel (%p516) target = $region28
        $region27: #{forward.1} parent=11 // pred_region
          _
        $region28: #{forward.1} parent=11 // pred_fallthru
          _
        // Predicated region
        $region29: #{forward.1} parent=11 // pred_check
          %p519 = pneg %p188
        $region30: #{forward.1} parent=11 // pred_check_branch
          %521 = sbr.rel (%p519) target = $region32
        $region31: #{forward.1} parent=11 // pred_region
          _
        $region32: #{forward.1} parent=11 // pred_fallthru
          _
        // Predicated region
        $region33: #{forward.1} parent=11 // pred_check
          %p522 = pneg %p209
        $region34: #{forward.1} parent=11 // pred_check_branch
          %524 = sbr.rel (%p522) target = $region36
        $region35: #{forward.1} parent=11 // pred_region
          _
        $region36: #{forward.1} parent=11 // pred_fallthru
          _
        // Predicated region
        $region37: #{forward.1} parent=11 // pred_check
          %p525 = pneg %p230
        $region38: #{forward.1} parent=11 // pred_check_branch
          %527 = sbr.rel (%p525) target = $region40
        $region39: #{forward.1} parent=11 // pred_region
          _
        $region40: #{forward.1} parent=11 // pred_fallthru
          _
        // Predicated region
        $region41: #{forward.1} parent=11 // pred_check
          %p528 = pneg %p251
        $region42: #{forward.1} parent=11 // pred_check_branch
          %530 = sbr.rel (%p528) target = $region44
        $region43: #{forward.1} parent=11 // pred_region
          _
        $region44: #{forward.1} parent=11 // pred_fallthru
          _
        // Predicated region
        $region45: #{forward.1} parent=11 // pred_check
          %p531 = pneg %p272
        $region46: #{forward.1} parent=11 // pred_check_branch
          %533 = sbr.rel (%p531) target = $region48
        $region47: #{forward.1} parent=11 // pred_region
          _
        $region48: #{forward.1} parent=11 // pred_fallthru
          _
        // Predicated region
        $region49: #{forward.1} parent=11 // pred_check
          %p534 = pneg %p293
        $region50: #{forward.1} parent=11 // pred_check_branch
          %536 = sbr.rel (%p534) target = $region52
        $region51: #{forward.1} parent=11 // pred_region
          _
        $region52: #{forward.1} parent=11 // pred_fallthru
          _
        // Predicated region
        $region53: #{forward.1} parent=11 // pred_check
          %p537 = pneg %p314
        $region54: #{forward.1} parent=11 // pred_check_branch
          %539 = sbr.rel (%p537) target = $region56
        $region55: #{forward.1} parent=11 // pred_region
          _
        $region56: #{forward.1} parent=11 // pred_fallthru
          _
        // Predicated region
        $region57: #{forward.1} parent=11 // pred_check
          %p540 = pneg %p335
        $region58: #{forward.1} parent=11 // pred_check_branch
          %542 = sbr.rel (%p540) target = $region60
        $region59: #{forward.1} parent=11 // pred_region
          _
        $region60: #{forward.1} parent=11 // pred_fallthru
          _
        // Predicated region
        $region61: #{forward.1} parent=11 // pred_check
          %p543 = pneg %p356
        $region62: #{forward.1} parent=11 // pred_check_branch
          %545 = sbr.rel (%p543) target = $region64
        $region63: #{forward.1} parent=11 // pred_region
          _
        $region64: #{forward.1} parent=11 // pred_fallthru
          _
        // Predicated region
        $region65: #{forward.1} parent=11 // pred_check
          %p546 = pneg %p377
        $region66: #{forward.1} parent=11 // pred_check_branch
          %548 = sbr.rel (%p546) target = $region68
        $region67: #{forward.1} parent=11 // pred_region
          _
        $region68: #{forward.1} parent=11 // pred_fallthru
          _
        // Predicated region
        $region69: #{forward.1} parent=11 // pred_check
          %p549 = pneg %p398
        $region70: #{forward.1} parent=11 // pred_check_branch
          %551 = sbr.rel (%p549) target = $region72
        $region71: #{forward.1} parent=11 // pred_region
          _
        $region72: #{forward.1} parent=11 // pred_fallthru
          _
        // Predicated region
        $region73: #{forward.1} parent=11 // pred_check
          %p552 = pneg %p419
        $region74: #{forward.1} parent=11 // pred_check_branch
          %554 = sbr.rel (%p552) target = $region76
        $region75: #{forward.1} parent=11 // pred_region
          _
        $region76: #{forward.1} parent=11 // pred_fallthru
          _
      $region12: #{forward.1} parent=5 // pred_fallthru
        _
      %p555 = scmp.lt.s32.totalorder %s31, 3
      // Predicated region
      $region77: #{forward.1} parent=5 // pred_check
        %p556 = pneg %p555
      $region78: #{forward.1} parent=5 // pred_check_branch
        %558 = sbr.rel (%p556) target = $region80
      $region79: #{forward.1} parent=5 // pred_region
        // Predicated region
        $region81: #{forward.1} parent=79 // pred_check
          %p559 = pneg %p114
        $region82: #{forward.1} parent=79 // pred_check_branch
          %561 = sbr.rel (%p559) target = $region84
        $region83: #{forward.1} parent=79 // pred_region
          %p562 = scmp.lt.s32.totalorder %s31, 2
          %s563 = scalar_select %p562, %s31, 2
          %s564 = smul.addr %s563, 8
          %s565 = scalar_lea.vmem %s3, %s564
        $region84: #{forward.1} parent=79 // pred_fallthru
          _
        // Predicated region
        $region85: #{forward.1} parent=79 // pred_check
          %p566 = pneg %p140
        $region86: #{forward.1} parent=79 // pred_check_branch
          %568 = sbr.rel (%p566) target = $region88
        $region87: #{forward.1} parent=79 // pred_region
          %p569 = scmp.lt.s32.totalorder %s31, 2
          %s570 = scalar_select %p569, %s31, 2
          %s571 = smul.addr %s570, 8
          %s572 = scalar_lea.vmem %s4, %s571
        $region88: #{forward.1} parent=79 // pred_fallthru
          _
      $region80: #{forward.1} parent=5 // pred_fallthru
        _
      %p573 = scmp.le.s32.totalorder 1, %s31
      %p574 = scmp.lt.s32.totalorder %s31, 4
      %p575 = pnand %p573, %p574
      %p576 = pneg %p575
      // Predicated region
      $region89: #{forward.1} parent=5 // pred_check
        _
      $region90: #{forward.1} parent=5 // pred_check_branch
        %578 = sbr.rel (%p575) target = $region92
      $region91: #{forward.1} parent=5 // pred_region
        %s579 = ssub.s32 %s31, 1
        %p580 = pneg %p52
        %p581 = pneg %p49
        %p582 = pneg %p73
        %p583 = pneg %p70
        %p584 = pneg %p94
        %p585 = pneg %p91
        %p586 = scmp.lt.s32.totalorder %s36, 2
        %s587 = scalar_select %p586, %s36, 2
        %s588 = smul.addr %s587, 8
        %s589 = scalar_lea.vmem %s3, %s588
        %p590 = pneg %p120
        %p591 = pneg %p117
        %p592 = scmp.lt.s32.totalorder %s36, 2
        %s593 = scalar_select %p592, %s36, 2
        %s594 = smul.addr %s593, 8
        %s595 = scalar_lea.vmem %s4, %s594
        %p596 = pneg %p146
        %p597 = pneg %p143
        %p598 = pneg %p167
        %p599 = pneg %p164
        %p600 = pneg %p188
        %p601 = pneg %p185
        %p602 = pneg %p209
        %p603 = pneg %p206
        %p604 = pneg %p230
        %p605 = pneg %p227
        %p606 = pneg %p251
        %p607 = pneg %p248
        %p608 = pneg %p272
        %p609 = pneg %p269
        %p610 = pneg %p293
        %p611 = pneg %p290
        %p612 = pneg %p314
        %p613 = pneg %p311
        %p614 = pneg %p335
        %p615 = pneg %p332
        %p616 = pneg %p356
        %p617 = pneg %p353
        %p618 = pneg %p377
        %p619 = pneg %p374
        %p620 = pneg %p398
        %p621 = pneg %p395
        %p622 = pneg %p419
        %p623 = pneg %p416
        %p624 = pneg %p440
        %p625 = pneg %p437
        %p626 = pneg %p466
        %p627 = pneg %p463
        %s628 = sand.u32 %s453, 1
        %s629 = scalar_lea.sflag [#allocation6], %s628
        %s630 = sand.u32 %s453, 1
        %s631 = smul.addr %s630, 16
        %s632 = scalar_lea.vmem [#allocation5], %s631
        %p633 = pneg %p492
        %p634 = pneg %p489
        %p635 = scmp.lt.s32.totalorder %s36, 2
        %s636 = scalar_select %p635, %s36, 2
        %s637 = smul.addr %s636, 8
        %s638 = scalar_lea.vmem %s20, %s637
        %p639 = scmp.lt.s32.totalorder %s36, 2
        %s640 = scalar_select %p639, %s36, 2
        %s641 = smul.addr %s640, 8
        %s642 = scalar_lea.vmem %s3, %s641
        %p643 = scmp.lt.s32.totalorder %s36, 2
        %s644 = scalar_select %p643, %s36, 2
        %s645 = smul.addr %s644, 8
        %s646 = scalar_lea.vmem %s4, %s645
        %p647 = scmp.lt.s32.totalorder %s36, 2
        %s648 = scalar_select %p647, %s36, 2
        %s649 = smul.addr %s648, 8
        %s650 = scalar_lea.vmem %s20, %s649
        %p651 = scmp.eq.s32.totalorder %s36, 0
        // Predicated region
        $region93: #{forward.1} parent=91 // pred_check
          %p652 = pneg %p651
        $region94: #{forward.1} parent=91 // pred_check_branch
          %654 = sbr.rel (%p652) target = $region96
        $region95: #{forward.1} parent=91 // pred_region
          %v655 = vld [vmem:[%s0] sm:$0xff]
          %v656 = vld [vmem:[%s0 + $0x8] sm:$0xff]
          %v657 = vlaneseq
          %v658 = vand.u32 %v657, 127
          %vm659 = vcmask 269312
          %v660 = vsel %vm659, %v655, 0.0
          %v661 = vsel %vm659, %v656, 0.0
          %v662 = vadd.f32 %v660, %v661
          %v663 = vrot.slane %v662, 4
          %v664 = vadd.f32 %v662, %v663
          %v665 = vrot.slane %v664, 2
          %v666 = vadd.f32 %v664, %v665
          %v667 = vrot.slane %v666, 1
          %v668 = vadd.f32 %v666, %v667
          %v669 = vrcp.pop 16.0
          %v670 = vmul.f32 %v668, %v669
          %v671 = vsub.f32 %v655, %v670
          %v672 = vsub.f32 %v656, %v670
          %v673 = vmul.f32 %v671, %v671
          %v674 = vmul.f32 %v672, %v672
          %v675 = vsel %vm659, %v673, 0.0
          %v676 = vsel %vm659, %v674, 0.0
          %v677 = vadd.f32 %v675, %v676
          %v678 = vrot.slane %v677, 4
          %v679 = vadd.f32 %v677, %v678
          %v680 = vrot.slane %v679, 2
          %v681 = vadd.f32 %v679, %v680
          %v682 = vrot.slane %v681, 1
          %v683 = vadd.f32 %v681, %v682
          %v684 = vmul.f32 %v683, %v669
          %v685 = vrsqrt.pop %v684
          %v686 = vmul.f32 %v684, %v685
          %vm687 = vcmp.eq.f32.partialorder %v684, inf
          %v688 = vsel %vm687, %v684, %v686
          %vm689 = vcmp.eq.f32.partialorder %v684, 0.0
          %v690 = vand.u32 %v684, 2147483648
          %v691 = vsel %vm689, %v690, %v688
          %v692 = vadd.f32 %v691, 0.0001
          %vm693 = vcmp.lt.s32.totalorder %v658, 30
          %v694 = vrcp.pop %v692
          %v695 = vmul.f32 %v671, %v694
          %v696 = vmul.f32 %v672, %v694
          %v697 = vsel %vm693, %v695, 0.0
          %v698 = vsel %vm693, %v696, 0.0
          %vm699 = vcmp.eq.s32.totalorder %v658, 30
          %v700 = vrcp.pop 282000.0
          %v701 = vmul.f32 %v655, %v700
          %v702 = vmul.f32 %v656, %v700
          %v703 = vsel %vm699, %v701, %v697
          %v704 = vsel %vm699, %v702, %v698
          %vm705 = vcmp.eq.s32.totalorder %v658, 31
          %v706 = vrcp.pop 28200.0
          %v707 = vmul.f32 %v655, %v706
          %v708 = vmul.f32 %v656, %v706
          %v709 = vsel %vm705, %v707, %v703
          %v710 = vsel %vm705, %v708, %v704
          %vm711 = vcmp.gt.f32.partialorder %v655, -99.0
          %vm712 = vcmp.gt.f32.partialorder %v656, -99.0
          %v713 = vsel %vm711, 1, 0
          %v714 = vsel %vm712, 1, 0
          %v715 = vcvt.s32.f32 %v713
          %v716 = vcvt.s32.f32 %v714
          %719 = vrot.lane.b32.xlu0 %v715, 96
          %v720 = vpop.permute.xlu0 %719
          %721 = vrot.lane.b32.xlu0 %v716, 96
          %v722 = vpop.permute.xlu0 %721
          %vm725 = vcmask 7168
          %v726 = vsel %vm725, %v720, 0.0
          %v727 = vsel %vm725, %v722, 0.0
          %v728 = vadd.f32 %v726, %v727
          %729 = vadd.xlane.f32.xlu0 %v728
          %v730 = vpop.xlane.xlu0 %729
          %v731 = vrot.slane %v730, 4
          %v732 = vadd.f32 %v730, %v731
          %v733 = vrot.slane %v732, 2
          %v734 = vadd.f32 %v732, %v733
          %v735 = vrot.slane %v734, 1
          %v736 = vadd.f32 %v734, %v735
          %s737 = vtos %v736
          %s738 = smax.f32 %s737, 1.0
          %v739 = vsel %vm711, %v655, 0.0
          %v740 = vsel %vm712, %v656, 0.0
          %743 = vrot.lane.b32.xlu0 %v739, 96
          %v744 = vpop.permute.xlu0 %743
          %745 = vrot.lane.b32.xlu0 %v740, 96
          %v746 = vpop.permute.xlu0 %745
          %v749 = vsel %vm725, %v744, 0.0
          %v750 = vsel %vm725, %v746, 0.0
          %v751 = vadd.f32 %v749, %v750
          %752 = vadd.xlane.f32.xlu0 %v751
          %v753 = vpop.xlane.xlu0 %752
          %v754 = vrot.slane %v753, 4
          %v755 = vadd.f32 %v753, %v754
          %v756 = vrot.slane %v755, 2
          %v757 = vadd.f32 %v755, %v756
          %v758 = vrot.slane %v757, 1
          %v759 = vadd.f32 %v757, %v758
          %s760 = vtos %v759
          %v761 = vstv %s738
          %v762 = vrcp.pop %v761
          %s763 = vtos %v762
          %s764 = smul.f32 %s760, %s763
          %v765 = vstv %s764
          %v766 = vsub.f32 %v655, %v765
          %v767 = vsub.f32 %v656, %v765
          %v768 = vmul.f32 %v766, %v766
          %v769 = vmul.f32 %v767, %v767
          %v770 = vsel %vm711, %v768, 0.0
          %v771 = vsel %vm712, %v769, 0.0
          %774 = vrot.lane.b32.xlu0 %v770, 96
          %v775 = vpop.permute.xlu0 %774
          %776 = vrot.lane.b32.xlu0 %v771, 96
          %v777 = vpop.permute.xlu0 %776
          %v780 = vsel %vm725, %v775, 0.0
          %v781 = vsel %vm725, %v777, 0.0
          %v782 = vadd.f32 %v780, %v781
          %783 = vadd.xlane.f32.xlu0 %v782
          %v784 = vpop.xlane.xlu0 %783
          %v785 = vrot.slane %v784, 4
          %v786 = vadd.f32 %v784, %v785
          %v787 = vrot.slane %v786, 2
          %v788 = vadd.f32 %v786, %v787
          %v789 = vrot.slane %v788, 1
          %v790 = vadd.f32 %v788, %v789
          %s791 = vtos %v790
          %v792 = vstv %s738
          %v793 = vrcp.pop %v792
          %s794 = vtos %v793
          %s795 = smul.f32 %s791, %s794
          %v796 = vstv %s795
          %v797 = vrsqrt.pop %v796
          %v798 = vmul.f32 %v796, %v797
          %vm799 = vcmp.eq.f32.partialorder %v796, inf
          %v800 = vsel %vm799, %v796, %v798
          %vm801 = vcmp.eq.f32.partialorder %v796, 0.0
          %v802 = vand.u32 %v796, 2147483648
          %v803 = vsel %vm801, %v802, %v800
          %s804 = vtos %v803
          %s805 = sadd.f32 %s804, 0.0001
          %v806 = vstv %s805
          %v807 = vrcp.pop %v806
          %v808 = vmul.f32 %v766, %v807
          %v809 = vmul.f32 %v767, %v807
          %v810 = vsel %vm711, %v808, -10.0
          %v811 = vsel %vm712, %v809, -10.0
          %vm812 = vcmp.eq.s32.totalorder %v658, 32
          %814 = vset.pattern.permute.xlu0 32
          %815 = vperm.xlu0 %814, %v810
          %v816 = vpop.permute.xlu0 %815
          %819 = vset.pattern.permute.xlu0 32
          %820 = vperm.xlu0 %819, %v811
          %v821 = vpop.permute.xlu0 %820
          %v823 = vsel %vm812, %v816, %v709
          %v824 = vsel %vm812, %v821, %v710
          %v825 = vld [vmem:[%s5] sm:$0xff]
          %v826 = vld [vmem:[%s5 + $0x8] sm:$0xff]
          %v827 = vld [vmem:[%s5 + $0x10] sm:$0xff]
          %v828 = vld [vmem:[%s5 + $0x18] sm:$0xff]
          %v829 = vld [vmem:[%s5 + $0x20] sm:$0x1]
          %v830 = vld [vmem:[%s6] sm:$0x1]
          %v832 = vlaneseq
          %v833 = vshrl.u32 %v832, 7
          %v834 = vsub.s32 0, %v833
          %v835 = vrot.slane %v830, %v834
          %v838 = vsel %vm659, %v823, 0
          %v841 = vsel %vm659, %v824, 0
          %vm843 = vcmask 1040384
          %v845 = vsel %vm843, %v829, 0
          %847 = vmatprep.subr.mxu0 0.0
          %848 = vmatpush1.msra.mxu0 0.0
          %849 = vmatprep.subr.mxu0 0.0
          %850 = vmatpush1.msra.mxu0 0.0
          %851 = vmatprep.subr.mxu0 0.0
          %852 = vmatpush1.msra.mxu0 0.0
          %853 = vmatprep.subr.mxu0 0.0
          %854 = vmatpush1.msra.mxu0 0.0
          %855 = vmatprep.subr.mxu0 0.0
          %856 = vmatpush1.msra.mxu0 0.0
          %857 = vmatprep.subr.mxu0 0.0
          %858 = vmatpush1.msra.mxu0 0.0
          %859 = vmatprep.subr.mxu0 0.0
          %860 = vmatpush1.msra.mxu0 0.0
          %861 = vmatprep.subr.mxu0 0.0
          %862 = vmatpush1.msra.mxu0 0.0
          %863 = vmatprep.subr.mxu0 0.0
          %864 = vmatpush1.msra.mxu0 0.0
          %865 = vmatprep.subr.mxu0 0.0
          %866 = vmatpush1.msra.mxu0 0.0
          %867 = vmatprep.subr.mxu0 0.0
          %868 = vmatpush1.msra.mxu0 0.0
          %869 = vmatprep.subr.mxu0 0.0
          %870 = vmatpush1.msra.mxu0 %v845
          %871 = vmatprep.subr.mxu0 0.0
          %872 = vmatpush1.msra.mxu0 %v828
          %873 = vmatprep.subr.mxu0 0.0
          %874 = vmatpush1.msra.mxu0 %v827
          %875 = vmatprep.subr.mxu0 0.0
          %876 = vmatpush1.msra.mxu0 %v826
          %877 = vmatprep.subr.mxu0 0.0
          %878 = vmatpush1.msra.mxu0 %v825
          %879 = vmatprep.subr.mxu0 0.0
          %880 = vmatpush2.msra.mxu0 0.0
          %881 = vmatprep.subr.mxu0 0.0
          %882 = vmatpush2.msra.mxu0 0.0
          %883 = vmatprep.subr.mxu0 0.0
          %884 = vmatpush2.msra.mxu0 0.0
          %885 = vmatprep.subr.mxu0 0.0
          %886 = vmatpush2.msra.mxu0 0.0
          %887 = vmatprep.subr.mxu0 0.0
          %888 = vmatpush2.msra.mxu0 0.0
          %889 = vmatprep.subr.mxu0 0.0
          %890 = vmatpush2.msra.mxu0 0.0
          %891 = vmatprep.subr.mxu0 0.0
          %892 = vmatpush2.msra.mxu0 0.0
          %893 = vmatprep.subr.mxu0 0.0
          %894 = vmatpush2.msra.mxu0 0.0
          %895 = vmatprep.subr.mxu0 0.0
          %896 = vmatpush2.msra.mxu0 0.0
          %897 = vmatprep.subr.mxu0 0.0
          %898 = vmatpush2.msra.mxu0 0.0
          %899 = vmatprep.subr.mxu0 0.0
          %900 = vmatpush2.msra.mxu0 0.0
          %901 = vmatprep.subr.mxu0 0.0
          %902 = vmatpush2.msra.mxu0 0.0
          %903 = vmatprep.subr.mxu0 0.0
          %904 = vmatpush2.msra.mxu0 0.0
          %905 = vmatprep.subr.mxu0 0.0
          %906 = vmatpush2.msra.mxu0 0.0
          %907 = vmatprep.subr.mxu0 0.0
          %908 = vmatpush2.msra.mxu0 0.0
          %909 = vmatprep.subr.mxu0 0.0
          %910 = vmatpush2.msra.mxu0 0.0
          %911 = vmatprep.mubr.f32.mxu0 0.0
          %912 = vmatmul.mubr.f32.gmra.mxu0 %v838
          %v913 = vpop.f32.mrf.mxu0
          %v914 = vadd.f32 %v835, %v913
          %v915 = vpop.f32.mrf.mxu0
          %916 = vmatprep.mubr.f32.mxu0 0.0
          %917 = vmatmul.mubr.f32.gmra.mxu0 %v841
          %v918 = vpop.f32.mrf.mxu0
          %v919 = vadd.f32 %v835, %v918
          %v920 = vpop.f32.mrf.mxu0
          %921 = vdwg.mxu0
          %vm922 = vcmp.gt.f32.partialorder %v914, 0.0
          %vm923 = vcmp.gt.f32.partialorder %v919, 0.0
          %v924 = vmul.f32 %v914, 0.01
          %v925 = vmul.f32 %v919, 0.01
          %v926 = vsel %vm922, %v914, %v924
          %v927 = vsel %vm923, %v919, %v925
          %v928 = vld [vmem:[%s7] sm:$0xff]
          %v929 = vld [vmem:[%s7 + $0x8] sm:$0xff]
          %v930 = vld [vmem:[%s7 + $0x10] sm:$0xff]
          %v931 = vld [vmem:[%s7 + $0x18] sm:$0xff]
          %v932 = vld [vmem:[%s7 + $0x20] sm:$0xff]
          %v933 = vld [vmem:[%s7 + $0x28] sm:$0xff]
          %v934 = vld [vmem:[%s7 + $0x30] sm:$0xff]
          %v935 = vld [vmem:[%s7 + $0x38] sm:$0xff]
          %v936 = vld [vmem:[%s7 + $0x40] sm:$0xff]
          %v937 = vld [vmem:[%s7 + $0x48] sm:$0xff]
          %v938 = vld [vmem:[%s7 + $0x50] sm:$0xff]
          %v939 = vld [vmem:[%s7 + $0x58] sm:$0xff]
          %v940 = vld [vmem:[%s7 + $0x60] sm:$0xff]
          %v941 = vld [vmem:[%s7 + $0x68] sm:$0xff]
          %v942 = vld [vmem:[%s7 + $0x70] sm:$0xff]
          %v943 = vld [vmem:[%s7 + $0x78] sm:$0xff]
          %v944 = vld [vmem:[%s8] sm:$0x1]
          %v946 = vlaneseq
          %v947 = vshrl.u32 %v946, 7
          %v948 = vsub.s32 0, %v947
          %v949 = vrot.slane %v944, %v948
          %951 = vmatprep.subr.mxu0 0.0
          %952 = vmatpush1.msra.mxu0 %v943
          %953 = vmatprep.subr.mxu0 0.0
          %954 = vmatpush1.msra.mxu0 %v942
          %955 = vmatprep.subr.mxu0 0.0
          %956 = vmatpush1.msra.mxu0 %v941
          %957 = vmatprep.subr.mxu0 0.0
          %958 = vmatpush1.msra.mxu0 %v940
          %959 = vmatprep.subr.mxu0 0.0
          %960 = vmatpush1.msra.mxu0 %v939
          %961 = vmatprep.subr.mxu0 0.0
          %962 = vmatpush1.msra.mxu0 %v938
          %963 = vmatprep.subr.mxu0 0.0
          %964 = vmatpush1.msra.mxu0 %v937
          %965 = vmatprep.subr.mxu0 0.0
          %966 = vmatpush1.msra.mxu0 %v936
          %967 = vmatprep.subr.mxu0 0.0
          %968 = vmatpush1.msra.mxu0 %v935
          %969 = vmatprep.subr.mxu0 0.0
          %970 = vmatpush1.msra.mxu0 %v934
          %971 = vmatprep.subr.mxu0 0.0
          %972 = vmatpush1.msra.mxu0 %v933
          %973 = vmatprep.subr.mxu0 0.0
          %974 = vmatpush1.msra.mxu0 %v932
          %975 = vmatprep.subr.mxu0 0.0
          %976 = vmatpush1.msra.mxu0 %v931
          %977 = vmatprep.subr.mxu0 0.0
          %978 = vmatpush1.msra.mxu0 %v930
          %979 = vmatprep.subr.mxu0 0.0
          %980 = vmatpush1.msra.mxu0 %v929
          %981 = vmatprep.subr.mxu0 0.0
          %982 = vmatpush1.msra.mxu0 %v928
          %983 = vmatprep.subr.mxu0 0.0
          %984 = vmatpush2.msra.mxu0 0.0
          %985 = vmatprep.subr.mxu0 0.0
          %986 = vmatpush2.msra.mxu0 0.0
          %987 = vmatprep.subr.mxu0 0.0
          %988 = vmatpush2.msra.mxu0 0.0
          %989 = vmatprep.subr.mxu0 0.0
          %990 = vmatpush2.msra.mxu0 0.0
          %991 = vmatprep.subr.mxu0 0.0
          %992 = vmatpush2.msra.mxu0 0.0
          %993 = vmatprep.subr.mxu0 0.0
          %994 = vmatpush2.msra.mxu0 0.0
          %995 = vmatprep.subr.mxu0 0.0
          %996 = vmatpush2.msra.mxu0 0.0
          %997 = vmatprep.subr.mxu0 0.0
          %998 = vmatpush2.msra.mxu0 0.0
          %999 = vmatprep.subr.mxu0 0.0
          %1000 = vmatpush2.msra.mxu0 0.0
          %1001 = vmatprep.subr.mxu0 0.0
          %1002 = vmatpush2.msra.mxu0 0.0
          %1003 = vmatprep.subr.mxu0 0.0
          %1004 = vmatpush2.msra.mxu0 0.0
          %1005 = vmatprep.subr.mxu0 0.0
          %1006 = vmatpush2.msra.mxu0 0.0
          %1007 = vmatprep.subr.mxu0 0.0
          %1008 = vmatpush2.msra.mxu0 0.0
          %1009 = vmatprep.subr.mxu0 0.0
          %1010 = vmatpush2.msra.mxu0 0.0
          %1011 = vmatprep.subr.mxu0 0.0
          %1012 = vmatpush2.msra.mxu0 0.0
          %1013 = vmatprep.subr.mxu0 0.0
          %1014 = vmatpush2.msra.mxu0 0.0
          %1015 = vmatprep.mubr.f32.mxu0 0.0
          %1016 = vmatmul.mubr.f32.gmra.mxu0 %v926
          %v1017 = vpop.f32.mrf.mxu0
          %v1018 = vadd.f32 %v949, %v1017
          %v1019 = vpop.f32.mrf.mxu0
          %1020 = vmatprep.mubr.f32.mxu0 0.0
          %1021 = vmatmul.mubr.f32.gmra.mxu0 %v927
          %v1022 = vpop.f32.mrf.mxu0
          %v1023 = vadd.f32 %v949, %v1022
          %v1024 = vpop.f32.mrf.mxu0
          %1025 = vdwg.mxu0
          %vm1026 = vcmp.gt.f32.partialorder %v1018, 0.0
          %vm1027 = vcmp.gt.f32.partialorder %v1023, 0.0
          %v1028 = vmul.f32 %v1018, 0.01
          %v1029 = vmul.f32 %v1023, 0.01
          %v1030 = vsel %vm1026, %v1018, %v1028
          %v1031 = vsel %vm1027, %v1023, %v1029
          %v1032 = vld [vmem:[%s1] sm:$0xff]
          %v1033 = vld [vmem:[%s1 + $0x8] sm:$0xff]
          %v1034 = vld [vmem:[%s1 + $0x10] sm:$0xff]
          %v1035 = vld [vmem:[%s1 + $0x18] sm:$0xff]
          %v1036 = vld [vmem:[%s1 + $0x20] sm:$0xff]
          %v1037 = vld [vmem:[%s1 + $0x28] sm:$0xff]
          %v1038 = vld [vmem:[%s1 + $0x30] sm:$0xff]
          %v1039 = vld [vmem:[%s1 + $0x38] sm:$0xff]
          %v1040 = vld [vmem:[%s2] sm:$0xff]
          %v1041 = vld [vmem:[%s2 + $0x8] sm:$0xff]
          %vm1042 = vcmask 130048
          %v1044 = vsel %vm1042, %v1032, 0
          %v1047 = vsel %vm1042, %v1033, 0
          %v1050 = vsel %vm1042, %v1034, 0
          %v1053 = vsel %vm1042, %v1035, 0
          %v1056 = vsel %vm1042, %v1036, 0
          %v1059 = vsel %vm1042, %v1037, 0
          %v1062 = vsel %vm1042, %v1038, 0
          %v1065 = vsel %vm1042, %v1039, 0
          %1067 = vmatprep.subr.mxu0 0.0
          %1068 = vmatpush1.msra.mxu0 0.0
          %1069 = vmatprep.subr.mxu0 0.0
          %1070 = vmatpush1.msra.mxu0 0.0
          %1071 = vmatprep.subr.mxu0 0.0
          %1072 = vmatpush1.msra.mxu0 0.0
          %1073 = vmatprep.subr.mxu0 0.0
          %1074 = vmatpush1.msra.mxu0 0.0
          %1075 = vmatprep.subr.mxu0 0.0
          %1076 = vmatpush1.msra.mxu0 0.0
          %1077 = vmatprep.subr.mxu0 0.0
          %1078 = vmatpush1.msra.mxu0 0.0
          %1079 = vmatprep.subr.mxu0 0.0
          %1080 = vmatpush1.msra.mxu0 0.0
          %1081 = vmatprep.subr.mxu0 0.0
          %1082 = vmatpush1.msra.mxu0 0.0
          %1083 = vmatprep.subr.mxu0 0.0
          %1084 = vmatpush1.msra.mxu0 0.0
          %1085 = vmatprep.subr.mxu0 0.0
          %1086 = vmatpush1.msra.mxu0 0.0
          %1087 = vmatprep.subr.mxu0 0.0
          %1088 = vmatpush1.msra.mxu0 0.0
          %1089 = vmatprep.subr.mxu0 0.0
          %1090 = vmatpush1.msra.mxu0 0.0
          %1091 = vmatprep.subr.mxu0 0.0
          %1092 = vmatpush1.msra.mxu0 0.0
          %1093 = vmatprep.subr.mxu0 0.0
          %1094 = vmatpush1.msra.mxu0 0.0
          %1095 = vmatprep.subr.mxu0 0.0
          %1096 = vmatpush1.msra.mxu0 %v1031
          %1097 = vmatprep.subr.mxu0 0.0
          %1098 = vmatpush1.msra.mxu0 %v1030
          %1099 = vmatprep.subr.mxu0 0.0
          %1100 = vmatpush2.msra.mxu0 0.0
          %1101 = vmatprep.subr.mxu0 0.0
          %1102 = vmatpush2.msra.mxu0 0.0
          %1103 = vmatprep.subr.mxu0 0.0
          %1104 = vmatpush2.msra.mxu0 0.0
          %1105 = vmatprep.subr.mxu0 0.0
          %1106 = vmatpush2.msra.mxu0 0.0
          %1107 = vmatprep.subr.mxu0 0.0
          %1108 = vmatpush2.msra.mxu0 0.0
          %1109 = vmatprep.subr.mxu0 0.0
          %1110 = vmatpush2.msra.mxu0 0.0
          %1111 = vmatprep.subr.mxu0 0.0
          %1112 = vmatpush2.msra.mxu0 0.0
          %1113 = vmatprep.subr.mxu0 0.0
          %1114 = vmatpush2.msra.mxu0 0.0
          %1115 = vmatprep.subr.mxu0 0.0
          %1116 = vmatpush2.msra.mxu0 0.0
          %1117 = vmatprep.subr.mxu0 0.0
          %1118 = vmatpush2.msra.mxu0 0.0
          %1119 = vmatprep.subr.mxu0 0.0
          %1120 = vmatpush2.msra.mxu0 0.0
          %1121 = vmatprep.subr.mxu0 0.0
          %1122 = vmatpush2.msra.mxu0 0.0
          %1123 = vmatprep.subr.mxu0 0.0
          %1124 = vmatpush2.msra.mxu0 0.0
          %1125 = vmatprep.subr.mxu0 0.0
          %1126 = vmatpush2.msra.mxu0 0.0
          %1127 = vmatprep.subr.mxu0 0.0
          %1128 = vmatpush2.msra.mxu0 0.0
          %1129 = vmatprep.subr.mxu0 0.0
          %1130 = vmatpush2.msra.mxu0 0.0
          %1131 = vmatprep.mubr.f32.mxu0 0.0
          %1132 = vmatmul.mubr.f32.gmra.mxu0 %v1044
          %v1133 = vpop.f32.mrf.mxu0
          %v1134 = vadd.f32 0.0, %v1133
          %v1135 = vpop.f32.mrf.mxu0
          %1136 = vmatprep.mubr.f32.mxu0 0.0
          %1137 = vmatmul.mubr.f32.gmra.mxu0 %v1047
          %v1138 = vpop.f32.mrf.mxu0
          %v1139 = vadd.f32 0.0, %v1138
          %v1140 = vpop.f32.mrf.mxu0
          %1141 = vmatprep.mubr.f32.mxu0 0.0
          %1142 = vmatmul.mubr.f32.gmra.mxu0 %v1050
          %v1143 = vpop.f32.mrf.mxu0
          %v1144 = vadd.f32 0.0, %v1143
          %v1145 = vpop.f32.mrf.mxu0
          %1146 = vmatprep.mubr.f32.mxu0 0.0
          %1147 = vmatmul.mubr.f32.gmra.mxu0 %v1053
          %v1148 = vpop.f32.mrf.mxu0
          %v1149 = vadd.f32 0.0, %v1148
          %v1150 = vpop.f32.mrf.mxu0
          %1151 = vmatprep.mubr.f32.mxu0 0.0
          %1152 = vmatmul.mubr.f32.gmra.mxu0 %v1056
          %v1153 = vpop.f32.mrf.mxu0
          %v1154 = vadd.f32 0.0, %v1153
          %v1155 = vpop.f32.mrf.mxu0
          %1156 = vmatprep.mubr.f32.mxu0 0.0
          %1157 = vmatmul.mubr.f32.gmra.mxu0 %v1059
          %v1158 = vpop.f32.mrf.mxu0
          %v1159 = vadd.f32 0.0, %v1158
          %v1160 = vpop.f32.mrf.mxu0
          %1161 = vmatprep.mubr.f32.mxu0 0.0
          %1162 = vmatmul.mubr.f32.gmra.mxu0 %v1062
          %v1163 = vpop.f32.mrf.mxu0
          %v1164 = vadd.f32 0.0, %v1163
          %v1165 = vpop.f32.mrf.mxu0
          %1166 = vmatprep.mubr.f32.mxu0 0.0
          %1167 = vmatmul.mubr.f32.gmra.mxu0 %v1065
          %v1168 = vpop.f32.mrf.mxu0
          %v1169 = vadd.f32 0.0, %v1168
          %v1170 = vpop.f32.mrf.mxu0
          %1171 = vdwg.mxu0
          %v1172 = vld [vmem:[%s9] sm:$0xff]
          %v1173 = vld [vmem:[%s9 + $0x8] sm:$0xff]
          %v1174 = vld [vmem:[%s9 + $0x10] sm:$0xff]
          %v1175 = vld [vmem:[%s9 + $0x18] sm:$0xff]
          %v1176 = vld [vmem:[%s9 + $0x20] sm:$0xff]
          %v1177 = vld [vmem:[%s9 + $0x28] sm:$0xff]
          %v1178 = vld [vmem:[%s9 + $0x30] sm:$0xff]
          %v1179 = vld [vmem:[%s9 + $0x38] sm:$0xff]
          %v1180 = vld [vmem:[%s9 + $0x40] sm:$0xff]
          %v1181 = vld [vmem:[%s9 + $0x48] sm:$0xff]
          %v1182 = vld [vmem:[%s9 + $0x50] sm:$0xff]
          %v1183 = vld [vmem:[%s9 + $0x58] sm:$0xff]
          %v1184 = vld [vmem:[%s9 + $0x60] sm:$0xff]
          %v1185 = vld [vmem:[%s9 + $0x68] sm:$0xff]
          %v1186 = vld [vmem:[%s9 + $0x70] sm:$0xff]
          %v1187 = vld [vmem:[%s9 + $0x78] sm:$0xff]
          %v1188 = vld [vmem:[%s9 + $0x80] sm:$0xff]
          %v1189 = vld [vmem:[%s9 + $0x88] sm:$0xff]
          %v1190 = vld [vmem:[%s9 + $0x90] sm:$0xff]
          %v1191 = vld [vmem:[%s9 + $0x98] sm:$0xff]
          %v1192 = vld [vmem:[%s9 + $0xa0] sm:$0xff]
          %v1193 = vld [vmem:[%s9 + $0xa8] sm:$0xff]
          %v1194 = vld [vmem:[%s9 + $0xb0] sm:$0xff]
          %v1195 = vld [vmem:[%s9 + $0xb8] sm:$0xff]
          %v1196 = vld [vmem:[%s9 + $0xc0] sm:$0xff]
          %v1197 = vld [vmem:[%s9 + $0xc8] sm:$0xff]
          %v1198 = vld [vmem:[%s9 + $0xd0] sm:$0xff]
          %v1199 = vld [vmem:[%s9 + $0xd8] sm:$0xff]
          %v1200 = vld [vmem:[%s9 + $0xe0] sm:$0xff]
          %v1201 = vld [vmem:[%s9 + $0xe8] sm:$0xff]
          %v1202 = vld [vmem:[%s9 + $0xf0] sm:$0xff]
          %v1203 = vld [vmem:[%s9 + $0xf8] sm:$0xff]
          %v1204 = vld [vmem:[%s9 + $0x100] sm:$0xff]
          %v1205 = vld [vmem:[%s9 + $0x108] sm:$0xff]
          %v1206 = vld [vmem:[%s9 + $0x110] sm:$0xff]
          %v1207 = vld [vmem:[%s9 + $0x118] sm:$0xff]
          %v1208 = vld [vmem:[%s9 + $0x120] sm:$0xff]
          %v1209 = vld [vmem:[%s9 + $0x128] sm:$0xff]
          %v1210 = vld [vmem:[%s9 + $0x130] sm:$0xff]
          %v1211 = vld [vmem:[%s9 + $0x138] sm:$0xff]
          %v1212 = vld [vmem:[%s9 + $0x140] sm:$0xff]
          %v1213 = vld [vmem:[%s9 + $0x148] sm:$0xff]
          %v1214 = vld [vmem:[%s9 + $0x150] sm:$0xff]
          %v1215 = vld [vmem:[%s9 + $0x158] sm:$0xff]
          %v1216 = vld [vmem:[%s9 + $0x160] sm:$0xff]
          %v1217 = vld [vmem:[%s9 + $0x168] sm:$0xff]
          %v1218 = vld [vmem:[%s9 + $0x170] sm:$0xff]
          %v1219 = vld [vmem:[%s9 + $0x178] sm:$0xff]
          %v1220 = vld [vmem:[%s9 + $0x180] sm:$0xff]
          %v1221 = vld [vmem:[%s9 + $0x188] sm:$0xff]
          %v1222 = vld [vmem:[%s9 + $0x190] sm:$0xff]
          %v1223 = vld [vmem:[%s9 + $0x198] sm:$0xff]
          %v1224 = vld [vmem:[%s9 + $0x1a0] sm:$0xff]
          %v1225 = vld [vmem:[%s9 + $0x1a8] sm:$0xff]
          %v1226 = vld [vmem:[%s9 + $0x1b0] sm:$0xff]
          %v1227 = vld [vmem:[%s9 + $0x1b8] sm:$0xff]
          %v1228 = vld [vmem:[%s9 + $0x1c0] sm:$0xff]
          %v1229 = vld [vmem:[%s9 + $0x1c8] sm:$0xff]
          %v1230 = vld [vmem:[%s9 + $0x1d0] sm:$0xff]
          %v1231 = vld [vmem:[%s9 + $0x1d8] sm:$0xff]
          %v1232 = vld [vmem:[%s9 + $0x1e0] sm:$0xff]
          %v1233 = vld [vmem:[%s9 + $0x1e8] sm:$0xff]
          %v1234 = vld [vmem:[%s9 + $0x1f0] sm:$0xff]
          %v1235 = vld [vmem:[%s9 + $0x1f8] sm:$0xff]
          %v1236 = vld [vmem:[%s10] sm:$0x3]
          %v1238 = vlaneseq
          %v1239 = vshrl.u32 %v1238, 7
          %v1240 = vsub.s32 0, %v1239
          %v1241 = vrot.slane %v1236, %v1240
          %v1242 = vlaneseq
          %v1243 = vshrl.u32 %v1242, 7
          %v1244 = vsub.s32 1, %v1243
          %v1245 = vrot.slane %v1236, %v1244
          %1248 = vmatprep.subr.mxu0 %v1203
          %1249 = vmatpush1.msra.mxu0 %v1202
          %1250 = vmatprep.subr.mxu0 %v1201
          %1251 = vmatpush1.msra.mxu0 %v1200
          %1252 = vmatprep.subr.mxu0 %v1199
          %1253 = vmatpush1.msra.mxu0 %v1198
          %1254 = vmatprep.subr.mxu0 %v1197
          %1255 = vmatpush1.msra.mxu0 %v1196
          %1256 = vmatprep.subr.mxu0 %v1195
          %1257 = vmatpush1.msra.mxu0 %v1194
          %1258 = vmatprep.subr.mxu0 %v1193
          %1259 = vmatpush1.msra.mxu0 %v1192
          %1260 = vmatprep.subr.mxu0 %v1191
          %1261 = vmatpush1.msra.mxu0 %v1190
          %1262 = vmatprep.subr.mxu0 %v1189
          %1263 = vmatpush1.msra.mxu0 %v1188
          %1264 = vmatprep.subr.mxu0 %v1187
          %1265 = vmatpush1.msra.mxu0 %v1186
          %1266 = vmatprep.subr.mxu0 %v1185
          %1267 = vmatpush1.msra.mxu0 %v1184
          %1268 = vmatprep.subr.mxu0 %v1183
          %1269 = vmatpush1.msra.mxu0 %v1182
          %1270 = vmatprep.subr.mxu0 %v1181
          %1271 = vmatpush1.msra.mxu0 %v1180
          %1272 = vmatprep.subr.mxu0 %v1179
          %1273 = vmatpush1.msra.mxu0 %v1178
          %1274 = vmatprep.subr.mxu0 %v1177
          %1275 = vmatpush1.msra.mxu0 %v1176
          %1276 = vmatprep.subr.mxu0 %v1175
          %1277 = vmatpush1.msra.mxu0 %v1174
          %1278 = vmatprep.subr.mxu0 %v1173
          %1279 = vmatpush1.msra.mxu0 %v1172
          %1280 = vmatprep.subr.mxu0 %v1235
          %1281 = vmatpush2.msra.mxu0 %v1234
          %1282 = vmatprep.subr.mxu0 %v1233
          %1283 = vmatpush2.msra.mxu0 %v1232
          %1284 = vmatprep.subr.mxu0 %v1231
          %1285 = vmatpush2.msra.mxu0 %v1230
          %1286 = vmatprep.subr.mxu0 %v1229
          %1287 = vmatpush2.msra.mxu0 %v1228
          %1288 = vmatprep.subr.mxu0 %v1227
          %1289 = vmatpush2.msra.mxu0 %v1226
          %1290 = vmatprep.subr.mxu0 %v1225
          %1291 = vmatpush2.msra.mxu0 %v1224
          %1292 = vmatprep.subr.mxu0 %v1223
          %1293 = vmatpush2.msra.mxu0 %v1222
          %1294 = vmatprep.subr.mxu0 %v1221
          %1295 = vmatpush2.msra.mxu0 %v1220
          %1296 = vmatprep.subr.mxu0 %v1219
          %1297 = vmatpush2.msra.mxu0 %v1218
          %1298 = vmatprep.subr.mxu0 %v1217
          %1299 = vmatpush2.msra.mxu0 %v1216
          %1300 = vmatprep.subr.mxu0 %v1215
          %1301 = vmatpush2.msra.mxu0 %v1214
          %1302 = vmatprep.subr.mxu0 %v1213
          %1303 = vmatpush2.msra.mxu0 %v1212
          %1304 = vmatprep.subr.mxu0 %v1211
          %1305 = vmatpush2.msra.mxu0 %v1210
          %1306 = vmatprep.subr.mxu0 %v1209
          %1307 = vmatpush2.msra.mxu0 %v1208
          %1308 = vmatprep.subr.mxu0 %v1207
          %1309 = vmatpush2.msra.mxu0 %v1206
          %1310 = vmatprep.subr.mxu0 %v1205
          %1311 = vmatpush2.msra.mxu0 %v1204
          %1312 = vmatprep.mubr.f32.mxu0 %v1154
          %1313 = vmatmul.mubr.f32.gmra.mxu0 %v1134
          %v1314 = vpop.f32.mrf.mxu0
          %v1315 = vadd.f32 %v1241, %v1314
          %v1316 = vpop.f32.mrf.mxu0
          %v1317 = vadd.f32 %v1245, %v1316
          %1318 = vmatprep.mubr.f32.mxu0 %v1159
          %1319 = vmatmul.mubr.f32.gmra.mxu0 %v1139
          %v1320 = vpop.f32.mrf.mxu0
          %v1321 = vadd.f32 %v1241, %v1320
          %v1322 = vpop.f32.mrf.mxu0
          %v1323 = vadd.f32 %v1245, %v1322
          %1324 = vmatprep.mubr.f32.mxu0 %v1164
          %1325 = vmatmul.mubr.f32.gmra.mxu0 %v1144
          %v1326 = vpop.f32.mrf.mxu0
          %v1327 = vadd.f32 %v1241, %v1326
          %v1328 = vpop.f32.mrf.mxu0
          %v1329 = vadd.f32 %v1245, %v1328
          %1330 = vmatprep.mubr.f32.mxu0 %v1169
          %1331 = vmatmul.mubr.f32.gmra.mxu0 %v1149
          %v1332 = vpop.f32.mrf.mxu0
          %v1333 = vadd.f32 %v1241, %v1332
          %v1334 = vpop.f32.mrf.mxu0
          %v1335 = vadd.f32 %v1245, %v1334
          %1336 = vdwg.mxu0
          %v1337 = vmax.f32 %v1315, 0.0
          %v1338 = vmax.f32 %v1317, 0.0
          %v1339 = vmax.f32 %v1321, 0.0
          %v1340 = vmax.f32 %v1323, 0.0
          %v1341 = vmax.f32 %v1327, 0.0
          %v1342 = vmax.f32 %v1329, 0.0
          %v1343 = vmax.f32 %v1333, 0.0
          %v1344 = vmax.f32 %v1335, 0.0
          %v1345 = vld [vmem:[%s11] sm:$0xff]
          %v1346 = vld [vmem:[%s11 + $0x8] sm:$0xff]
          %v1347 = vld [vmem:[%s11 + $0x10] sm:$0xff]
          %v1348 = vld [vmem:[%s11 + $0x18] sm:$0xff]
          %v1349 = vld [vmem:[%s11 + $0x20] sm:$0xff]
          %v1350 = vld [vmem:[%s11 + $0x28] sm:$0xff]
          %v1351 = vld [vmem:[%s11 + $0x30] sm:$0xff]
          %v1352 = vld [vmem:[%s11 + $0x38] sm:$0xff]
          %v1353 = vld [vmem:[%s11 + $0x40] sm:$0xff]
          %v1354 = vld [vmem:[%s11 + $0x48] sm:$0xff]
          %v1355 = vld [vmem:[%s11 + $0x50] sm:$0xff]
          %v1356 = vld [vmem:[%s11 + $0x58] sm:$0xff]
          %v1357 = vld [vmem:[%s11 + $0x60] sm:$0xff]
          %v1358 = vld [vmem:[%s11 + $0x68] sm:$0xff]
          %v1359 = vld [vmem:[%s11 + $0x70] sm:$0xff]
          %v1360 = vld [vmem:[%s11 + $0x78] sm:$0xff]
          %v1361 = vld [vmem:[%s11 + $0x80] sm:$0xff]
          %v1362 = vld [vmem:[%s11 + $0x88] sm:$0xff]
          %v1363 = vld [vmem:[%s11 + $0x90] sm:$0xff]
          %v1364 = vld [vmem:[%s11 + $0x98] sm:$0xff]
          %v1365 = vld [vmem:[%s11 + $0xa0] sm:$0xff]
          %v1366 = vld [vmem:[%s11 + $0xa8] sm:$0xff]
          %v1367 = vld [vmem:[%s11 + $0xb0] sm:$0xff]
          %v1368 = vld [vmem:[%s11 + $0xb8] sm:$0xff]
          %v1369 = vld [vmem:[%s11 + $0xc0] sm:$0xff]
          %v1370 = vld [vmem:[%s11 + $0xc8] sm:$0xff]
          %v1371 = vld [vmem:[%s11 + $0xd0] sm:$0xff]
          %v1372 = vld [vmem:[%s11 + $0xd8] sm:$0xff]
          %v1373 = vld [vmem:[%s11 + $0xe0] sm:$0xff]
          %v1374 = vld [vmem:[%s11 + $0xe8] sm:$0xff]
          %v1375 = vld [vmem:[%s11 + $0xf0] sm:$0xff]
          %v1376 = vld [vmem:[%s11 + $0xf8] sm:$0xff]
          %v1377 = vld [vmem:[%s12] sm:$0x1]
          %v1379 = vlaneseq
          %v1380 = vshrl.u32 %v1379, 7
          %v1381 = vsub.s32 0, %v1380
          %v1382 = vrot.slane %v1377, %v1381
          %1384 = vmatprep.subr.mxu0 0.0
          %1385 = vmatpush1.msra.mxu0 %v1360
          %1386 = vmatprep.subr.mxu0 0.0
          %1387 = vmatpush1.msra.mxu0 %v1359
          %1388 = vmatprep.subr.mxu0 0.0
          %1389 = vmatpush1.msra.mxu0 %v1358
          %1390 = vmatprep.subr.mxu0 0.0
          %1391 = vmatpush1.msra.mxu0 %v1357
          %1392 = vmatprep.subr.mxu0 0.0
          %1393 = vmatpush1.msra.mxu0 %v1356
          %1394 = vmatprep.subr.mxu0 0.0
          %1395 = vmatpush1.msra.mxu0 %v1355
          %1396 = vmatprep.subr.mxu0 0.0
          %1397 = vmatpush1.msra.mxu0 %v1354
          %1398 = vmatprep.subr.mxu0 0.0
          %1399 = vmatpush1.msra.mxu0 %v1353
          %1400 = vmatprep.subr.mxu0 0.0
          %1401 = vmatpush1.msra.mxu0 %v1352
          %1402 = vmatprep.subr.mxu0 0.0
          %1403 = vmatpush1.msra.mxu0 %v1351
          %1404 = vmatprep.subr.mxu0 0.0
          %1405 = vmatpush1.msra.mxu0 %v1350
          %1406 = vmatprep.subr.mxu0 0.0
          %1407 = vmatpush1.msra.mxu0 %v1349
          %1408 = vmatprep.subr.mxu0 0.0
          %1409 = vmatpush1.msra.mxu0 %v1348
          %1410 = vmatprep.subr.mxu0 0.0
          %1411 = vmatpush1.msra.mxu0 %v1347
          %1412 = vmatprep.subr.mxu0 0.0
          %1413 = vmatpush1.msra.mxu0 %v1346
          %1414 = vmatprep.subr.mxu0 0.0
          %1415 = vmatpush1.msra.mxu0 %v1345
          %1416 = vmatprep.subr.mxu0 0.0
          %1417 = vmatpush2.msra.mxu0 %v1376
          %1418 = vmatprep.subr.mxu0 0.0
          %1419 = vmatpush2.msra.mxu0 %v1375
          %1420 = vmatprep.subr.mxu0 0.0
          %1421 = vmatpush2.msra.mxu0 %v1374
          %1422 = vmatprep.subr.mxu0 0.0
          %1423 = vmatpush2.msra.mxu0 %v1373
          %1424 = vmatprep.subr.mxu0 0.0
          %1425 = vmatpush2.msra.mxu0 %v1372
          %1426 = vmatprep.subr.mxu0 0.0
          %1427 = vmatpush2.msra.mxu0 %v1371
          %1428 = vmatprep.subr.mxu0 0.0
          %1429 = vmatpush2.msra.mxu0 %v1370
          %1430 = vmatprep.subr.mxu0 0.0
          %1431 = vmatpush2.msra.mxu0 %v1369
          %1432 = vmatprep.subr.mxu0 0.0
          %1433 = vmatpush2.msra.mxu0 %v1368
          %1434 = vmatprep.subr.mxu0 0.0
          %1435 = vmatpush2.msra.mxu0 %v1367
          %1436 = vmatprep.subr.mxu0 0.0
          %1437 = vmatpush2.msra.mxu0 %v1366
          %1438 = vmatprep.subr.mxu0 0.0
          %1439 = vmatpush2.msra.mxu0 %v1365
          %1440 = vmatprep.subr.mxu0 0.0
          %1441 = vmatpush2.msra.mxu0 %v1364
          %1442 = vmatprep.subr.mxu0 0.0
          %1443 = vmatpush2.msra.mxu0 %v1363
          %1444 = vmatprep.subr.mxu0 0.0
          %1445 = vmatpush2.msra.mxu0 %v1362
          %1446 = vmatprep.subr.mxu0 0.0
          %1447 = vmatpush2.msra.mxu0 %v1361
          %1448 = vmatprep.mubr.f32.mxu0 %v1338
          %1449 = vmatmul.mubr.f32.gmra.mxu0 %v1337
          %v1450 = vpop.f32.mrf.mxu0
          %v1451 = vadd.f32 %v1382, %v1450
          %v1452 = vpop.f32.mrf.mxu0
          %1453 = vmatprep.mubr.f32.mxu0 %v1340
          %1454 = vmatmul.mubr.f32.gmra.mxu0 %v1339
          %v1455 = vpop.f32.mrf.mxu0
          %v1456 = vadd.f32 %v1382, %v1455
          %v1457 = vpop.f32.mrf.mxu0
          %1458 = vmatprep.mubr.f32.mxu0 %v1342
          %1459 = vmatmul.mubr.f32.gmra.mxu0 %v1341
          %v1460 = vpop.f32.mrf.mxu0
          %v1461 = vadd.f32 %v1382, %v1460
          %v1462 = vpop.f32.mrf.mxu0
          %1463 = vmatprep.mubr.f32.mxu0 %v1344
          %1464 = vmatmul.mubr.f32.gmra.mxu0 %v1343
          %v1465 = vpop.f32.mrf.mxu0
          %v1466 = vadd.f32 %v1382, %v1465
          %v1467 = vpop.f32.mrf.mxu0
          %1468 = vdwg.mxu0
          %v1469 = vmax.f32 %v1451, 0.0
          %v1470 = vmax.f32 %v1456, 0.0
          %v1471 = vmax.f32 %v1461, 0.0
          %v1472 = vmax.f32 %v1466, 0.0
          %vm1473 = vcmask 261120
          %v1475 = vsel %vm1473, %v1040, 0
          %v1478 = vsel %vm1473, %v1041, 0
          %1480 = vmatprep.subr.mxu0 0.0
          %1481 = vmatpush1.msra.mxu0 0.0
          %1482 = vmatprep.subr.mxu0 0.0
          %1483 = vmatpush1.msra.mxu0 0.0
          %1484 = vmatprep.subr.mxu0 0.0
          %1485 = vmatpush1.msra.mxu0 0.0
          %1486 = vmatprep.subr.mxu0 0.0
          %1487 = vmatpush1.msra.mxu0 0.0
          %1488 = vmatprep.subr.mxu0 0.0
          %1489 = vmatpush1.msra.mxu0 0.0
          %1490 = vmatprep.subr.mxu0 0.0
          %1491 = vmatpush1.msra.mxu0 0.0
          %1492 = vmatprep.subr.mxu0 0.0
          %1493 = vmatpush1.msra.mxu0 0.0
          %1494 = vmatprep.subr.mxu0 0.0
          %1495 = vmatpush1.msra.mxu0 0.0
          %1496 = vmatprep.subr.mxu0 0.0
          %1497 = vmatpush1.msra.mxu0 0.0
          %1498 = vmatprep.subr.mxu0 0.0
          %1499 = vmatpush1.msra.mxu0 0.0
          %1500 = vmatprep.subr.mxu0 0.0
          %1501 = vmatpush1.msra.mxu0 0.0
          %1502 = vmatprep.subr.mxu0 0.0
          %1503 = vmatpush1.msra.mxu0 0.0
          %1504 = vmatprep.subr.mxu0 0.0
          %1505 = vmatpush1.msra.mxu0 %v1472
          %1506 = vmatprep.subr.mxu0 0.0
          %1507 = vmatpush1.msra.mxu0 %v1471
          %1508 = vmatprep.subr.mxu0 0.0
          %1509 = vmatpush1.msra.mxu0 %v1470
          %1510 = vmatprep.subr.mxu0 0.0
          %1511 = vmatpush1.msra.mxu0 %v1469
          %1512 = vmatprep.subr.mxu0 0.0
          %1513 = vmatpush2.msra.mxu0 0.0
          %1514 = vmatprep.subr.mxu0 0.0
          %1515 = vmatpush2.msra.mxu0 0.0
          %1516 = vmatprep.subr.mxu0 0.0
          %1517 = vmatpush2.msra.mxu0 0.0
          %1518 = vmatprep.subr.mxu0 0.0
          %1519 = vmatpush2.msra.mxu0 0.0
          %1520 = vmatprep.subr.mxu0 0.0
          %1521 = vmatpush2.msra.mxu0 0.0
          %1522 = vmatprep.subr.mxu0 0.0
          %1523 = vmatpush2.msra.mxu0 0.0
          %1524 = vmatprep.subr.mxu0 0.0
          %1525 = vmatpush2.msra.mxu0 0.0
          %1526 = vmatprep.subr.mxu0 0.0
          %1527 = vmatpush2.msra.mxu0 0.0
          %1528 = vmatprep.subr.mxu0 0.0
          %1529 = vmatpush2.msra.mxu0 0.0
          %1530 = vmatprep.subr.mxu0 0.0
          %1531 = vmatpush2.msra.mxu0 0.0
          %1532 = vmatprep.subr.mxu0 0.0
          %1533 = vmatpush2.msra.mxu0 0.0
          %1534 = vmatprep.subr.mxu0 0.0
          %1535 = vmatpush2.msra.mxu0 0.0
          %1536 = vmatprep.subr.mxu0 0.0
          %1537 = vmatpush2.msra.mxu0 0.0
          %1538 = vmatprep.subr.mxu0 0.0
          %1539 = vmatpush2.msra.mxu0 0.0
          %1540 = vmatprep.subr.mxu0 0.0
          %1541 = vmatpush2.msra.mxu0 0.0
          %1542 = vmatprep.subr.mxu0 0.0
          %1543 = vmatpush2.msra.mxu0 0.0
          %1544 = vmatprep.mubr.f32.mxu0 0.0
          %1545 = vmatmul.mubr.f32.gmra.mxu0 %v1475
          %v1546 = vpop.f32.mrf.mxu0
          %v1547 = vadd.f32 0.0, %v1546
          %v1548 = vpop.f32.mrf.mxu0
          %1549 = vmatprep.mubr.f32.mxu0 0.0
          %1550 = vmatmul.mubr.f32.gmra.mxu0 %v1478
          %v1551 = vpop.f32.mrf.mxu0
          %v1552 = vadd.f32 0.0, %v1551
          %v1553 = vpop.f32.mrf.mxu0
          %1554 = vdwg.mxu0
          %v1555 = vadd.f32 %v1030, %v1547
          %v1556 = vadd.f32 %v1031, %v1552
          %v1557 = vmax.f32 %v1555, 0.0
          %v1558 = vmax.f32 %v1556, 0.0
          %1559 = vmatprep.subr.mxu0 0.0
          %1560 = vmatpush1.msra.mxu0 0.0
          %1561 = vmatprep.subr.mxu0 0.0
          %1562 = vmatpush1.msra.mxu0 0.0
          %1563 = vmatprep.subr.mxu0 0.0
          %1564 = vmatpush1.msra.mxu0 0.0
          %1565 = vmatprep.subr.mxu0 0.0
          %1566 = vmatpush1.msra.mxu0 0.0
          %1567 = vmatprep.subr.mxu0 0.0
          %1568 = vmatpush1.msra.mxu0 0.0
          %1569 = vmatprep.subr.mxu0 0.0
          %1570 = vmatpush1.msra.mxu0 0.0
          %1571 = vmatprep.subr.mxu0 0.0
          %1572 = vmatpush1.msra.mxu0 0.0
          %1573 = vmatprep.subr.mxu0 0.0
          %1574 = vmatpush1.msra.mxu0 0.0
          %1575 = vmatprep.subr.mxu0 0.0
          %1576 = vmatpush1.msra.mxu0 0.0
          %1577 = vmatprep.subr.mxu0 0.0
          %1578 = vmatpush1.msra.mxu0 0.0
          %1579 = vmatprep.subr.mxu0 0.0
          %1580 = vmatpush1.msra.mxu0 0.0
          %1581 = vmatprep.subr.mxu0 0.0
          %1582 = vmatpush1.msra.mxu0 0.0
          %1583 = vmatprep.subr.mxu0 0.0
          %1584 = vmatpush1.msra.mxu0 0.0
          %1585 = vmatprep.subr.mxu0 0.0
          %1586 = vmatpush1.msra.mxu0 0.0
          %1587 = vmatprep.subr.mxu0 0.0
          %1588 = vmatpush1.msra.mxu0 %v1558
          %1589 = vmatprep.subr.mxu0 0.0
          %1590 = vmatpush1.msra.mxu0 %v1557
          %1591 = vmatprep.subr.mxu0 0.0
          %1592 = vmatpush2.msra.mxu0 0.0
          %1593 = vmatprep.subr.mxu0 0.0
          %1594 = vmatpush2.msra.mxu0 0.0
          %1595 = vmatprep.subr.mxu0 0.0
          %1596 = vmatpush2.msra.mxu0 0.0
          %1597 = vmatprep.subr.mxu0 0.0
          %1598 = vmatpush2.msra.mxu0 0.0
          %1599 = vmatprep.subr.mxu0 0.0
          %1600 = vmatpush2.msra.mxu0 0.0
          %1601 = vmatprep.subr.mxu0 0.0
          %1602 = vmatpush2.msra.mxu0 0.0
          %1603 = vmatprep.subr.mxu0 0.0
          %1604 = vmatpush2.msra.mxu0 0.0
          %1605 = vmatprep.subr.mxu0 0.0
          %1606 = vmatpush2.msra.mxu0 0.0
          %1607 = vmatprep.subr.mxu0 0.0
          %1608 = vmatpush2.msra.mxu0 0.0
          %1609 = vmatprep.subr.mxu0 0.0
          %1610 = vmatpush2.msra.mxu0 0.0
          %1611 = vmatprep.subr.mxu0 0.0
          %1612 = vmatpush2.msra.mxu0 0.0
          %1613 = vmatprep.subr.mxu0 0.0
          %1614 = vmatpush2.msra.mxu0 0.0
          %1615 = vmatprep.subr.mxu0 0.0
          %1616 = vmatpush2.msra.mxu0 0.0
          %1617 = vmatprep.subr.mxu0 0.0
          %1618 = vmatpush2.msra.mxu0 0.0
          %1619 = vmatprep.subr.mxu0 0.0
          %1620 = vmatpush2.msra.mxu0 0.0
          %1621 = vmatprep.subr.mxu0 0.0
          %1622 = vmatpush2.msra.mxu0 0.0
          %1623 = vmatprep.mubr.f32.mxu0 0.0
          %1624 = vmatmul.mubr.f32.gmra.mxu0 %v1044
          %v1625 = vpop.f32.mrf.mxu0
          %v1626 = vadd.f32 0.0, %v1625
          %v1627 = vpop.f32.mrf.mxu0
          %1628 = vmatprep.mubr.f32.mxu0 0.0
          %1629 = vmatmul.mubr.f32.gmra.mxu0 %v1047
          %v1630 = vpop.f32.mrf.mxu0
          %v1631 = vadd.f32 0.0, %v1630
          %v1632 = vpop.f32.mrf.mxu0
          %1633 = vmatprep.mubr.f32.mxu0 0.0
          %1634 = vmatmul.mubr.f32.gmra.mxu0 %v1050
          %v1635 = vpop.f32.mrf.mxu0
          %v1636 = vadd.f32 0.0, %v1635
          %v1637 = vpop.f32.mrf.mxu0
          %1638 = vmatprep.mubr.f32.mxu0 0.0
          %1639 = vmatmul.mubr.f32.gmra.mxu0 %v1053
          %v1640 = vpop.f32.mrf.mxu0
          %v1641 = vadd.f32 0.0, %v1640
          %v1642 = vpop.f32.mrf.mxu0
          %1643 = vmatprep.mubr.f32.mxu0 0.0
          %1644 = vmatmul.mubr.f32.gmra.mxu0 %v1056
          %v1645 = vpop.f32.mrf.mxu0
          %v1646 = vadd.f32 0.0, %v1645
          %v1647 = vpop.f32.mrf.mxu0
          %1648 = vmatprep.mubr.f32.mxu0 0.0
          %1649 = vmatmul.mubr.f32.gmra.mxu0 %v1059
          %v1650 = vpop.f32.mrf.mxu0
          %v1651 = vadd.f32 0.0, %v1650
          %v1652 = vpop.f32.mrf.mxu0
          %1653 = vmatprep.mubr.f32.mxu0 0.0
          %1654 = vmatmul.mubr.f32.gmra.mxu0 %v1062
          %v1655 = vpop.f32.mrf.mxu0
          %v1656 = vadd.f32 0.0, %v1655
          %v1657 = vpop.f32.mrf.mxu0
          %1658 = vmatprep.mubr.f32.mxu0 0.0
          %1659 = vmatmul.mubr.f32.gmra.mxu0 %v1065
          %v1660 = vpop.f32.mrf.mxu0
          %v1661 = vadd.f32 0.0, %v1660
          %v1662 = vpop.f32.mrf.mxu0
          %1663 = vdwg.mxu0
          %s1664 = scalar_lea.vmem %s9, 512
          %v1665 = vld [vmem:[%s1664] sm:$0xff]
          %v1666 = vld [vmem:[%s1664 + $0x8] sm:$0xff]
          %v1667 = vld [vmem:[%s1664 + $0x10] sm:$0xff]
          %v1668 = vld [vmem:[%s1664 + $0x18] sm:$0xff]
          %v1669 = vld [vmem:[%s1664 + $0x20] sm:$0xff]
          %v1670 = vld [vmem:[%s1664 + $0x28] sm:$0xff]
          %v1671 = vld [vmem:[%s1664 + $0x30] sm:$0xff]
          %v1672 = vld [vmem:[%s1664 + $0x38] sm:$0xff]
          %v1673 = vld [vmem:[%s1664 + $0x40] sm:$0xff]
          %v1674 = vld [vmem:[%s1664 + $0x48] sm:$0xff]
          %v1675 = vld [vmem:[%s1664 + $0x50] sm:$0xff]
          %v1676 = vld [vmem:[%s1664 + $0x58] sm:$0xff]
          %v1677 = vld [vmem:[%s1664 + $0x60] sm:$0xff]
          %v1678 = vld [vmem:[%s1664 + $0x68] sm:$0xff]
          %v1679 = vld [vmem:[%s1664 + $0x70] sm:$0xff]
          %v1680 = vld [vmem:[%s1664 + $0x78] sm:$0xff]
          %v1681 = vld [vmem:[%s1664 + $0x80] sm:$0xff]
          %v1682 = vld [vmem:[%s1664 + $0x88] sm:$0xff]
          %v1683 = vld [vmem:[%s1664 + $0x90] sm:$0xff]
          %v1684 = vld [vmem:[%s1664 + $0x98] sm:$0xff]
          %v1685 = vld [vmem:[%s1664 + $0xa0] sm:$0xff]
          %v1686 = vld [vmem:[%s1664 + $0xa8] sm:$0xff]
          %v1687 = vld [vmem:[%s1664 + $0xb0] sm:$0xff]
          %v1688 = vld [vmem:[%s1664 + $0xb8] sm:$0xff]
          %v1689 = vld [vmem:[%s1664 + $0xc0] sm:$0xff]
          %v1690 = vld [vmem:[%s1664 + $0xc8] sm:$0xff]
          %v1691 = vld [vmem:[%s1664 + $0xd0] sm:$0xff]
          %v1692 = vld [vmem:[%s1664 + $0xd8] sm:$0xff]
          %v1693 = vld [vmem:[%s1664 + $0xe0] sm:$0xff]
          %v1694 = vld [vmem:[%s1664 + $0xe8] sm:$0xff]
          %v1695 = vld [vmem:[%s1664 + $0xf0] sm:$0xff]
          %v1696 = vld [vmem:[%s1664 + $0xf8] sm:$0xff]
          %v1697 = vld [vmem:[%s1664 + $0x100] sm:$0xff]
          %v1698 = vld [vmem:[%s1664 + $0x108] sm:$0xff]
          %v1699 = vld [vmem:[%s1664 + $0x110] sm:$0xff]
          %v1700 = vld [vmem:[%s1664 + $0x118] sm:$0xff]
          %v1701 = vld [vmem:[%s1664 + $0x120] sm:$0xff]
          %v1702 = vld [vmem:[%s1664 + $0x128] sm:$0xff]
          %v1703 = vld [vmem:[%s1664 + $0x130] sm:$0xff]
          %v1704 = vld [vmem:[%s1664 + $0x138] sm:$0xff]
          %v1705 = vld [vmem:[%s1664 + $0x140] sm:$0xff]
          %v1706 = vld [vmem:[%s1664 + $0x148] sm:$0xff]
          %v1707 = vld [vmem:[%s1664 + $0x150] sm:$0xff]
          %v1708 = vld [vmem:[%s1664 + $0x158] sm:$0xff]
          %v1709 = vld [vmem:[%s1664 + $0x160] sm:$0xff]
          %v1710 = vld [vmem:[%s1664 + $0x168] sm:$0xff]
          %v1711 = vld [vmem:[%s1664 + $0x170] sm:$0xff]
          %v1712 = vld [vmem:[%s1664 + $0x178] sm:$0xff]
          %v1713 = vld [vmem:[%s1664 + $0x180] sm:$0xff]
          %v1714 = vld [vmem:[%s1664 + $0x188] sm:$0xff]
          %v1715 = vld [vmem:[%s1664 + $0x190] sm:$0xff]
          %v1716 = vld [vmem:[%s1664 + $0x198] sm:$0xff]
          %v1717 = vld [vmem:[%s1664 + $0x1a0] sm:$0xff]
          %v1718 = vld [vmem:[%s1664 + $0x1a8] sm:$0xff]
          %v1719 = vld [vmem:[%s1664 + $0x1b0] sm:$0xff]
          %v1720 = vld [vmem:[%s1664 + $0x1b8] sm:$0xff]
          %v1721 = vld [vmem:[%s1664 + $0x1c0] sm:$0xff]
          %v1722 = vld [vmem:[%s1664 + $0x1c8] sm:$0xff]
          %v1723 = vld [vmem:[%s1664 + $0x1d0] sm:$0xff]
          %v1724 = vld [vmem:[%s1664 + $0x1d8] sm:$0xff]
          %v1725 = vld [vmem:[%s1664 + $0x1e0] sm:$0xff]
          %v1726 = vld [vmem:[%s1664 + $0x1e8] sm:$0xff]
          %v1727 = vld [vmem:[%s1664 + $0x1f0] sm:$0xff]
          %v1728 = vld [vmem:[%s1664 + $0x1f8] sm:$0xff]
          %s1729 = scalar_lea.vmem %s10, 2
          %v1730 = vld [vmem:[%s1729] sm:$0x3]
          %v1732 = vlaneseq
          %v1733 = vshrl.u32 %v1732, 7
          %v1734 = vsub.s32 0, %v1733
          %v1735 = vrot.slane %v1730, %v1734
          %v1736 = vlaneseq
          %v1737 = vshrl.u32 %v1736, 7
          %v1738 = vsub.s32 1, %v1737
          %v1739 = vrot.slane %v1730, %v1738
          %1742 = vmatprep.subr.mxu0 %v1696
          %1743 = vmatpush1.msra.mxu0 %v1695
          %1744 = vmatprep.subr.mxu0 %v1694
          %1745 = vmatpush1.msra.mxu0 %v1693
          %1746 = vmatprep.subr.mxu0 %v1692
          %1747 = vmatpush1.msra.mxu0 %v1691
          %1748 = vmatprep.subr.mxu0 %v1690
          %1749 = vmatpush1.msra.mxu0 %v1689
          %1750 = vmatprep.subr.mxu0 %v1688
          %1751 = vmatpush1.msra.mxu0 %v1687
          %1752 = vmatprep.subr.mxu0 %v1686
          %1753 = vmatpush1.msra.mxu0 %v1685
          %1754 = vmatprep.subr.mxu0 %v1684
          %1755 = vmatpush1.msra.mxu0 %v1683
          %1756 = vmatprep.subr.mxu0 %v1682
          %1757 = vmatpush1.msra.mxu0 %v1681
          %1758 = vmatprep.subr.mxu0 %v1680
          %1759 = vmatpush1.msra.mxu0 %v1679
          %1760 = vmatprep.subr.mxu0 %v1678
          %1761 = vmatpush1.msra.mxu0 %v1677
          %1762 = vmatprep.subr.mxu0 %v1676
          %1763 = vmatpush1.msra.mxu0 %v1675
          %1764 = vmatprep.subr.mxu0 %v1674
          %1765 = vmatpush1.msra.mxu0 %v1673
          %1766 = vmatprep.subr.mxu0 %v1672
          %1767 = vmatpush1.msra.mxu0 %v1671
          %1768 = vmatprep.subr.mxu0 %v1670
          %1769 = vmatpush1.msra.mxu0 %v1669
          %1770 = vmatprep.subr.mxu0 %v1668
          %1771 = vmatpush1.msra.mxu0 %v1667
          %1772 = vmatprep.subr.mxu0 %v1666
          %1773 = vmatpush1.msra.mxu0 %v1665
          %1774 = vmatprep.subr.mxu0 %v1728
          %1775 = vmatpush2.msra.mxu0 %v1727
          %1776 = vmatprep.subr.mxu0 %v1726
          %1777 = vmatpush2.msra.mxu0 %v1725
          %1778 = vmatprep.subr.mxu0 %v1724
          %1779 = vmatpush2.msra.mxu0 %v1723
          %1780 = vmatprep.subr.mxu0 %v1722
          %1781 = vmatpush2.msra.mxu0 %v1721
          %1782 = vmatprep.subr.mxu0 %v1720
          %1783 = vmatpush2.msra.mxu0 %v1719
          %1784 = vmatprep.subr.mxu0 %v1718
          %1785 = vmatpush2.msra.mxu0 %v1717
          %1786 = vmatprep.subr.mxu0 %v1716
          %1787 = vmatpush2.msra.mxu0 %v1715
          %1788 = vmatprep.subr.mxu0 %v1714
          %1789 = vmatpush2.msra.mxu0 %v1713
          %1790 = vmatprep.subr.mxu0 %v1712
          %1791 = vmatpush2.msra.mxu0 %v1711
          %1792 = vmatprep.subr.mxu0 %v1710
          %1793 = vmatpush2.msra.mxu0 %v1709
          %1794 = vmatprep.subr.mxu0 %v1708
          %1795 = vmatpush2.msra.mxu0 %v1707
          %1796 = vmatprep.subr.mxu0 %v1706
          %1797 = vmatpush2.msra.mxu0 %v1705
          %1798 = vmatprep.subr.mxu0 %v1704
          %1799 = vmatpush2.msra.mxu0 %v1703
          %1800 = vmatprep.subr.mxu0 %v1702
          %1801 = vmatpush2.msra.mxu0 %v1701
          %1802 = vmatprep.subr.mxu0 %v1700
          %1803 = vmatpush2.msra.mxu0 %v1699
          %1804 = vmatprep.subr.mxu0 %v1698
          %1805 = vmatpush2.msra.mxu0 %v1697
          %1806 = vmatprep.mubr.f32.mxu0 %v1646
          %1807 = vmatmul.mubr.f32.gmra.mxu0 %v1626
          %v1808 = vpop.f32.mrf.mxu0
          %v1809 = vadd.f32 %v1735, %v1808
          %v1810 = vpop.f32.mrf.mxu0
          %v1811 = vadd.f32 %v1739, %v1810
          %1812 = vmatprep.mubr.f32.mxu0 %v1651
          %1813 = vmatmul.mubr.f32.gmra.mxu0 %v1631
          %v1814 = vpop.f32.mrf.mxu0
          %v1815 = vadd.f32 %v1735, %v1814
          %v1816 = vpop.f32.mrf.mxu0
          %v1817 = vadd.f32 %v1739, %v1816
          %1818 = vmatprep.mubr.f32.mxu0 %v1656
          %1819 = vmatmul.mubr.f32.gmra.mxu0 %v1636
          %v1820 = vpop.f32.mrf.mxu0
          %v1821 = vadd.f32 %v1735, %v1820
          %v1822 = vpop.f32.mrf.mxu0
          %v1823 = vadd.f32 %v1739, %v1822
          %1824 = vmatprep.mubr.f32.mxu0 %v1661
          %1825 = vmatmul.mubr.f32.gmra.mxu0 %v1641
          %v1826 = vpop.f32.mrf.mxu0
          %v1827 = vadd.f32 %v1735, %v1826
          %v1828 = vpop.f32.mrf.mxu0
          %v1829 = vadd.f32 %v1739, %v1828
          %1830 = vdwg.mxu0
          %v1831 = vmax.f32 %v1809, 0.0
          %v1832 = vmax.f32 %v1811, 0.0
          %v1833 = vmax.f32 %v1815, 0.0
          %v1834 = vmax.f32 %v1817, 0.0
          %v1835 = vmax.f32 %v1821, 0.0
          %v1836 = vmax.f32 %v1823, 0.0
          %v1837 = vmax.f32 %v1827, 0.0
          %v1838 = vmax.f32 %v1829, 0.0
          %s1839 = scalar_lea.vmem %s11, 256
          %v1840 = vld [vmem:[%s1839] sm:$0xff]
          %v1841 = vld [vmem:[%s1839 + $0x8] sm:$0xff]
          %v1842 = vld [vmem:[%s1839 + $0x10] sm:$0xff]
          %v1843 = vld [vmem:[%s1839 + $0x18] sm:$0xff]
          %v1844 = vld [vmem:[%s1839 + $0x20] sm:$0xff]
          %v1845 = vld [vmem:[%s1839 + $0x28] sm:$0xff]
          %v1846 = vld [vmem:[%s1839 + $0x30] sm:$0xff]
          %v1847 = vld [vmem:[%s1839 + $0x38] sm:$0xff]
          %v1848 = vld [vmem:[%s1839 + $0x40] sm:$0xff]
          %v1849 = vld [vmem:[%s1839 + $0x48] sm:$0xff]
          %v1850 = vld [vmem:[%s1839 + $0x50] sm:$0xff]
          %v1851 = vld [vmem:[%s1839 + $0x58] sm:$0xff]
          %v1852 = vld [vmem:[%s1839 + $0x60] sm:$0xff]
          %v1853 = vld [vmem:[%s1839 + $0x68] sm:$0xff]
          %v1854 = vld [vmem:[%s1839 + $0x70] sm:$0xff]
          %v1855 = vld [vmem:[%s1839 + $0x78] sm:$0xff]
          %v1856 = vld [vmem:[%s1839 + $0x80] sm:$0xff]
          %v1857 = vld [vmem:[%s1839 + $0x88] sm:$0xff]
          %v1858 = vld [vmem:[%s1839 + $0x90] sm:$0xff]
          %v1859 = vld [vmem:[%s1839 + $0x98] sm:$0xff]
          %v1860 = vld [vmem:[%s1839 + $0xa0] sm:$0xff]
          %v1861 = vld [vmem:[%s1839 + $0xa8] sm:$0xff]
          %v1862 = vld [vmem:[%s1839 + $0xb0] sm:$0xff]
          %v1863 = vld [vmem:[%s1839 + $0xb8] sm:$0xff]
          %v1864 = vld [vmem:[%s1839 + $0xc0] sm:$0xff]
          %v1865 = vld [vmem:[%s1839 + $0xc8] sm:$0xff]
          %v1866 = vld [vmem:[%s1839 + $0xd0] sm:$0xff]
          %v1867 = vld [vmem:[%s1839 + $0xd8] sm:$0xff]
          %v1868 = vld [vmem:[%s1839 + $0xe0] sm:$0xff]
          %v1869 = vld [vmem:[%s1839 + $0xe8] sm:$0xff]
          %v1870 = vld [vmem:[%s1839 + $0xf0] sm:$0xff]
          %v1871 = vld [vmem:[%s1839 + $0xf8] sm:$0xff]
          %s1872 = scalar_lea.vmem %s12, 1
          %v1873 = vld [vmem:[%s1872] sm:$0x1]
          %v1875 = vlaneseq
          %v1876 = vshrl.u32 %v1875, 7
          %v1877 = vsub.s32 0, %v1876
          %v1878 = vrot.slane %v1873, %v1877
          %1880 = vmatprep.subr.mxu0 0.0
          %1881 = vmatpush1.msra.mxu0 %v1855
          %1882 = vmatprep.subr.mxu0 0.0
          %1883 = vmatpush1.msra.mxu0 %v1854
          %1884 = vmatprep.subr.mxu0 0.0
          %1885 = vmatpush1.msra.mxu0 %v1853
          %1886 = vmatprep.subr.mxu0 0.0
          %1887 = vmatpush1.msra.mxu0 %v1852
          %1888 = vmatprep.subr.mxu0 0.0
          %1889 = vmatpush1.msra.mxu0 %v1851
          %1890 = vmatprep.subr.mxu0 0.0
          %1891 = vmatpush1.msra.mxu0 %v1850
          %1892 = vmatprep.subr.mxu0 0.0
          %1893 = vmatpush1.msra.mxu0 %v1849
          %1894 = vmatprep.subr.mxu0 0.0
          %1895 = vmatpush1.msra.mxu0 %v1848
          %1896 = vmatprep.subr.mxu0 0.0
          %1897 = vmatpush1.msra.mxu0 %v1847
          %1898 = vmatprep.subr.mxu0 0.0
          %1899 = vmatpush1.msra.mxu0 %v1846
          %1900 = vmatprep.subr.mxu0 0.0
          %1901 = vmatpush1.msra.mxu0 %v1845
          %1902 = vmatprep.subr.mxu0 0.0
          %1903 = vmatpush1.msra.mxu0 %v1844
          %1904 = vmatprep.subr.mxu0 0.0
          %1905 = vmatpush1.msra.mxu0 %v1843
          %1906 = vmatprep.subr.mxu0 0.0
          %1907 = vmatpush1.msra.mxu0 %v1842
          %1908 = vmatprep.subr.mxu0 0.0
          %1909 = vmatpush1.msra.mxu0 %v1841
          %1910 = vmatprep.subr.mxu0 0.0
          %1911 = vmatpush1.msra.mxu0 %v1840
          %1912 = vmatprep.subr.mxu0 0.0
          %1913 = vmatpush2.msra.mxu0 %v1871
          %1914 = vmatprep.subr.mxu0 0.0
          %1915 = vmatpush2.msra.mxu0 %v1870
          %1916 = vmatprep.subr.mxu0 0.0
          %1917 = vmatpush2.msra.mxu0 %v1869
          %1918 = vmatprep.subr.mxu0 0.0
          %1919 = vmatpush2.msra.mxu0 %v1868
          %1920 = vmatprep.subr.mxu0 0.0
          %1921 = vmatpush2.msra.mxu0 %v1867
          %1922 = vmatprep.subr.mxu0 0.0
          %1923 = vmatpush2.msra.mxu0 %v1866
          %1924 = vmatprep.subr.mxu0 0.0
          %1925 = vmatpush2.msra.mxu0 %v1865
          %1926 = vmatprep.subr.mxu0 0.0
          %1927 = vmatpush2.msra.mxu0 %v1864
          %1928 = vmatprep.subr.mxu0 0.0
          %1929 = vmatpush2.msra.mxu0 %v1863
          %1930 = vmatprep.subr.mxu0 0.0
          %1931 = vmatpush2.msra.mxu0 %v1862
          %1932 = vmatprep.subr.mxu0 0.0
          %1933 = vmatpush2.msra.mxu0 %v1861
          %1934 = vmatprep.subr.mxu0 0.0
          %1935 = vmatpush2.msra.mxu0 %v1860
          %1936 = vmatprep.subr.mxu0 0.0
          %1937 = vmatpush2.msra.mxu0 %v1859
          %1938 = vmatprep.subr.mxu0 0.0
          %1939 = vmatpush2.msra.mxu0 %v1858
          %1940 = vmatprep.subr.mxu0 0.0
          %1941 = vmatpush2.msra.mxu0 %v1857
          %1942 = vmatprep.subr.mxu0 0.0
          %1943 = vmatpush2.msra.mxu0 %v1856
          %1944 = vmatprep.mubr.f32.mxu0 %v1832
          %1945 = vmatmul.mubr.f32.gmra.mxu0 %v1831
          %v1946 = vpop.f32.mrf.mxu0
          %v1947 = vadd.f32 %v1878, %v1946
          %v1948 = vpop.f32.mrf.mxu0
          %1949 = vmatprep.mubr.f32.mxu0 %v1834
          %1950 = vmatmul.mubr.f32.gmra.mxu0 %v1833
          %v1951 = vpop.f32.mrf.mxu0
          %v1952 = vadd.f32 %v1878, %v1951
          %v1953 = vpop.f32.mrf.mxu0
          %1954 = vmatprep.mubr.f32.mxu0 %v1836
          %1955 = vmatmul.mubr.f32.gmra.mxu0 %v1835
          %v1956 = vpop.f32.mrf.mxu0
          %v1957 = vadd.f32 %v1878, %v1956
          %v1958 = vpop.f32.mrf.mxu0
          %1959 = vmatprep.mubr.f32.mxu0 %v1838
          %1960 = vmatmul.mubr.f32.gmra.mxu0 %v1837
          %v1961 = vpop.f32.mrf.mxu0
          %v1962 = vadd.f32 %v1878, %v1961
          %v1963 = vpop.f32.mrf.mxu0
          %1964 = vdwg.mxu0
          %v1965 = vmax.f32 %v1947, 0.0
          %v1966 = vmax.f32 %v1952, 0.0
          %v1967 = vmax.f32 %v1957, 0.0
          %v1968 = vmax.f32 %v1962, 0.0
          %1969 = vmatprep.subr.mxu0 0.0
          %1970 = vmatpush1.msra.mxu0 0.0
          %1971 = vmatprep.subr.mxu0 0.0
          %1972 = vmatpush1.msra.mxu0 0.0
          %1973 = vmatprep.subr.mxu0 0.0
          %1974 = vmatpush1.msra.mxu0 0.0
          %1975 = vmatprep.subr.mxu0 0.0
          %1976 = vmatpush1.msra.mxu0 0.0
          %1977 = vmatprep.subr.mxu0 0.0
          %1978 = vmatpush1.msra.mxu0 0.0
          %1979 = vmatprep.subr.mxu0 0.0
          %1980 = vmatpush1.msra.mxu0 0.0
          %1981 = vmatprep.subr.mxu0 0.0
          %1982 = vmatpush1.msra.mxu0 0.0
          %1983 = vmatprep.subr.mxu0 0.0
          %1984 = vmatpush1.msra.mxu0 0.0
          %1985 = vmatprep.subr.mxu0 0.0
          %1986 = vmatpush1.msra.mxu0 0.0
          %1987 = vmatprep.subr.mxu0 0.0
          %1988 = vmatpush1.msra.mxu0 0.0
          %1989 = vmatprep.subr.mxu0 0.0
          %1990 = vmatpush1.msra.mxu0 0.0
          %1991 = vmatprep.subr.mxu0 0.0
          %1992 = vmatpush1.msra.mxu0 0.0
          %1993 = vmatprep.subr.mxu0 0.0
          %1994 = vmatpush1.msra.mxu0 %v1968
          %1995 = vmatprep.subr.mxu0 0.0
          %1996 = vmatpush1.msra.mxu0 %v1967
          %1997 = vmatprep.subr.mxu0 0.0
          %1998 = vmatpush1.msra.mxu0 %v1966
          %1999 = vmatprep.subr.mxu0 0.0
          %2000 = vmatpush1.msra.mxu0 %v1965
          %2001 = vmatprep.subr.mxu0 0.0
          %2002 = vmatpush2.msra.mxu0 0.0
          %2003 = vmatprep.subr.mxu0 0.0
          %2004 = vmatpush2.msra.mxu0 0.0
          %2005 = vmatprep.subr.mxu0 0.0
          %2006 = vmatpush2.msra.mxu0 0.0
          %2007 = vmatprep.subr.mxu0 0.0
          %2008 = vmatpush2.msra.mxu0 0.0
          %2009 = vmatprep.subr.mxu0 0.0
          %2010 = vmatpush2.msra.mxu0 0.0
          %2011 = vmatprep.subr.mxu0 0.0
          %2012 = vmatpush2.msra.mxu0 0.0
          %2013 = vmatprep.subr.mxu0 0.0
          %2014 = vmatpush2.msra.mxu0 0.0
          %2015 = vmatprep.subr.mxu0 0.0
          %2016 = vmatpush2.msra.mxu0 0.0
          %2017 = vmatprep.subr.mxu0 0.0
          %2018 = vmatpush2.msra.mxu0 0.0
          %2019 = vmatprep.subr.mxu0 0.0
          %2020 = vmatpush2.msra.mxu0 0.0
          %2021 = vmatprep.subr.mxu0 0.0
          %2022 = vmatpush2.msra.mxu0 0.0
          %2023 = vmatprep.subr.mxu0 0.0
          %2024 = vmatpush2.msra.mxu0 0.0
          %2025 = vmatprep.subr.mxu0 0.0
          %2026 = vmatpush2.msra.mxu0 0.0
          %2027 = vmatprep.subr.mxu0 0.0
          %2028 = vmatpush2.msra.mxu0 0.0
          %2029 = vmatprep.subr.mxu0 0.0
          %2030 = vmatpush2.msra.mxu0 0.0
          %2031 = vmatprep.subr.mxu0 0.0
          %2032 = vmatpush2.msra.mxu0 0.0
          %2033 = vmatprep.mubr.f32.mxu0 0.0
          %2034 = vmatmul.mubr.f32.gmra.mxu0 %v1475
          %v2035 = vpop.f32.mrf.mxu0
          %v2036 = vadd.f32 0.0, %v2035
          %v2037 = vpop.f32.mrf.mxu0
          %2038 = vmatprep.mubr.f32.mxu0 0.0
          %2039 = vmatmul.mubr.f32.gmra.mxu0 %v1478
          %v2040 = vpop.f32.mrf.mxu0
          %v2041 = vadd.f32 0.0, %v2040
          %v2042 = vpop.f32.mrf.mxu0
          %2043 = vdwg.mxu0
          %v2044 = vadd.f32 %v1557, %v2036
          %v2045 = vadd.f32 %v1558, %v2041
          %v2046 = vmax.f32 %v2044, 0.0
          %v2047 = vmax.f32 %v2045, 0.0
          %2048 = vst [vmem:[#allocation2] sm:$0xff] %v2046
          %2049 = vst [vmem:[#allocation2 + $0x8] sm:$0xff] %v2047
          %2050 = vst [vmem:[#allocation3] sm:$0xff] %v2046
          %2051 = vst [vmem:[#allocation3 + $0x8] sm:$0xff] %v2047
        $region96: #{forward.1} parent=91 // pred_fallthru
          _
        %v2052 = vld [vmem:[#allocation2] sm:$0xff]
        %v2053 = vld [vmem:[#allocation2 + $0x8] sm:$0xff]
        %v2054 = vld [vmem:[%s642] sm:$0xff]
        %v2055 = vld [vmem:[%s646] sm:$0xff]
        %v2056 = vlaneseq
        %v2057 = vand.u32 %v2056, 127
        %2058 = vset.pattern.permute.xlu0 0
        %2059 = vperm.xlu0 %2058, %v2054
        %v2060 = vpop.permute.xlu0 %2059
        %2061 = vset.pattern.permute.xlu0 0
        %2062 = vperm.xlu0 %2061, %v2055
        %v2063 = vpop.permute.xlu0 %2062
        %vm2064 = vcmp.eq.s32.totalorder %v2060, %v2057
        %vm2065 = vcmp.eq.s32.totalorder %v2063, %v2057
        %v2066 = vsel %vm2064, 1, 0
        %v2067 = vsel %vm2065, 1, 0
        %v2068 = vcvt.s32.f32 %v2066
        %v2069 = vcvt.s32.f32 %v2067
        %vm2070 = vcmask 130048
        %v2072 = vsel %vm2070, %v2068, 0
        %v2075 = vsel %vm2070, %v2069, 0
        %2077 = vmatprep.subr.mxu0 0.0
        %2078 = vmatpush1.msra.mxu0 0.0
        %2079 = vmatprep.subr.mxu0 0.0
        %2080 = vmatpush1.msra.mxu0 0.0
        %2081 = vmatprep.subr.mxu0 0.0
        %2082 = vmatpush1.msra.mxu0 0.0
        %2083 = vmatprep.subr.mxu0 0.0
        %2084 = vmatpush1.msra.mxu0 0.0
        %2085 = vmatprep.subr.mxu0 0.0
        %2086 = vmatpush1.msra.mxu0 0.0
        %2087 = vmatprep.subr.mxu0 0.0
        %2088 = vmatpush1.msra.mxu0 0.0
        %2089 = vmatprep.subr.mxu0 0.0
        %2090 = vmatpush1.msra.mxu0 0.0
        %2091 = vmatprep.subr.mxu0 0.0
        %2092 = vmatpush1.msra.mxu0 0.0
        %2093 = vmatprep.subr.mxu0 0.0
        %2094 = vmatpush1.msra.mxu0 0.0
        %2095 = vmatprep.subr.mxu0 0.0
        %2096 = vmatpush1.msra.mxu0 0.0
        %2097 = vmatprep.subr.mxu0 0.0
        %2098 = vmatpush1.msra.mxu0 0.0
        %2099 = vmatprep.subr.mxu0 0.0
        %2100 = vmatpush1.msra.mxu0 0.0
        %2101 = vmatprep.subr.mxu0 0.0
        %2102 = vmatpush1.msra.mxu0 0.0
        %2103 = vmatprep.subr.mxu0 0.0
        %2104 = vmatpush1.msra.mxu0 0.0
        %2105 = vmatprep.subr.mxu0 0.0
        %2106 = vmatpush1.msra.mxu0 %v2053
        %2107 = vmatprep.subr.mxu0 0.0
        %2108 = vmatpush1.msra.mxu0 %v2052
        %2109 = vmatprep.subr.mxu0 0.0
        %2110 = vmatpush2.msra.mxu0 0.0
        %2111 = vmatprep.subr.mxu0 0.0
        %2112 = vmatpush2.msra.mxu0 0.0
        %2113 = vmatprep.subr.mxu0 0.0
        %2114 = vmatpush2.msra.mxu0 0.0
        %2115 = vmatprep.subr.mxu0 0.0
        %2116 = vmatpush2.msra.mxu0 0.0
        %2117 = vmatprep.subr.mxu0 0.0
        %2118 = vmatpush2.msra.mxu0 0.0
        %2119 = vmatprep.subr.mxu0 0.0
        %2120 = vmatpush2.msra.mxu0 0.0
        %2121 = vmatprep.subr.mxu0 0.0
        %2122 = vmatpush2.msra.mxu0 0.0
        %2123 = vmatprep.subr.mxu0 0.0
        %2124 = vmatpush2.msra.mxu0 0.0
        %2125 = vmatprep.subr.mxu0 0.0
        %2126 = vmatpush2.msra.mxu0 0.0
        %2127 = vmatprep.subr.mxu0 0.0
        %2128 = vmatpush2.msra.mxu0 0.0
        %2129 = vmatprep.subr.mxu0 0.0
        %2130 = vmatpush2.msra.mxu0 0.0
        %2131 = vmatprep.subr.mxu0 0.0
        %2132 = vmatpush2.msra.mxu0 0.0
        %2133 = vmatprep.subr.mxu0 0.0
        %2134 = vmatpush2.msra.mxu0 0.0
        %2135 = vmatprep.subr.mxu0 0.0
        %2136 = vmatpush2.msra.mxu0 0.0
        %2137 = vmatprep.subr.mxu0 0.0
        %2138 = vmatpush2.msra.mxu0 0.0
        %2139 = vmatprep.subr.mxu0 0.0
        %2140 = vmatpush2.msra.mxu0 0.0
        %2141 = vmatprep.mubr.f32.mxu0 0.0
        %2142 = vmatmul.mubr.f32.gmra.mxu0 %v2072
        %v2143 = vpop.f32.mrf.mxu0
        %v2144 = vadd.f32 0.0, %v2143
        %v2145 = vpop.f32.mrf.mxu0
        %2146 = vmatprep.mubr.f32.mxu0 0.0
        %2147 = vmatmul.mubr.f32.gmra.mxu0 %v2075
        %v2148 = vpop.f32.mrf.mxu0
        %v2149 = vadd.f32 0.0, %v2148
        %v2150 = vpop.f32.mrf.mxu0
        %2151 = vdwg.mxu0
        %2152 = vst [vmem:[%s632] sm:$0xff] %v2144
        %2153 = vst [vmem:[%s632 + $0x8] sm:$0xff] %v2149
        %v2154 = vld [vmem:[%s13] sm:$0xff]
        %v2155 = vld [vmem:[%s13 + $0x8] sm:$0xff]
        %v2156 = vld [vmem:[%s13 + $0x10] sm:$0xff]
        %v2157 = vld [vmem:[%s13 + $0x18] sm:$0xff]
        %v2158 = vld [vmem:[%s13 + $0x20] sm:$0xff]
        %v2159 = vld [vmem:[%s13 + $0x28] sm:$0xff]
        %v2160 = vld [vmem:[%s13 + $0x30] sm:$0xff]
        %v2161 = vld [vmem:[%s13 + $0x38] sm:$0xff]
        %v2162 = vld [vmem:[%s13 + $0x40] sm:$0xff]
        %v2163 = vld [vmem:[%s13 + $0x48] sm:$0xff]
        %v2164 = vld [vmem:[%s13 + $0x50] sm:$0xff]
        %v2165 = vld [vmem:[%s13 + $0x58] sm:$0xff]
        %v2166 = vld [vmem:[%s13 + $0x60] sm:$0xff]
        %v2167 = vld [vmem:[%s13 + $0x68] sm:$0xff]
        %v2168 = vld [vmem:[%s13 + $0x70] sm:$0xff]
        %v2169 = vld [vmem:[%s13 + $0x78] sm:$0xff]
        %v2170 = vld [vmem:[%s14] sm:$0xff]
        %v2171 = vld [vmem:[%s14 + $0x8] sm:$0xff]
        %v2172 = vld [vmem:[%s14 + $0x10] sm:$0xff]
        %v2173 = vld [vmem:[%s14 + $0x18] sm:$0xff]
        %v2174 = vld [vmem:[%s14 + $0x20] sm:$0xff]
        %v2175 = vld [vmem:[%s14 + $0x28] sm:$0xff]
        %v2176 = vld [vmem:[%s14 + $0x30] sm:$0xff]
        %v2177 = vld [vmem:[%s14 + $0x38] sm:$0xff]
        %v2178 = vld [vmem:[%s14 + $0x40] sm:$0xff]
        %v2179 = vld [vmem:[%s14 + $0x48] sm:$0xff]
        %v2180 = vld [vmem:[%s14 + $0x50] sm:$0xff]
        %v2181 = vld [vmem:[%s14 + $0x58] sm:$0xff]
        %v2182 = vld [vmem:[%s14 + $0x60] sm:$0xff]
        %v2183 = vld [vmem:[%s14 + $0x68] sm:$0xff]
        %v2184 = vld [vmem:[%s14 + $0x70] sm:$0xff]
        %v2185 = vld [vmem:[%s14 + $0x78] sm:$0xff]
        %2186 = vmatprep.subr.mxu0 0.0
        %2187 = vmatpush1.msra.mxu0 %v2185
        %2188 = vmatprep.subr.mxu0 0.0
        %2189 = vmatpush1.msra.mxu0 %v2184
        %2190 = vmatprep.subr.mxu0 0.0
        %2191 = vmatpush1.msra.mxu0 %v2183
        %2192 = vmatprep.subr.mxu0 0.0
        %2193 = vmatpush1.msra.mxu0 %v2182
        %2194 = vmatprep.subr.mxu0 0.0
        %2195 = vmatpush1.msra.mxu0 %v2181
        %2196 = vmatprep.subr.mxu0 0.0
        %2197 = vmatpush1.msra.mxu0 %v2180
        %2198 = vmatprep.subr.mxu0 0.0
        %2199 = vmatpush1.msra.mxu0 %v2179
        %2200 = vmatprep.subr.mxu0 0.0
        %2201 = vmatpush1.msra.mxu0 %v2178
        %2202 = vmatprep.subr.mxu0 0.0
        %2203 = vmatpush1.msra.mxu0 %v2177
        %2204 = vmatprep.subr.mxu0 0.0
        %2205 = vmatpush1.msra.mxu0 %v2176
        %2206 = vmatprep.subr.mxu0 0.0
        %2207 = vmatpush1.msra.mxu0 %v2175
        %2208 = vmatprep.subr.mxu0 0.0
        %2209 = vmatpush1.msra.mxu0 %v2174
        %2210 = vmatprep.subr.mxu0 0.0
        %2211 = vmatpush1.msra.mxu0 %v2173
        %2212 = vmatprep.subr.mxu0 0.0
        %2213 = vmatpush1.msra.mxu0 %v2172
        %2214 = vmatprep.subr.mxu0 0.0
        %2215 = vmatpush1.msra.mxu0 %v2171
        %2216 = vmatprep.subr.mxu0 0.0
        %2217 = vmatpush1.msra.mxu0 %v2170
        %2218 = vmatprep.subr.mxu0 0.0
        %2219 = vmatpush2.msra.mxu0 0.0
        %2220 = vmatprep.subr.mxu0 0.0
        %2221 = vmatpush2.msra.mxu0 0.0
        %2222 = vmatprep.subr.mxu0 0.0
        %2223 = vmatpush2.msra.mxu0 0.0
        %2224 = vmatprep.subr.mxu0 0.0
        %2225 = vmatpush2.msra.mxu0 0.0
        %2226 = vmatprep.subr.mxu0 0.0
        %2227 = vmatpush2.msra.mxu0 0.0
        %2228 = vmatprep.subr.mxu0 0.0
        %2229 = vmatpush2.msra.mxu0 0.0
        %2230 = vmatprep.subr.mxu0 0.0
        %2231 = vmatpush2.msra.mxu0 0.0
        %2232 = vmatprep.subr.mxu0 0.0
        %2233 = vmatpush2.msra.mxu0 0.0
        %2234 = vmatprep.subr.mxu0 0.0
        %2235 = vmatpush2.msra.mxu0 0.0
        %2236 = vmatprep.subr.mxu0 0.0
        %2237 = vmatpush2.msra.mxu0 0.0
        %2238 = vmatprep.subr.mxu0 0.0
        %2239 = vmatpush2.msra.mxu0 0.0
        %2240 = vmatprep.subr.mxu0 0.0
        %2241 = vmatpush2.msra.mxu0 0.0
        %2242 = vmatprep.subr.mxu0 0.0
        %2243 = vmatpush2.msra.mxu0 0.0
        %2244 = vmatprep.subr.mxu0 0.0
        %2245 = vmatpush2.msra.mxu0 0.0
        %2246 = vmatprep.subr.mxu0 0.0
        %2247 = vmatpush2.msra.mxu0 0.0
        %2248 = vmatprep.subr.mxu0 0.0
        %2249 = vmatpush2.msra.mxu0 0.0
        %2250 = vmatprep.mubr.f32.mxu0 0.0
        %2251 = vmatmul.mubr.f32.gmra.mxu0 %v2149
        %v2252 = vpop.f32.mrf.mxu0
        %v2253 = vadd.f32 0.0, %v2252
        %v2254 = vpop.f32.mrf.mxu0
        %2255 = vdwg.mxu0
        %2256 = vmatprep.subr.mxu0 0.0
        %2257 = vmatpush1.msra.mxu0 %v2169
        %2258 = vmatprep.subr.mxu0 0.0
        %2259 = vmatpush1.msra.mxu0 %v2168
        %2260 = vmatprep.subr.mxu0 0.0
        %2261 = vmatpush1.msra.mxu0 %v2167
        %2262 = vmatprep.subr.mxu0 0.0
        %2263 = vmatpush1.msra.mxu0 %v2166
        %2264 = vmatprep.subr.mxu0 0.0
        %2265 = vmatpush1.msra.mxu0 %v2165
        %2266 = vmatprep.subr.mxu0 0.0
        %2267 = vmatpush1.msra.mxu0 %v2164
        %2268 = vmatprep.subr.mxu0 0.0
        %2269 = vmatpush1.msra.mxu0 %v2163
        %2270 = vmatprep.subr.mxu0 0.0
        %2271 = vmatpush1.msra.mxu0 %v2162
        %2272 = vmatprep.subr.mxu0 0.0
        %2273 = vmatpush1.msra.mxu0 %v2161
        %2274 = vmatprep.subr.mxu0 0.0
        %2275 = vmatpush1.msra.mxu0 %v2160
        %2276 = vmatprep.subr.mxu0 0.0
        %2277 = vmatpush1.msra.mxu0 %v2159
        %2278 = vmatprep.subr.mxu0 0.0
        %2279 = vmatpush1.msra.mxu0 %v2158
        %2280 = vmatprep.subr.mxu0 0.0
        %2281 = vmatpush1.msra.mxu0 %v2157
        %2282 = vmatprep.subr.mxu0 0.0
        %2283 = vmatpush1.msra.mxu0 %v2156
        %2284 = vmatprep.subr.mxu0 0.0
        %2285 = vmatpush1.msra.mxu0 %v2155
        %2286 = vmatprep.subr.mxu0 0.0
        %2287 = vmatpush1.msra.mxu0 %v2154
        %2288 = vmatprep.subr.mxu0 0.0
        %2289 = vmatpush2.msra.mxu0 0.0
        %2290 = vmatprep.subr.mxu0 0.0
        %2291 = vmatpush2.msra.mxu0 0.0
        %2292 = vmatprep.subr.mxu0 0.0
        %2293 = vmatpush2.msra.mxu0 0.0
        %2294 = vmatprep.subr.mxu0 0.0
        %2295 = vmatpush2.msra.mxu0 0.0
        %2296 = vmatprep.subr.mxu0 0.0
        %2297 = vmatpush2.msra.mxu0 0.0
        %2298 = vmatprep.subr.mxu0 0.0
        %2299 = vmatpush2.msra.mxu0 0.0
        %2300 = vmatprep.subr.mxu0 0.0
        %2301 = vmatpush2.msra.mxu0 0.0
        %2302 = vmatprep.subr.mxu0 0.0
        %2303 = vmatpush2.msra.mxu0 0.0
        %2304 = vmatprep.subr.mxu0 0.0
        %2305 = vmatpush2.msra.mxu0 0.0
        %2306 = vmatprep.subr.mxu0 0.0
        %2307 = vmatpush2.msra.mxu0 0.0
        %2308 = vmatprep.subr.mxu0 0.0
        %2309 = vmatpush2.msra.mxu0 0.0
        %2310 = vmatprep.subr.mxu0 0.0
        %2311 = vmatpush2.msra.mxu0 0.0
        %2312 = vmatprep.subr.mxu0 0.0
        %2313 = vmatpush2.msra.mxu0 0.0
        %2314 = vmatprep.subr.mxu0 0.0
        %2315 = vmatpush2.msra.mxu0 0.0
        %2316 = vmatprep.subr.mxu0 0.0
        %2317 = vmatpush2.msra.mxu0 0.0
        %2318 = vmatprep.subr.mxu0 0.0
        %2319 = vmatpush2.msra.mxu0 0.0
        %2320 = vmatprep.mubr.f32.mxu0 0.0
        %2321 = vmatmul.mubr.f32.gmra.mxu0 %v2144
        %v2322 = vpop.f32.mrf.mxu0
        %v2323 = vadd.f32 %v2253, %v2322
        %v2324 = vpop.f32.mrf.mxu0
        %2325 = vdwg.mxu0
        %v2326 = vld [vmem:[%s15] sm:$0x1]
        %v2328 = vlaneseq
        %v2329 = vshrl.u32 %v2328, 7
        %v2330 = vsub.s32 0, %v2329
        %v2331 = vrot.slane %v2326, %v2330
        %v2333 = vadd.f32 %v2323, %v2331
        %vm2334 = vcmp.gt.f32.partialorder %v2333, 0.0
        %v2335 = vmul.f32 %v2333, 0.01
        %v2336 = vsel %vm2334, %v2333, %v2335
        %v2337 = vld [vmem:[%s16] sm:$0xff]
        %v2338 = vld [vmem:[%s16 + $0x8] sm:$0xff]
        %v2339 = vld [vmem:[%s16 + $0x10] sm:$0xff]
        %v2340 = vld [vmem:[%s16 + $0x18] sm:$0xff]
        %v2341 = vld [vmem:[%s16 + $0x20] sm:$0xff]
        %v2342 = vld [vmem:[%s16 + $0x28] sm:$0xff]
        %v2343 = vld [vmem:[%s16 + $0x30] sm:$0xff]
        %v2344 = vld [vmem:[%s16 + $0x38] sm:$0xff]
        %v2345 = vld [vmem:[%s16 + $0x40] sm:$0xff]
        %v2346 = vld [vmem:[%s16 + $0x48] sm:$0xff]
        %v2347 = vld [vmem:[%s16 + $0x50] sm:$0xff]
        %v2348 = vld [vmem:[%s16 + $0x58] sm:$0xff]
        %v2349 = vld [vmem:[%s16 + $0x60] sm:$0xff]
        %v2350 = vld [vmem:[%s16 + $0x68] sm:$0xff]
        %v2351 = vld [vmem:[%s16 + $0x70] sm:$0xff]
        %v2352 = vld [vmem:[%s16 + $0x78] sm:$0xff]
        %v2353 = vld [vmem:[%s17] sm:$0x1]
        %v2355 = vlaneseq
        %v2356 = vshrl.u32 %v2355, 7
        %v2357 = vsub.s32 0, %v2356
        %v2358 = vrot.slane %v2353, %v2357
        %2360 = vmatprep.subr.mxu0 0.0
        %2361 = vmatpush1.msra.mxu0 %v2352
        %2362 = vmatprep.subr.mxu0 0.0
        %2363 = vmatpush1.msra.mxu0 %v2351
        %2364 = vmatprep.subr.mxu0 0.0
        %2365 = vmatpush1.msra.mxu0 %v2350
        %2366 = vmatprep.subr.mxu0 0.0
        %2367 = vmatpush1.msra.mxu0 %v2349
        %2368 = vmatprep.subr.mxu0 0.0
        %2369 = vmatpush1.msra.mxu0 %v2348
        %2370 = vmatprep.subr.mxu0 0.0
        %2371 = vmatpush1.msra.mxu0 %v2347
        %2372 = vmatprep.subr.mxu0 0.0
        %2373 = vmatpush1.msra.mxu0 %v2346
        %2374 = vmatprep.subr.mxu0 0.0
        %2375 = vmatpush1.msra.mxu0 %v2345
        %2376 = vmatprep.subr.mxu0 0.0
        %2377 = vmatpush1.msra.mxu0 %v2344
        %2378 = vmatprep.subr.mxu0 0.0
        %2379 = vmatpush1.msra.mxu0 %v2343
        %2380 = vmatprep.subr.mxu0 0.0
        %2381 = vmatpush1.msra.mxu0 %v2342
        %2382 = vmatprep.subr.mxu0 0.0
        %2383 = vmatpush1.msra.mxu0 %v2341
        %2384 = vmatprep.subr.mxu0 0.0
        %2385 = vmatpush1.msra.mxu0 %v2340
        %2386 = vmatprep.subr.mxu0 0.0
        %2387 = vmatpush1.msra.mxu0 %v2339
        %2388 = vmatprep.subr.mxu0 0.0
        %2389 = vmatpush1.msra.mxu0 %v2338
        %2390 = vmatprep.subr.mxu0 0.0
        %2391 = vmatpush1.msra.mxu0 %v2337
        %2392 = vmatprep.subr.mxu0 0.0
        %2393 = vmatpush2.msra.mxu0 0.0
        %2394 = vmatprep.subr.mxu0 0.0
        %2395 = vmatpush2.msra.mxu0 0.0
        %2396 = vmatprep.subr.mxu0 0.0
        %2397 = vmatpush2.msra.mxu0 0.0
        %2398 = vmatprep.subr.mxu0 0.0
        %2399 = vmatpush2.msra.mxu0 0.0
        %2400 = vmatprep.subr.mxu0 0.0
        %2401 = vmatpush2.msra.mxu0 0.0
        %2402 = vmatprep.subr.mxu0 0.0
        %2403 = vmatpush2.msra.mxu0 0.0
        %2404 = vmatprep.subr.mxu0 0.0
        %2405 = vmatpush2.msra.mxu0 0.0
        %2406 = vmatprep.subr.mxu0 0.0
        %2407 = vmatpush2.msra.mxu0 0.0
        %2408 = vmatprep.subr.mxu0 0.0
        %2409 = vmatpush2.msra.mxu0 0.0
        %2410 = vmatprep.subr.mxu0 0.0
        %2411 = vmatpush2.msra.mxu0 0.0
        %2412 = vmatprep.subr.mxu0 0.0
        %2413 = vmatpush2.msra.mxu0 0.0
        %2414 = vmatprep.subr.mxu0 0.0
        %2415 = vmatpush2.msra.mxu0 0.0
        %2416 = vmatprep.subr.mxu0 0.0
        %2417 = vmatpush2.msra.mxu0 0.0
        %2418 = vmatprep.subr.mxu0 0.0
        %2419 = vmatpush2.msra.mxu0 0.0
        %2420 = vmatprep.subr.mxu0 0.0
        %2421 = vmatpush2.msra.mxu0 0.0
        %2422 = vmatprep.subr.mxu0 0.0
        %2423 = vmatpush2.msra.mxu0 0.0
        %2424 = vmatprep.mubr.f32.mxu0 0.0
        %2425 = vmatmul.mubr.f32.gmra.mxu0 %v2336
        %v2426 = vpop.f32.mrf.mxu0
        %v2427 = vadd.f32 %v2358, %v2426
        %v2428 = vpop.f32.mrf.mxu0
        %2429 = vdwg.mxu0
        %2430 = vst [vmem:[%s650] sm:$0xff] %v2427
        %s2431 = sand.u32 %s453, 1
        %s2432 = scalar_lea.sflag [#allocation6], %s2431
        %s2433 = sand.u32 %s453, 1
        %s2434 = smul.addr %s2433, 16
        %s2435 = scalar_lea.vmem [#allocation5], %s2434
        %p2436 = scmp.lt.s32.totalorder %s36, 2
        %s2437 = scalar_select %p2436, %s36, 2
        %s2438 = smul.addr %s2437, 8
        %s2439 = scalar_lea.vmem %s20, %s2438
        // Predicated region
        $region97: #{forward.1} parent=91 // pred_check
          %p2440 = pneg %p437
        $region98: #{forward.1} parent=91 // pred_check_branch
          %2442 = sbr.rel (%p2440) target = $region100
        $region99: #{forward.1} parent=91 // pred_region
          %s2444 = ssub.s32 256, 256
          %2445 = vsyncadd [#allocation4], %s2444
          %s2446 = sshll.u32 [#allocation3], 4
          %s2447 = int_to_ptr.vmem [resolvable:$true] %s2446
          %2452 = dma.vmem_to_hbm [thread:$0]  %s2447, 256, %s18, [#allocation4], 128, 128, 8
        $region100: #{forward.1} parent=91 // pred_fallthru
          _
        // Predicated region
        $region101: #{forward.1} parent=91 // pred_check
          %p2453 = pneg %p463
        $region102: #{forward.1} parent=91 // pred_check_branch
          %2455 = sbr.rel (%p2453) target = $region104
        $region103: #{forward.1} parent=91 // pred_region
          %s2457 = ssub.s32 256, 256
          %2458 = vsyncadd %s2432, %s2457
          %s2459 = smul.addr %s36, 2
          %s2460 = smul.addr %s2459, 128
          %s2461 = scalar_lea.hbm %s19, %s2460
          %s2463 = sshll.u32 %s2435, 4
          %s2464 = int_to_ptr.vmem [resolvable:$true] %s2463
          %2466 = dma.vmem_to_hbm [thread:$0]  %s2464, 256, %s2461, %s2432
        $region104: #{forward.1} parent=91 // pred_fallthru
          _
        // Predicated region
        $region105: #{forward.1} parent=91 // pred_check
          %p2467 = pneg %p489
        $region106: #{forward.1} parent=91 // pred_check_branch
          %2469 = sbr.rel (%p2467) target = $region108
        $region107: #{forward.1} parent=91 // pred_region
          _
        $region108: #{forward.1} parent=91 // pred_fallthru
          _
        // Predicated region
        $region109: #{forward.1} parent=91 // pred_check
          %p2470 = pneg %p437
        $region110: #{forward.1} parent=91 // pred_check_branch
          %2472 = sbr.rel (%p2470) target = $region112
        $region111: #{forward.1} parent=91 // pred_region
          %2473 = dma.done [#allocation4], 256
        $region112: #{forward.1} parent=91 // pred_fallthru
          _
      $region92: #{forward.1} parent=5 // pred_fallthru
        _
      %p2474 = scmp.le.s32.totalorder 2, %s31
      // Predicated region
      $region113: #{forward.1} parent=5 // pred_check
        %p2475 = pneg %p2474
      $region114: #{forward.1} parent=5 // pred_check_branch
        %2477 = sbr.rel (%p2475) target = $region116
      $region115: #{forward.1} parent=5 // pred_region
        %s2478 = ssub.s32 %s31, 2
        // Predicated region
        $region117: #{forward.1} parent=115 // pred_check
          %p2479 = pneg %p469
        $region118: #{forward.1} parent=115 // pred_check_branch
          %2481 = sbr.rel (%p2479) target = $region120
        $region119: #{forward.1} parent=115 // pred_region
          %s2482 = sand.u32 %s454, 1
          %s2483 = scalar_lea.sflag [#allocation6], %s2482
          %s2484 = sand.u32 %s454, 1
          %s2485 = smul.addr %s2484, 16
          %s2486 = scalar_lea.vmem [#allocation5], %s2485
          %2487 = dma.done %s2483, 256
        $region120: #{forward.1} parent=115 // pred_fallthru
          _
        // Predicated region
        $region121: #{forward.1} parent=115 // pred_check
          %p2488 = pneg %p495
        $region122: #{forward.1} parent=115 // pred_check_branch
          %2490 = sbr.rel (%p2488) target = $region124
        $region123: #{forward.1} parent=115 // pred_region
          %p2491 = scmp.lt.s32.totalorder %s37, 2
          %s2492 = scalar_select %p2491, %s37, 2
          %s2493 = smul.addr %s2492, 8
          %s2494 = scalar_lea.vmem %s20, %s2493
        $region124: #{forward.1} parent=115 // pred_fallthru
          _
      $region116: #{forward.1} parent=5 // pred_fallthru
        _
    $region6: #{forward.1} parent=1 // loop_footer
      %s35 = sadd.s32 1, %s31
    $region7: #{forward.1} parent=1 // loop_footer_branch
      %30 = sbr.rel target = $region3
    $region8: #{forward.1} parent=1 // loop_exit
      _
    %2495 = vsyncpa [#allocation4], 1
    %s2496 = scalar_lea.sflag [#allocation4], 1
    %2497 = vsyncpa %s2496, 1
    %2498 = vsyncpa [#allocation6], 1
    %s2499 = scalar_lea.sflag [#allocation6], 1
    %2500 = vsyncpa %s2499, 1

</llo_original>
